<compile_context>
chip_gen: v7x
topology: tpu7x:2x2x1
jax: 0.10.0
libtpu: 0.0.40
codegen_flags: <defaults>
</compile_context>

<pallas_src>
import math

import jax
import jax.numpy as jnp
from jax.experimental import pallas as pl
from jax.experimental.pallas import tpu as pltpu

NHEAD = 8
EPS_BN = 1e-5
EPS_LN = 1e-5


def _round_up(x, m):
    return ((x + m - 1) // m) * m


def positional_encoding(L, D):
    pos = jnp.arange(L, dtype=jnp.float32)[:, None]
    div = jnp.exp(jnp.arange(0, D, 2, dtype=jnp.float32) * (-math.log(10000.0) / D))
    ang = pos * div                                              # (L, D/2)
    # interleave: pe[:, 0::2] = sin, pe[:, 1::2] = cos
    return jnp.stack([jnp.sin(ang), jnp.cos(ang)], axis=-1).reshape(L, D)


def _layer_norm(x, g, b):
    mu = jnp.mean(x, axis=-1, keepdims=True)
    var = jnp.mean((x - mu) ** 2, axis=-1, keepdims=True)
    return (x - mu) * jax.lax.rsqrt(var + EPS_LN) * g + b


def _vmem_limit_bytes():
    """Scoped-VMEM request: ~7/8 of physical VMEM, capped at 100 MiB."""
    cap = 64 * 1024 * 1024
    try:
        cap = int(pltpu.get_tpu_info().vmem_capacity_bytes)
    except Exception:
        pass
    return min((cap * 7) // 8, 100 * 1024 * 1024)


def _pick_block(N):
    n8 = _round_up(max(N, 8), 8)
    if n8 >= 512:
        return 256                       # fills 256-wide MXU; TN*L >= 2048 for K/V
    if n8 >= 16:
        return max(8, _round_up(n8 // 2, 8))   # >=2 blocks so both v7x TCs get work
    return 8


def _make_kernel(TN, L, D, mm_dtype):
    hd = D // NHEAD
    scale = 1.0 / math.sqrt(hd)

    def kernel(msg_ref, xlast_ref, fself_ref,
               hp_ref, hpt_ref,
               wq_ref, bq_ref, wk_ref, bk_ref, wv_ref, bv_ref,
               wo_ref, bo_ref, g1_ref, be1_ref,
               w1_ref, b1_ref, w2_ref, b2_ref, g2_ref, be2_ref,
               wself_ref, wneigh_ref,
               out_ref):
        def mm(a, w_ref, b_ref=None):            # MXU matmul, f32 accumulation
            out = jnp.dot(a, w_ref[...], preferred_element_type=jnp.float32)
            if b_ref is not None:
                out = out + b_ref[...]
            return out

        x2 = msg_ref[...]                        # (TN*L, D) mm_dtype: BN+PE mailbox
        x_last = xlast_ref[...]                  # (TN, D)  f32: last seq position
        xl_mm = x_last.astype(mm_dtype)

        # ---- self-attention: query = last sequence position only ----
        q = mm(xl_mm, wq_ref, bq_ref)                                 # (TN, D)
        k3 = mm(x2, wk_ref, bk_ref).reshape(TN, L, D)
        v3 = mm(x2, wv_ref, bv_ref).reshape(TN, L, D)
        # per-head scores via a lane->head pooling matmul (kept f32: tiny N-dim)
        prod = (q[:, None, :] * k3).reshape(TN * L, D)
        scores = (jnp.dot(prod, hp_ref[...],
                          preferred_element_type=jnp.float32) * scale
                  ).reshape(TN, L, NHEAD)
        m = jnp.max(scores, axis=1, keepdims=True)
        p = jnp.exp(scores - m)
        denom = jnp.sum(p, axis=1, keepdims=True)
        p = p * pl.reciprocal(denom, approx=True)
        # broadcast head weights back onto lanes, reduce over L
        p_lane = jnp.dot(p.reshape(TN * L, NHEAD), hpt_ref[...],
                         preferred_element_type=jnp.float32).reshape(TN, L, D)
        ctx = jnp.sum(p_lane * v3, axis=1)                            # (TN, D)
        attn = mm(ctx.astype(mm_dtype), wo_ref, bo_ref)

        # ---- post-norm transformer tail (last position only) ----
        h1 = _layer_norm(x_last + attn, g1_ref[...], be1_ref[...])
        ff = jnp.maximum(mm(h1.astype(mm_dtype), w1_ref, b1_ref), 0.0)
        ff = mm(ff.astype(mm_dtype), w2_ref, b2_ref)
        neigh = _layer_norm(h1 + ff, g2_ref[...], be2_ref[...])

        # ---- rst = fc_self(feat_bn) + fc_neigh(neigh) ----
        out_ref[...] = (mm(fself_ref[...], wself_ref)
                        + mm(neigh.astype(mm_dtype), wneigh_ref)
                        ).astype(out_ref.dtype)

    return kernel


def eopa_forward(feat, nbr_idx, params, *, block_n=None, use_bf16=True):
    """Pallas-backed EOPA forward. feat: (N, D) f32, nbr_idx: (N, L) int32."""
    N, D = feat.shape
    L = nbr_idx.shape[1]
    Dout = params['w_self'].shape[0]
    assert D % NHEAD == 0 and D % 2 == 0, "d_model must be even and divisible by nhead"

    f32 = jnp.float32
    mm_dtype = jnp.bfloat16 if use_bf16 else f32
    cast = lambda w: w.astype(mm_dtype)

    TN = _pick_block(N) if block_n is None else block_n
    assert TN % 8 == 0, "node block must be a multiple of 8 sublanes"
    N_pad = _round_up(N, TN)
    Dout_pad = _round_up(Dout, 128)              # lane-dense output stores
    grid = (N_pad // TN,)

    # ---- folded BatchNorm, applied once per node (before the gather) ----
    bn_scale = (params['bn_gamma'] * jax.lax.rsqrt(params['bn_var'] + EPS_BN)).astype(f32)
    bn_shift = (params['bn_beta'] - params['bn_mean'] * bn_scale).astype(f32)
    feat_bn = feat.astype(f32) * bn_scale + bn_shift              # (N, D)

    # ---- DGL copy_u mailbox + positional encoding (one fused XLA gather) ----
    # TODO(synk): mask (not just clamp) sentinel/padding neighbour ids if the
    # graph loader emits them; here they are clamped into range.
    nbr = jnp.clip(nbr_idx.astype(jnp.int32), 0, N - 1)
    feat_pad = feat_bn
    if N_pad != N:
        feat_pad = jnp.pad(feat_bn, ((0, N_pad - N), (0, 0)))
        nbr = jnp.pad(nbr, ((0, N_pad - N), (0, 0)))
    pe = positional_encoding(L, D)
    msg = feat_bn[nbr.reshape(-1)].reshape(N_pad, L, D) + pe[None]
    msg2 = cast(msg.reshape(N_pad * L, D))                        # K/V operand, lane-major
    x_last = (feat_bn[nbr[:, L - 1]] + pe[L - 1][None]).astype(f32)   # query rows
    feat_self = cast(feat_pad)                                    # fc_self operand

    hd = D // NHEAD
    head_pool = jnp.repeat(jnp.eye(NHEAD, dtype=f32), hd, axis=0)     # (D, NHEAD)

    def pad_cols(w):                     # (Dout, D) -> (D, Dout_pad), mm dtype
        wt = w.T
        if Dout_pad != Dout:
            wt = jnp.pad(wt, ((0, 0), (0, Dout_pad - Dout)))
        return cast(wt)

    w_in, b_in = params['w_in'], params['b_in']
    inputs = (
        msg2, x_last, feat_self,
        head_pool, head_pool.T,
        cast(w_in[:D].T), b_in[:, :D].astype(f32),
        cast(w_in[D:2 * D].T), b_in[:, D:2 * D].astype(f32),
        cast(w_in[2 * D:].T), b_in[:, 2 * D:].astype(f32),
        cast(params['w_out'].T), params['b_out'].astype(f32),
        params['ln1_g'].astype(f32), params['ln1_b'].astype(f32),
        cast(params['w1'].T), params['b1'].astype(f32),
        cast(params['w2'].T), params['b2'].astype(f32),
        params['ln2_g'].astype(f32), params['ln2_b'].astype(f32),
        pad_cols(params['w_self']), pad_cols(params['w_neigh']),
    )
    n_blocked = 3                                   # msg2, x_last, feat_self

    blocked_specs = [
        pl.BlockSpec((TN * L, D), lambda i: (i, 0)),
        pl.BlockSpec((TN, D), lambda i: (i, 0)),
        pl.BlockSpec((TN, D), lambda i: (i, 0)),
    ]
    out_specs = pl.BlockSpec((TN, Dout_pad), lambda i: (i, 0))
    out_shape = jax.ShapeDtypeStruct((N_pad, Dout_pad), f32)
    kernel = _make_kernel(TN, L, D, mm_dtype)
    compiler_params = pltpu.CompilerParams(
        dimension_semantics=("parallel",),
        vmem_limit_bytes=_vmem_limit_bytes())

    def _call(single_buffer_consts):
        if single_buffer_consts:
            const_spec = lambda x: pl.BlockSpec(x.shape, lambda i: (0, 0),
                                                pipeline_mode=pl.Buffered(1))
        else:
            const_spec = lambda x: pl.BlockSpec(x.shape, lambda i: (0, 0))
        in_specs = blocked_specs + [const_spec(x) for x in inputs[n_blocked:]]
        grid_spec = pltpu.PrefetchScalarGridSpec(
            num_scalar_prefetch=0, grid=grid,
            in_specs=in_specs, out_specs=out_specs)
        return pl.pallas_call(kernel, out_shape=out_shape, grid_spec=grid_spec,
                              compiler_params=compiler_params)(*inputs)

    try:
        out = _call(hasattr(pl, "Buffered"))
    except Exception:      # older JAX without pipeline_mode support: default buffering
        out = _call(False)
    return out[:N, :Dout]


def eopa_reference(feat, nbr_idx, params):
    """Pure-JAX f32 reference: full transformer over all L positions."""
    N, D = feat.shape
    L = nbr_idx.shape[1]
    hd = D // NHEAD
    bn_scale = params['bn_gamma'] * jax.lax.rsqrt(params['bn_var'] + EPS_BN)
    bn_shift = params['bn_beta'] - params['bn_mean'] * bn_scale
    feat_bn = feat * bn_scale + bn_shift
    msg = feat_bn[nbr_idx.reshape(-1)].reshape(N, L, D)
    x = (msg + positional_encoding(L, D)[None]).reshape(N * L, D)
    qkv = x @ params['w_in'].T + params['b_in']
    q = qkv[:, :D].reshape(N, L, NHEAD, hd)
    k = qkv[:, D:2 * D].reshape(N, L, NHEAD, hd)
    v = qkv[:, 2 * D:].reshape(N, L, NHEAD, hd)
    s = jnp.einsum('nqhd,nkhd->nhqk', q, k) / math.sqrt(hd)
    p = jax.nn.softmax(s, axis=-1)
    attn = jnp.einsum('nhqk,nkhd->nqhd', p, v).reshape(N * L, D)
    attn = attn @ params['w_out'].T + params['b_out']
    src = _layer_norm(x + attn, params['ln1_g'], params['ln1_b'])
    ff = jnp.maximum(src @ params['w1'].T + params['b1'], 0.0)
    ff = ff @ params['w2'].T + params['b2']
    src = _layer_norm(src + ff, params['ln2_g'], params['ln2_b'])
    neigh = src.reshape(N, L, D)[:, L - 1, :]
    return feat_bn @ params['w_self'].T + neigh @ params['w_neigh'].T


def init_params(key, D, Dout, FF=512):
    ks = jax.random.split(key, 24)
    s = 0.05
    return {
        'bn_gamma': 1.0 + s * jax.random.normal(ks[0], (1, D), jnp.float32),
        'bn_beta':  s * jax.random.normal(ks[1], (1, D), jnp.float32),
        'bn_mean':  s * jax.random.normal(ks[2], (1, D), jnp.float32),
        'bn_var':   1.0 + 0.1 * jax.random.uniform(ks[3], (1, D), jnp.float32),
        'w_in':     s * jax.random.normal(ks[4], (3 * D, D), jnp.float32),
        'b_in':     s * jax.random.normal(ks[5], (1, 3 * D), jnp.float32),
        'w_out':    s * jax.random.normal(ks[6], (D, D), jnp.float32),
        'b_out':    s * jax.random.normal(ks[7], (1, D), jnp.float32),
        'ln1_g':    1.0 + s * jax.random.normal(ks[8], (1, D), jnp.float32),
        'ln1_b':    s * jax.random.normal(ks[9], (1, D), jnp.float32),
        'ln2_g':    1.0 + s * jax.random.normal(ks[10], (1, D), jnp.float32),
        'ln2_b':    s * jax.random.normal(ks[11], (1, D), jnp.float32),
        'w1':       s * jax.random.normal(ks[12], (FF, D), jnp.float32),
        'b1':       s * jax.random.normal(ks[13], (1, FF), jnp.float32),
        'w2':       s * jax.random.normal(ks[14], (D, FF), jnp.float32),
        'b2':       s * jax.random.normal(ks[15], (1, D), jnp.float32),
        'w_self':   s * jax.random.normal(ks[16], (Dout, D), jnp.float32),
        'w_neigh':  s * jax.random.normal(ks[17], (Dout, D), jnp.float32),
    }


if __name__ == "__main__":
    # N nodes, fixed in-degree L (DGL buckets by degree); picker -> 2 node blocks of 8.
    N, D, Dout, L = 16, 32, 32, 8
    key = jax.random.PRNGKey(0)
    k_feat, k_nbr, k_par = jax.random.split(key, 3)
    feat = jax.random.normal(k_feat, (N, D), jnp.float32)
    nbr_idx = jax.random.randint(k_nbr, (N, L), 0, N, dtype=jnp.int32)
    params = init_params(k_par, D, Dout)

    ref = eopa_reference(feat, nbr_idx, params)

    # f32-matmul path: tight check of the kernel math (incl. last-pos trick).
    out_f32 = eopa_forward(feat, nbr_idx, params, use_bf16=False)
    jax.block_until_ready(out_f32)
    err_f32 = float(jnp.max(jnp.abs(out_f32 - ref)))
    assert err_f32 < 5e-3, f"f32 kernel mismatch vs reference: {err_f32}"

    # bf16 MXU-operand path (recommended on v6e/v7x), f32 accumulation.
    out = eopa_forward(feat, nbr_idx, params, use_bf16=True)
    jax.block_until_ready(out)
    err = float(jnp.max(jnp.abs(out - ref)))
    assert err < 3e-2, f"bf16 kernel mismatch vs reference: {err}"

    print("KERNEL_OK")
</pallas_src>

<mosaic_0001>
module attributes {stable_mosaic.version = 11 : i64} {
  func.func @kernel(%arg0: i32, %arg1: memref<64x32xf32, #tpu.memory_space<vmem>>, %arg2: memref<8x32xf32, #tpu.memory_space<vmem>>, %arg3: memref<8x32xf32, #tpu.memory_space<vmem>>, %arg4: memref<32x8xf32, #tpu.memory_space<vmem>>, %arg5: memref<8x32xf32, #tpu.memory_space<vmem>>, %arg6: memref<32x32xf32, #tpu.memory_space<vmem>>, %arg7: memref<1x32xf32, #tpu.memory_space<vmem>>, %arg8: memref<32x32xf32, #tpu.memory_space<vmem>>, %arg9: memref<1x32xf32, #tpu.memory_space<vmem>>, %arg10: memref<32x32xf32, #tpu.memory_space<vmem>>, %arg11: memref<1x32xf32, #tpu.memory_space<vmem>>, %arg12: memref<32x32xf32, #tpu.memory_space<vmem>>, %arg13: memref<1x32xf32, #tpu.memory_space<vmem>>, %arg14: memref<1x32xf32, #tpu.memory_space<vmem>>, %arg15: memref<1x32xf32, #tpu.memory_space<vmem>>, %arg16: memref<32x512xf32, #tpu.memory_space<vmem>>, %arg17: memref<1x512xf32, #tpu.memory_space<vmem>>, %arg18: memref<512x32xf32, #tpu.memory_space<vmem>>, %arg19: memref<1x32xf32, #tpu.memory_space<vmem>>, %arg20: memref<1x32xf32, #tpu.memory_space<vmem>>, %arg21: memref<1x32xf32, #tpu.memory_space<vmem>>, %arg22: memref<32x128xf32, #tpu.memory_space<vmem>>, %arg23: memref<32x128xf32, #tpu.memory_space<vmem>>, %arg24: memref<8x128xf32, #tpu.memory_space<vmem>>) attributes {dimension_semantics = [#tpu.dimension_semantics<parallel>], iteration_bounds = array<i64: 2>, scalar_prefetch = 0 : i64, scratch_operands = 0 : i64, tpu.core_type = #tpu.core_type<tc>, window_params = [{transform_indices = @transform_0, window_bounds = array<i64: 64, 32>}, {transform_indices = @transform_1, window_bounds = array<i64: 8, 32>}, {transform_indices = @transform_2, window_bounds = array<i64: 8, 32>}, {pipeline_mode = #tpu.pipeline_mode<synchronous>, transform_indices = @transform_3, window_bounds = array<i64: 32, 8>}, {pipeline_mode = #tpu.pipeline_mode<synchronous>, transform_indices = @transform_4, window_bounds = array<i64: 8, 32>}, {pipeline_mode = #tpu.pipeline_mode<synchronous>, transform_indices = @transform_5, window_bounds = array<i64: 32, 32>}, {pipeline_mode = #tpu.pipeline_mode<synchronous>, transform_indices = @transform_6, window_bounds = array<i64: 1, 32>}, {pipeline_mode = #tpu.pipeline_mode<synchronous>, transform_indices = @transform_7, window_bounds = array<i64: 32, 32>}, {pipeline_mode = #tpu.pipeline_mode<synchronous>, transform_indices = @transform_8, window_bounds = array<i64: 1, 32>}, {pipeline_mode = #tpu.pipeline_mode<synchronous>, transform_indices = @transform_9, window_bounds = array<i64: 32, 32>}, {pipeline_mode = #tpu.pipeline_mode<synchronous>, transform_indices = @transform_10, window_bounds = array<i64: 1, 32>}, {pipeline_mode = #tpu.pipeline_mode<synchronous>, transform_indices = @transform_11, window_bounds = array<i64: 32, 32>}, {pipeline_mode = #tpu.pipeline_mode<synchronous>, transform_indices = @transform_12, window_bounds = array<i64: 1, 32>}, {pipeline_mode = #tpu.pipeline_mode<synchronous>, transform_indices = @transform_13, window_bounds = array<i64: 1, 32>}, {pipeline_mode = #tpu.pipeline_mode<synchronous>, transform_indices = @transform_14, window_bounds = array<i64: 1, 32>}, {pipeline_mode = #tpu.pipeline_mode<synchronous>, transform_indices = @transform_15, window_bounds = array<i64: 32, 512>}, {pipeline_mode = #tpu.pipeline_mode<synchronous>, transform_indices = @transform_16, window_bounds = array<i64: 1, 512>}, {pipeline_mode = #tpu.pipeline_mode<synchronous>, transform_indices = @transform_17, window_bounds = array<i64: 512, 32>}, {pipeline_mode = #tpu.pipeline_mode<synchronous>, transform_indices = @transform_18, window_bounds = array<i64: 1, 32>}, {pipeline_mode = #tpu.pipeline_mode<synchronous>, transform_indices = @transform_19, window_bounds = array<i64: 1, 32>}, {pipeline_mode = #tpu.pipeline_mode<synchronous>, transform_indices = @transform_20, window_bounds = array<i64: 1, 32>}, {pipeline_mode = #tpu.pipeline_mode<synchronous>, transform_indices = @transform_21, window_bounds = array<i64: 32, 128>}, {pipeline_mode = #tpu.pipeline_mode<synchronous>, transform_indices = @transform_22, window_bounds = array<i64: 32, 128>}, {transform_indices = @transform_23, window_bounds = array<i64: 8, 128>}]} {
    %c0 = arith.constant 0 : index
    %c0_0 = arith.constant 0 : index
    %0 = vector.load %arg1[%c0, %c0_0] : memref<64x32xf32, #tpu.memory_space<vmem>>, vector<64x32xf32>
    %c0_1 = arith.constant 0 : index
    %c0_2 = arith.constant 0 : index
    %1 = vector.load %arg2[%c0_1, %c0_2] : memref<8x32xf32, #tpu.memory_space<vmem>>, vector<8x32xf32>
    %c0_3 = arith.constant 0 : index
    %c0_4 = arith.constant 0 : index
    %2 = vector.load %arg6[%c0_3, %c0_4] : memref<32x32xf32, #tpu.memory_space<vmem>>, vector<32x32xf32>
    %cst = arith.constant dense<0.000000e+00> : vector<8x32xf32>
    %3 = tpu.matmul %1, %2, %cst {dimension_numbers = #tpu.dot_dimension_numbers<[1], [0], [0], [1], [0, 0, 1, 1], [], []>} : vector<8x32xf32>, vector<32x32xf32>, vector<8x32xf32> -> vector<8x32xf32>
    %c0_5 = arith.constant 0 : index
    %c0_6 = arith.constant 0 : index
    %4 = vector.load %arg7[%c0_5, %c0_6] : memref<1x32xf32, #tpu.memory_space<vmem>>, vector<1x32xf32>
    %5 = vector.broadcast %4 : vector<1x32xf32> to vector<8x32xf32>
    %6 = arith.addf %3, %5 : vector<8x32xf32>
    %c0_7 = arith.constant 0 : index
    %c0_8 = arith.constant 0 : index
    %7 = vector.load %arg8[%c0_7, %c0_8] : memref<32x32xf32, #tpu.memory_space<vmem>>, vector<32x32xf32>
    %cst_9 = arith.constant dense<0.000000e+00> : vector<64x32xf32>
    %8 = tpu.matmul %0, %7, %cst_9 {dimension_numbers = #tpu.dot_dimension_numbers<[1], [0], [0], [1], [0, 0, 1, 1], [], []>} : vector<64x32xf32>, vector<32x32xf32>, vector<64x32xf32> -> vector<64x32xf32>
    %c0_10 = arith.constant 0 : index
    %c0_11 = arith.constant 0 : index
    %9 = vector.load %arg9[%c0_10, %c0_11] : memref<1x32xf32, #tpu.memory_space<vmem>>, vector<1x32xf32>
    %10 = vector.broadcast %9 : vector<1x32xf32> to vector<64x32xf32>
    %11 = arith.addf %8, %10 : vector<64x32xf32>
    %12 = vector.shape_cast %11 : vector<64x32xf32> to vector<8x8x32xf32>
    %c0_12 = arith.constant 0 : index
    %c0_13 = arith.constant 0 : index
    %13 = vector.load %arg10[%c0_12, %c0_13] : memref<32x32xf32, #tpu.memory_space<vmem>>, vector<32x32xf32>
    %cst_14 = arith.constant dense<0.000000e+00> : vector<64x32xf32>
    %14 = tpu.matmul %0, %13, %cst_14 {dimension_numbers = #tpu.dot_dimension_numbers<[1], [0], [0], [1], [0, 0, 1, 1], [], []>} : vector<64x32xf32>, vector<32x32xf32>, vector<64x32xf32> -> vector<64x32xf32>
    %c0_15 = arith.constant 0 : index
    %c0_16 = arith.constant 0 : index
    %15 = vector.load %arg11[%c0_15, %c0_16] : memref<1x32xf32, #tpu.memory_space<vmem>>, vector<1x32xf32>
    %16 = vector.broadcast %15 : vector<1x32xf32> to vector<64x32xf32>
    %17 = arith.addf %14, %16 : vector<64x32xf32>
    %18 = vector.shape_cast %17 : vector<64x32xf32> to vector<8x8x32xf32>
    %19 = vector.shape_cast %6 : vector<8x32xf32> to vector<8x1x32xf32>
    %20 = vector.broadcast %19 : vector<8x1x32xf32> to vector<8x8x32xf32>
    %21 = arith.mulf %20, %12 : vector<8x8x32xf32>
    %22 = vector.shape_cast %21 : vector<8x8x32xf32> to vector<64x32xf32>
    %c0_17 = arith.constant 0 : index
    %c0_18 = arith.constant 0 : index
    %23 = vector.load %arg4[%c0_17, %c0_18] : memref<32x8xf32, #tpu.memory_space<vmem>>, vector<32x8xf32>
    %cst_19 = arith.constant dense<0.000000e+00> : vector<64x8xf32>
    %24 = tpu.matmul %22, %23, %cst_19 {dimension_numbers = #tpu.dot_dimension_numbers<[1], [0], [0], [1], [0, 0, 1, 1], [], []>} : vector<64x32xf32>, vector<32x8xf32>, vector<64x8xf32> -> vector<64x8xf32>
    %cst_20 = arith.constant 5.000000e-01 : f32
    %25 = vector.broadcast %cst_20 : f32 to vector<64x8xf32>
    %26 = arith.mulf %24, %25 : vector<64x8xf32>
    %27 = vector.shape_cast %26 : vector<64x8xf32> to vector<8x8x8xf32>
    %cst_21 = arith.constant dense<0xFF800000> : vector<8x8xf32>
    %28 = vector.multi_reduction <maximumf>, %27, %cst_21 [1] : vector<8x8x8xf32> to vector<8x8xf32>
    %29 = vector.shape_cast %28 : vector<8x8xf32> to vector<8x1x8xf32>
    %30 = vector.broadcast %29 : vector<8x1x8xf32> to vector<8x8x8xf32>
    %31 = arith.subf %27, %30 : vector<8x8x8xf32>
    %32 = math.exp %31 : vector<8x8x8xf32>
    %cst_22 = arith.constant dense<0.000000e+00> : vector<8x8xf32>
    %33 = vector.multi_reduction <add>, %32, %cst_22 [1] : vector<8x8x8xf32> to vector<8x8xf32>
    %34 = vector.shape_cast %33 : vector<8x8xf32> to vector<8x1x8xf32>
    %35 = tpu.reciprocal %34 {approx = true} : vector<8x1x8xf32> -> vector<8x1x8xf32>
    %36 = vector.broadcast %35 : vector<8x1x8xf32> to vector<8x8x8xf32>
    %37 = arith.mulf %32, %36 : vector<8x8x8xf32>
    %38 = vector.shape_cast %37 : vector<8x8x8xf32> to vector<64x8xf32>
    %c0_23 = arith.constant 0 : index
    %c0_24 = arith.constant 0 : index
    %39 = vector.load %arg5[%c0_23, %c0_24] : memref<8x32xf32, #tpu.memory_space<vmem>>, vector<8x32xf32>
    %cst_25 = arith.constant dense<0.000000e+00> : vector<64x32xf32>
    %40 = tpu.matmul %38, %39, %cst_25 {dimension_numbers = #tpu.dot_dimension_numbers<[1], [0], [0], [1], [0, 0, 1, 1], [], []>} : vector<64x8xf32>, vector<8x32xf32>, vector<64x32xf32> -> vector<64x32xf32>
    %41 = vector.shape_cast %40 : vector<64x32xf32> to vector<8x8x32xf32>
    %42 = arith.mulf %41, %18 : vector<8x8x32xf32>
    %cst_26 = arith.constant dense<0.000000e+00> : vector<8x32xf32>
    %43 = vector.multi_reduction <add>, %42, %cst_26 [1] : vector<8x8x32xf32> to vector<8x32xf32>
    %c0_27 = arith.constant 0 : index
    %c0_28 = arith.constant 0 : index
    %44 = vector.load %arg12[%c0_27, %c0_28] : memref<32x32xf32, #tpu.memory_space<vmem>>, vector<32x32xf32>
    %cst_29 = arith.constant dense<0.000000e+00> : vector<8x32xf32>
    %45 = tpu.matmul %43, %44, %cst_29 {dimension_numbers = #tpu.dot_dimension_numbers<[1], [0], [0], [1], [0, 0, 1, 1], [], []>} : vector<8x32xf32>, vector<32x32xf32>, vector<8x32xf32> -> vector<8x32xf32>
    %c0_30 = arith.constant 0 : index
    %c0_31 = arith.constant 0 : index
    %46 = vector.load %arg13[%c0_30, %c0_31] : memref<1x32xf32, #tpu.memory_space<vmem>>, vector<1x32xf32>
    %47 = vector.broadcast %46 : vector<1x32xf32> to vector<8x32xf32>
    %48 = arith.addf %45, %47 : vector<8x32xf32>
    %49 = arith.addf %1, %48 : vector<8x32xf32>
    %c0_32 = arith.constant 0 : index
    %c0_33 = arith.constant 0 : index
    %50 = vector.load %arg14[%c0_32, %c0_33] : memref<1x32xf32, #tpu.memory_space<vmem>>, vector<1x32xf32>
    %c0_34 = arith.constant 0 : index
    %c0_35 = arith.constant 0 : index
    %51 = vector.load %arg15[%c0_34, %c0_35] : memref<1x32xf32, #tpu.memory_space<vmem>>, vector<1x32xf32>
    %cst_36 = arith.constant dense<0.000000e+00> : vector<8xf32>
    %52 = vector.multi_reduction <add>, %49, %cst_36 [1] : vector<8x32xf32> to vector<8xf32>
    %53 = vector.shape_cast %52 : vector<8xf32> to vector<8x1xf32>
    %cst_37 = arith.constant 3.200000e+01 : f32
    %54 = vector.broadcast %cst_37 : f32 to vector<8x1xf32>
    %55 = arith.divf %53, %54 : vector<8x1xf32>
    %56 = vector.broadcast %55 : vector<8x1xf32> to vector<8x32xf32>
    %57 = arith.subf %49, %56 : vector<8x32xf32>
    %58 = arith.mulf %57, %57 : vector<8x32xf32>
    %cst_38 = arith.constant dense<0.000000e+00> : vector<8xf32>
    %59 = vector.multi_reduction <add>, %58, %cst_38 [1] : vector<8x32xf32> to vector<8xf32>
    %60 = vector.shape_cast %59 : vector<8xf32> to vector<8x1xf32>
    %cst_39 = arith.constant 3.200000e+01 : f32
    %61 = vector.broadcast %cst_39 : f32 to vector<8x1xf32>
    %62 = arith.divf %60, %61 : vector<8x1xf32>
    %63 = vector.broadcast %55 : vector<8x1xf32> to vector<8x32xf32>
    %64 = arith.subf %49, %63 : vector<8x32xf32>
    %cst_40 = arith.constant 9.99999974E-6 : f32
    %65 = vector.broadcast %cst_40 : f32 to vector<8x1xf32>
    %66 = arith.addf %62, %65 : vector<8x1xf32>
    %67 = math.rsqrt %66 : vector<8x1xf32>
    %68 = vector.broadcast %67 : vector<8x1xf32> to vector<8x32xf32>
    %69 = arith.mulf %64, %68 : vector<8x32xf32>
    %70 = vector.broadcast %50 : vector<1x32xf32> to vector<8x32xf32>
    %71 = arith.mulf %69, %70 : vector<8x32xf32>
    %72 = vector.broadcast %51 : vector<1x32xf32> to vector<8x32xf32>
    %73 = arith.addf %71, %72 : vector<8x32xf32>
    %c0_41 = arith.constant 0 : index
    %c0_42 = arith.constant 0 : index
    %74 = vector.load %arg16[%c0_41, %c0_42] : memref<32x512xf32, #tpu.memory_space<vmem>>, vector<32x512xf32>
    %cst_43 = arith.constant dense<0.000000e+00> : vector<8x512xf32>
    %75 = tpu.matmul %73, %74, %cst_43 {dimension_numbers = #tpu.dot_dimension_numbers<[1], [0], [0], [1], [0, 0, 1, 1], [], []>} : vector<8x32xf32>, vector<32x512xf32>, vector<8x512xf32> -> vector<8x512xf32>
    %c0_44 = arith.constant 0 : index
    %c0_45 = arith.constant 0 : index
    %76 = vector.load %arg17[%c0_44, %c0_45] : memref<1x512xf32, #tpu.memory_space<vmem>>, vector<1x512xf32>
    %77 = vector.broadcast %76 : vector<1x512xf32> to vector<8x512xf32>
    %78 = arith.addf %75, %77 : vector<8x512xf32>
    %cst_46 = arith.constant 0.000000e+00 : f32
    %79 = vector.broadcast %cst_46 : f32 to vector<8x512xf32>
    %80 = arith.maximumf %78, %79 : vector<8x512xf32>
    %c0_47 = arith.constant 0 : index
    %c0_48 = arith.constant 0 : index
    %81 = vector.load %arg18[%c0_47, %c0_48] : memref<512x32xf32, #tpu.memory_space<vmem>>, vector<512x32xf32>
    %cst_49 = arith.constant dense<0.000000e+00> : vector<8x32xf32>
    %82 = tpu.matmul %80, %81, %cst_49 {dimension_numbers = #tpu.dot_dimension_numbers<[1], [0], [0], [1], [0, 0, 1, 1], [], []>} : vector<8x512xf32>, vector<512x32xf32>, vector<8x32xf32> -> vector<8x32xf32>
    %c0_50 = arith.constant 0 : index
    %c0_51 = arith.constant 0 : index
    %83 = vector.load %arg19[%c0_50, %c0_51] : memref<1x32xf32, #tpu.memory_space<vmem>>, vector<1x32xf32>
    %84 = vector.broadcast %83 : vector<1x32xf32> to vector<8x32xf32>
    %85 = arith.addf %82, %84 : vector<8x32xf32>
    %86 = arith.addf %73, %85 : vector<8x32xf32>
    %c0_52 = arith.constant 0 : index
    %c0_53 = arith.constant 0 : index
    %87 = vector.load %arg20[%c0_52, %c0_53] : memref<1x32xf32, #tpu.memory_space<vmem>>, vector<1x32xf32>
    %c0_54 = arith.constant 0 : index
    %c0_55 = arith.constant 0 : index
    %88 = vector.load %arg21[%c0_54, %c0_55] : memref<1x32xf32, #tpu.memory_space<vmem>>, vector<1x32xf32>
    %cst_56 = arith.constant dense<0.000000e+00> : vector<8xf32>
    %89 = vector.multi_reduction <add>, %86, %cst_56 [1] : vector<8x32xf32> to vector<8xf32>
    %90 = vector.shape_cast %89 : vector<8xf32> to vector<8x1xf32>
    %cst_57 = arith.constant 3.200000e+01 : f32
    %91 = vector.broadcast %cst_57 : f32 to vector<8x1xf32>
    %92 = arith.divf %90, %91 : vector<8x1xf32>
    %93 = vector.broadcast %92 : vector<8x1xf32> to vector<8x32xf32>
    %94 = arith.subf %86, %93 : vector<8x32xf32>
    %95 = arith.mulf %94, %94 : vector<8x32xf32>
    %cst_58 = arith.constant dense<0.000000e+00> : vector<8xf32>
    %96 = vector.multi_reduction <add>, %95, %cst_58 [1] : vector<8x32xf32> to vector<8xf32>
    %97 = vector.shape_cast %96 : vector<8xf32> to vector<8x1xf32>
    %cst_59 = arith.constant 3.200000e+01 : f32
    %98 = vector.broadcast %cst_59 : f32 to vector<8x1xf32>
    %99 = arith.divf %97, %98 : vector<8x1xf32>
    %100 = vector.broadcast %92 : vector<8x1xf32> to vector<8x32xf32>
    %101 = arith.subf %86, %100 : vector<8x32xf32>
    %cst_60 = arith.constant 9.99999974E-6 : f32
    %102 = vector.broadcast %cst_60 : f32 to vector<8x1xf32>
    %103 = arith.addf %99, %102 : vector<8x1xf32>
    %104 = math.rsqrt %103 : vector<8x1xf32>
    %105 = vector.broadcast %104 : vector<8x1xf32> to vector<8x32xf32>
    %106 = arith.mulf %101, %105 : vector<8x32xf32>
    %107 = vector.broadcast %87 : vector<1x32xf32> to vector<8x32xf32>
    %108 = arith.mulf %106, %107 : vector<8x32xf32>
    %109 = vector.broadcast %88 : vector<1x32xf32> to vector<8x32xf32>
    %110 = arith.addf %108, %109 : vector<8x32xf32>
    %c0_61 = arith.constant 0 : index
    %c0_62 = arith.constant 0 : index
    %111 = vector.load %arg3[%c0_61, %c0_62] : memref<8x32xf32, #tpu.memory_space<vmem>>, vector<8x32xf32>
    %c0_63 = arith.constant 0 : index
    %c0_64 = arith.constant 0 : index
    %112 = vector.load %arg22[%c0_63, %c0_64] : memref<32x128xf32, #tpu.memory_space<vmem>>, vector<32x128xf32>
    %cst_65 = arith.constant dense<0.000000e+00> : vector<8x128xf32>
    %113 = tpu.matmul %111, %112, %cst_65 {dimension_numbers = #tpu.dot_dimension_numbers<[1], [0], [0], [1], [0, 0, 1, 1], [], []>} : vector<8x32xf32>, vector<32x128xf32>, vector<8x128xf32> -> vector<8x128xf32>
    %c0_66 = arith.constant 0 : index
    %c0_67 = arith.constant 0 : index
    %114 = vector.load %arg23[%c0_66, %c0_67] : memref<32x128xf32, #tpu.memory_space<vmem>>, vector<32x128xf32>
    %cst_68 = arith.constant dense<0.000000e+00> : vector<8x128xf32>
    %115 = tpu.matmul %110, %114, %cst_68 {dimension_numbers = #tpu.dot_dimension_numbers<[1], [0], [0], [1], [0, 0, 1, 1], [], []>} : vector<8x32xf32>, vector<32x128xf32>, vector<8x128xf32> -> vector<8x128xf32>
    %116 = arith.addf %113, %115 : vector<8x128xf32>
    %c0_69 = arith.constant 0 : index
    %c0_70 = arith.constant 0 : index
    %117 = vector.load %arg24[%c0_69, %c0_70] : memref<8x128xf32, #tpu.memory_space<vmem>>, vector<8x128xf32>
    tpu.vector_store %arg24[%c0_69, %c0_70], %116 {strides = array<i32>} : memref<8x128xf32, #tpu.memory_space<vmem>>, vector<8x128xf32>,
    return
  }
  func.func @transform_0(%arg0: i32) -> (i32, i32) {
    %c0_i32 = arith.constant 0 : i32
    %c0_i32_0 = arith.constant 0 : i32
    return %arg0, %c0_i32 : i32, i32
  }
  func.func @transform_1(%arg0: i32) -> (i32, i32) {
    %c0_i32 = arith.constant 0 : i32
    %c0_i32_0 = arith.constant 0 : i32
    return %arg0, %c0_i32 : i32, i32
  }
  func.func @transform_2(%arg0: i32) -> (i32, i32) {
    %c0_i32 = arith.constant 0 : i32
    %c0_i32_0 = arith.constant 0 : i32
    return %arg0, %c0_i32 : i32, i32
  }
  func.func @transform_3(%arg0: i32) -> (i32, i32) {
    %c0_i32 = arith.constant 0 : i32
    %c0_i32_0 = arith.constant 0 : i32
    %c0_i32_1 = arith.constant 0 : i32
    return %c0_i32, %c0_i32_0 : i32, i32
  }
  func.func @transform_4(%arg0: i32) -> (i32, i32) {
    %c0_i32 = arith.constant 0 : i32
    %c0_i32_0 = arith.constant 0 : i32
    %c0_i32_1 = arith.constant 0 : i32
    return %c0_i32, %c0_i32_0 : i32, i32
  }
  func.func @transform_5(%arg0: i32) -> (i32, i32) {
    %c0_i32 = arith.constant 0 : i32
    %c0_i32_0 = arith.constant 0 : i32
    %c0_i32_1 = arith.constant 0 : i32
    return %c0_i32, %c0_i32_0 : i32, i32
  }
  func.func @transform_6(%arg0: i32) -> (i32, i32) {
    %c0_i32 = arith.constant 0 : i32
    %c0_i32_0 = arith.constant 0 : i32
    %c0_i32_1 = arith.constant 0 : i32
    return %c0_i32, %c0_i32_0 : i32, i32
  }
  func.func @transform_7(%arg0: i32) -> (i32, i32) {
    %c0_i32 = arith.constant 0 : i32
    %c0_i32_0 = arith.constant 0 : i32
    %c0_i32_1 = arith.constant 0 : i32
    return %c0_i32, %c0_i32_0 : i32, i32
  }
  func.func @transform_8(%arg0: i32) -> (i32, i32) {
    %c0_i32 = arith.constant 0 : i32
    %c0_i32_0 = arith.constant 0 : i32
    %c0_i32_1 = arith.constant 0 : i32
    return %c0_i32, %c0_i32_0 : i32, i32
  }
  func.func @transform_9(%arg0: i32) -> (i32, i32) {
    %c0_i32 = arith.constant 0 : i32
    %c0_i32_0 = arith.constant 0 : i32
    %c0_i32_1 = arith.constant 0 : i32
    return %c0_i32, %c0_i32_0 : i32, i32
  }
  func.func @transform_10(%arg0: i32) -> (i32, i32) {
    %c0_i32 = arith.constant 0 : i32
    %c0_i32_0 = arith.constant 0 : i32
    %c0_i32_1 = arith.constant 0 : i32
    return %c0_i32, %c0_i32_0 : i32, i32
  }
  func.func @transform_11(%arg0: i32) -> (i32, i32) {
    %c0_i32 = arith.constant 0 : i32
    %c0_i32_0 = arith.constant 0 : i32
    %c0_i32_1 = arith.constant 0 : i32
    return %c0_i32, %c0_i32_0 : i32, i32
  }
  func.func @transform_12(%arg0: i32) -> (i32, i32) {
    %c0_i32 = arith.constant 0 : i32
    %c0_i32_0 = arith.constant 0 : i32
    %c0_i32_1 = arith.constant 0 : i32
    return %c0_i32, %c0_i32_0 : i32, i32
  }
  func.func @transform_13(%arg0: i32) -> (i32, i32) {
    %c0_i32 = arith.constant 0 : i32
    %c0_i32_0 = arith.constant 0 : i32
    %c0_i32_1 = arith.constant 0 : i32
    return %c0_i32, %c0_i32_0 : i32, i32
  }
  func.func @transform_14(%arg0: i32) -> (i32, i32) {
    %c0_i32 = arith.constant 0 : i32
    %c0_i32_0 = arith.constant 0 : i32
    %c0_i32_1 = arith.constant 0 : i32
    return %c0_i32, %c0_i32_0 : i32, i32
  }
  func.func @transform_15(%arg0: i32) -> (i32, i32) {
    %c0_i32 = arith.constant 0 : i32
    %c0_i32_0 = arith.constant 0 : i32
    %c0_i32_1 = arith.constant 0 : i32
    return %c0_i32, %c0_i32_0 : i32, i32
  }
  func.func @transform_16(%arg0: i32) -> (i32, i32) {
    %c0_i32 = arith.constant 0 : i32
    %c0_i32_0 = arith.constant 0 : i32
    %c0_i32_1 = arith.constant 0 : i32
    return %c0_i32, %c0_i32_0 : i32, i32
  }
  func.func @transform_17(%arg0: i32) -> (i32, i32) {
    %c0_i32 = arith.constant 0 : i32
    %c0_i32_0 = arith.constant 0 : i32
    %c0_i32_1 = arith.constant 0 : i32
    return %c0_i32, %c0_i32_0 : i32, i32
  }
  func.func @transform_18(%arg0: i32) -> (i32, i32) {
    %c0_i32 = arith.constant 0 : i32
    %c0_i32_0 = arith.constant 0 : i32
    %c0_i32_1 = arith.constant 0 : i32
    return %c0_i32, %c0_i32_0 : i32, i32
  }
  func.func @transform_19(%arg0: i32) -> (i32, i32) {
    %c0_i32 = arith.constant 0 : i32
    %c0_i32_0 = arith.constant 0 : i32
    %c0_i32_1 = arith.constant 0 : i32
    return %c0_i32, %c0_i32_0 : i32, i32
  }
  func.func @transform_20(%arg0: i32) -> (i32, i32) {
    %c0_i32 = arith.constant 0 : i32
    %c0_i32_0 = arith.constant 0 : i32
    %c0_i32_1 = arith.constant 0 : i32
    return %c0_i32, %c0_i32_0 : i32, i32
  }
  func.func @transform_21(%arg0: i32) -> (i32, i32) {
    %c0_i32 = arith.constant 0 : i32
    %c0_i32_0 = arith.constant 0 : i32
    %c0_i32_1 = arith.constant 0 : i32
    return %c0_i32, %c0_i32_0 : i32, i32
  }
  func.func @transform_22(%arg0: i32) -> (i32, i32) {
    %c0_i32 = arith.constant 0 : i32
    %c0_i32_0 = arith.constant 0 : i32
    %c0_i32_1 = arith.constant 0 : i32
    return %c0_i32, %c0_i32_0 : i32, i32
  }
  func.func @transform_23(%arg0: i32) -> (i32, i32) {
    %c0_i32 = arith.constant 0 : i32
    %c0_i32_0 = arith.constant 0 : i32
    return %arg0, %c0_i32 : i32, i32
  }
}

module attributes {stable_mosaic.version = 11 : i64} {
  func.func @kernel(%arg0: i32, %arg1: memref<64x32xf32, #tpu.memory_space<vmem>>, %arg2: memref<8x32xf32, #tpu.memory_space<vmem>>, %arg3: memref<8x32xf32, #tpu.memory_space<vmem>>, %arg4: memref<32x8xf32, #tpu.memory_space<vmem>>, %arg5: memref<8x32xf32, #tpu.memory_space<vmem>>, %arg6: memref<32x32xf32, #tpu.memory_space<vmem>>, %arg7: memref<1x32xf32, #tpu.memory_space<vmem>>, %arg8: memref<32x32xf32, #tpu.memory_space<vmem>>, %arg9: memref<1x32xf32, #tpu.memory_space<vmem>>, %arg10: memref<32x32xf32, #tpu.memory_space<vmem>>, %arg11: memref<1x32xf32, #tpu.memory_space<vmem>>, %arg12: memref<32x32xf32, #tpu.memory_space<vmem>>, %arg13: memref<1x32xf32, #tpu.memory_space<vmem>>, %arg14: memref<1x32xf32, #tpu.memory_space<vmem>>, %arg15: memref<1x32xf32, #tpu.memory_space<vmem>>, %arg16: memref<32x512xf32, #tpu.memory_space<vmem>>, %arg17: memref<1x512xf32, #tpu.memory_space<vmem>>, %arg18: memref<512x32xf32, #tpu.memory_space<vmem>>, %arg19: memref<1x32xf32, #tpu.memory_space<vmem>>, %arg20: memref<1x32xf32, #tpu.memory_space<vmem>>, %arg21: memref<1x32xf32, #tpu.memory_space<vmem>>, %arg22: memref<32x128xf32, #tpu.memory_space<vmem>>, %arg23: memref<32x128xf32, #tpu.memory_space<vmem>>, %arg24: memref<8x128xf32, #tpu.memory_space<vmem>>) attributes {dimension_semantics = [#tpu.dimension_semantics<parallel>], iteration_bounds = array<i64: 2>, scalar_prefetch = 0 : i64, scratch_operands = 0 : i64, tpu.core_type = #tpu.core_type<tc>, window_params = [{transform_indices = @transform_0, window_bounds = array<i64: 64, 32>}, {transform_indices = @transform_1, window_bounds = array<i64: 8, 32>}, {transform_indices = @transform_2, window_bounds = array<i64: 8, 32>}, {pipeline_mode = #tpu.pipeline_mode<synchronous>, transform_indices = @transform_3, window_bounds = array<i64: 32, 8>}, {pipeline_mode = #tpu.pipeline_mode<synchronous>, transform_indices = @transform_4, window_bounds = array<i64: 8, 32>}, {pipeline_mode = #tpu.pipeline_mode<synchronous>, transform_indices = @transform_5, window_bounds = array<i64: 32, 32>}, {pipeline_mode = #tpu.pipeline_mode<synchronous>, transform_indices = @transform_6, window_bounds = array<i64: 1, 32>}, {pipeline_mode = #tpu.pipeline_mode<synchronous>, transform_indices = @transform_7, window_bounds = array<i64: 32, 32>}, {pipeline_mode = #tpu.pipeline_mode<synchronous>, transform_indices = @transform_8, window_bounds = array<i64: 1, 32>}, {pipeline_mode = #tpu.pipeline_mode<synchronous>, transform_indices = @transform_9, window_bounds = array<i64: 32, 32>}, {pipeline_mode = #tpu.pipeline_mode<synchronous>, transform_indices = @transform_10, window_bounds = array<i64: 1, 32>}, {pipeline_mode = #tpu.pipeline_mode<synchronous>, transform_indices = @transform_11, window_bounds = array<i64: 32, 32>}, {pipeline_mode = #tpu.pipeline_mode<synchronous>, transform_indices = @transform_12, window_bounds = array<i64: 1, 32>}, {pipeline_mode = #tpu.pipeline_mode<synchronous>, transform_indices = @transform_13, window_bounds = array<i64: 1, 32>}, {pipeline_mode = #tpu.pipeline_mode<synchronous>, transform_indices = @transform_14, window_bounds = array<i64: 1, 32>}, {pipeline_mode = #tpu.pipeline_mode<synchronous>, transform_indices = @transform_15, window_bounds = array<i64: 32, 512>}, {pipeline_mode = #tpu.pipeline_mode<synchronous>, transform_indices = @transform_16, window_bounds = array<i64: 1, 512>}, {pipeline_mode = #tpu.pipeline_mode<synchronous>, transform_indices = @transform_17, window_bounds = array<i64: 512, 32>}, {pipeline_mode = #tpu.pipeline_mode<synchronous>, transform_indices = @transform_18, window_bounds = array<i64: 1, 32>}, {pipeline_mode = #tpu.pipeline_mode<synchronous>, transform_indices = @transform_19, window_bounds = array<i64: 1, 32>}, {pipeline_mode = #tpu.pipeline_mode<synchronous>, transform_indices = @transform_20, window_bounds = array<i64: 1, 32>}, {pipeline_mode = #tpu.pipeline_mode<synchronous>, transform_indices = @transform_21, window_bounds = array<i64: 32, 128>}, {pipeline_mode = #tpu.pipeline_mode<synchronous>, transform_indices = @transform_22, window_bounds = array<i64: 32, 128>}, {transform_indices = @transform_23, window_bounds = array<i64: 8, 128>}]} {
    %c0 = arith.constant 0 : index
    %c0_0 = arith.constant 0 : index
    %0 = vector.load %arg1[%c0, %c0_0] : memref<64x32xf32, #tpu.memory_space<vmem>>, vector<64x32xf32>
    %c0_1 = arith.constant 0 : index
    %c0_2 = arith.constant 0 : index
    %1 = vector.load %arg2[%c0_1, %c0_2] : memref<8x32xf32, #tpu.memory_space<vmem>>, vector<8x32xf32>
    %c0_3 = arith.constant 0 : index
    %c0_4 = arith.constant 0 : index
    %2 = vector.load %arg6[%c0_3, %c0_4] : memref<32x32xf32, #tpu.memory_space<vmem>>, vector<32x32xf32>
    %cst = arith.constant dense<0.000000e+00> : vector<8x32xf32>
    %3 = tpu.matmul %1, %2, %cst {dimension_numbers = #tpu.dot_dimension_numbers<[1], [0], [0], [1], [0, 0, 1, 1], [], []>} : vector<8x32xf32>, vector<32x32xf32>, vector<8x32xf32> -> vector<8x32xf32>
    %c0_5 = arith.constant 0 : index
    %c0_6 = arith.constant 0 : index
    %4 = vector.load %arg7[%c0_5, %c0_6] : memref<1x32xf32, #tpu.memory_space<vmem>>, vector<1x32xf32>
    %5 = vector.broadcast %4 : vector<1x32xf32> to vector<8x32xf32>
    %6 = arith.addf %3, %5 : vector<8x32xf32>
    %c0_7 = arith.constant 0 : index
    %c0_8 = arith.constant 0 : index
    %7 = vector.load %arg8[%c0_7, %c0_8] : memref<32x32xf32, #tpu.memory_space<vmem>>, vector<32x32xf32>
    %cst_9 = arith.constant dense<0.000000e+00> : vector<64x32xf32>
    %8 = tpu.matmul %0, %7, %cst_9 {dimension_numbers = #tpu.dot_dimension_numbers<[1], [0], [0], [1], [0, 0, 1, 1], [], []>} : vector<64x32xf32>, vector<32x32xf32>, vector<64x32xf32> -> vector<64x32xf32>
    %c0_10 = arith.constant 0 : index
    %c0_11 = arith.constant 0 : index
    %9 = vector.load %arg9[%c0_10, %c0_11] : memref<1x32xf32, #tpu.memory_space<vmem>>, vector<1x32xf32>
    %10 = vector.broadcast %9 : vector<1x32xf32> to vector<64x32xf32>
    %11 = arith.addf %8, %10 : vector<64x32xf32>
    %12 = vector.shape_cast %11 : vector<64x32xf32> to vector<8x8x32xf32>
    %c0_12 = arith.constant 0 : index
    %c0_13 = arith.constant 0 : index
    %13 = vector.load %arg10[%c0_12, %c0_13] : memref<32x32xf32, #tpu.memory_space<vmem>>, vector<32x32xf32>
    %cst_14 = arith.constant dense<0.000000e+00> : vector<64x32xf32>
    %14 = tpu.matmul %0, %13, %cst_14 {dimension_numbers = #tpu.dot_dimension_numbers<[1], [0], [0], [1], [0, 0, 1, 1], [], []>} : vector<64x32xf32>, vector<32x32xf32>, vector<64x32xf32> -> vector<64x32xf32>
    %c0_15 = arith.constant 0 : index
    %c0_16 = arith.constant 0 : index
    %15 = vector.load %arg11[%c0_15, %c0_16] : memref<1x32xf32, #tpu.memory_space<vmem>>, vector<1x32xf32>
    %16 = vector.broadcast %15 : vector<1x32xf32> to vector<64x32xf32>
    %17 = arith.addf %14, %16 : vector<64x32xf32>
    %18 = vector.shape_cast %17 : vector<64x32xf32> to vector<8x8x32xf32>
    %19 = vector.shape_cast %6 : vector<8x32xf32> to vector<8x1x32xf32>
    %20 = vector.broadcast %19 : vector<8x1x32xf32> to vector<8x8x32xf32>
    %21 = arith.mulf %20, %12 : vector<8x8x32xf32>
    %22 = vector.shape_cast %21 : vector<8x8x32xf32> to vector<64x32xf32>
    %c0_17 = arith.constant 0 : index
    %c0_18 = arith.constant 0 : index
    %23 = vector.load %arg4[%c0_17, %c0_18] : memref<32x8xf32, #tpu.memory_space<vmem>>, vector<32x8xf32>
    %cst_19 = arith.constant dense<0.000000e+00> : vector<64x8xf32>
    %24 = tpu.matmul %22, %23, %cst_19 {dimension_numbers = #tpu.dot_dimension_numbers<[1], [0], [0], [1], [0, 0, 1, 1], [], []>} : vector<64x32xf32>, vector<32x8xf32>, vector<64x8xf32> -> vector<64x8xf32>
    %cst_20 = arith.constant 5.000000e-01 : f32
    %25 = vector.broadcast %cst_20 : f32 to vector<64x8xf32>
    %26 = arith.mulf %24, %25 : vector<64x8xf32>
    %27 = vector.shape_cast %26 : vector<64x8xf32> to vector<8x8x8xf32>
    %cst_21 = arith.constant dense<0xFF800000> : vector<8x8xf32>
    %28 = vector.multi_reduction <maximumf>, %27, %cst_21 [1] : vector<8x8x8xf32> to vector<8x8xf32>
    %29 = vector.shape_cast %28 : vector<8x8xf32> to vector<8x1x8xf32>
    %30 = vector.broadcast %29 : vector<8x1x8xf32> to vector<8x8x8xf32>
    %31 = arith.subf %27, %30 : vector<8x8x8xf32>
    %32 = math.exp %31 : vector<8x8x8xf32>
    %cst_22 = arith.constant dense<0.000000e+00> : vector<8x8xf32>
    %33 = vector.multi_reduction <add>, %32, %cst_22 [1] : vector<8x8x8xf32> to vector<8x8xf32>
    %34 = vector.shape_cast %33 : vector<8x8xf32> to vector<8x1x8xf32>
    %35 = tpu.reciprocal %34 {approx = true} : vector<8x1x8xf32> -> vector<8x1x8xf32>
    %36 = vector.broadcast %35 : vector<8x1x8xf32> to vector<8x8x8xf32>
    %37 = arith.mulf %32, %36 : vector<8x8x8xf32>
    %38 = vector.shape_cast %37 : vector<8x8x8xf32> to vector<64x8xf32>
    %c0_23 = arith.constant 0 : index
    %c0_24 = arith.constant 0 : index
    %39 = vector.load %arg5[%c0_23, %c0_24] : memref<8x32xf32, #tpu.memory_space<vmem>>, vector<8x32xf32>
    %cst_25 = arith.constant dense<0.000000e+00> : vector<64x32xf32>
    %40 = tpu.matmul %38, %39, %cst_25 {dimension_numbers = #tpu.dot_dimension_numbers<[1], [0], [0], [1], [0, 0, 1, 1], [], []>} : vector<64x8xf32>, vector<8x32xf32>, vector<64x32xf32> -> vector<64x32xf32>
    %41 = vector.shape_cast %40 : vector<64x32xf32> to vector<8x8x32xf32>
    %42 = arith.mulf %41, %18 : vector<8x8x32xf32>
    %cst_26 = arith.constant dense<0.000000e+00> : vector<8x32xf32>
    %43 = vector.multi_reduction <add>, %42, %cst_26 [1] : vector<8x8x32xf32> to vector<8x32xf32>
    %c0_27 = arith.constant 0 : index
    %c0_28 = arith.constant 0 : index
    %44 = vector.load %arg12[%c0_27, %c0_28] : memref<32x32xf32, #tpu.memory_space<vmem>>, vector<32x32xf32>
    %cst_29 = arith.constant dense<0.000000e+00> : vector<8x32xf32>
    %45 = tpu.matmul %43, %44, %cst_29 {dimension_numbers = #tpu.dot_dimension_numbers<[1], [0], [0], [1], [0, 0, 1, 1], [], []>} : vector<8x32xf32>, vector<32x32xf32>, vector<8x32xf32> -> vector<8x32xf32>
    %c0_30 = arith.constant 0 : index
    %c0_31 = arith.constant 0 : index
    %46 = vector.load %arg13[%c0_30, %c0_31] : memref<1x32xf32, #tpu.memory_space<vmem>>, vector<1x32xf32>
    %47 = vector.broadcast %46 : vector<1x32xf32> to vector<8x32xf32>
    %48 = arith.addf %45, %47 : vector<8x32xf32>
    %49 = arith.addf %1, %48 : vector<8x32xf32>
    %c0_32 = arith.constant 0 : index
    %c0_33 = arith.constant 0 : index
    %50 = vector.load %arg14[%c0_32, %c0_33] : memref<1x32xf32, #tpu.memory_space<vmem>>, vector<1x32xf32>
    %c0_34 = arith.constant 0 : index
    %c0_35 = arith.constant 0 : index
    %51 = vector.load %arg15[%c0_34, %c0_35] : memref<1x32xf32, #tpu.memory_space<vmem>>, vector<1x32xf32>
    %cst_36 = arith.constant dense<0.000000e+00> : vector<8xf32>
    %52 = vector.multi_reduction <add>, %49, %cst_36 [1] : vector<8x32xf32> to vector<8xf32>
    %53 = vector.shape_cast %52 : vector<8xf32> to vector<8x1xf32>
    %cst_37 = arith.constant 3.200000e+01 : f32
    %54 = vector.broadcast %cst_37 : f32 to vector<8x1xf32>
    %55 = arith.divf %53, %54 : vector<8x1xf32>
    %56 = vector.broadcast %55 : vector<8x1xf32> to vector<8x32xf32>
    %57 = arith.subf %49, %56 : vector<8x32xf32>
    %58 = arith.mulf %57, %57 : vector<8x32xf32>
    %cst_38 = arith.constant dense<0.000000e+00> : vector<8xf32>
    %59 = vector.multi_reduction <add>, %58, %cst_38 [1] : vector<8x32xf32> to vector<8xf32>
    %60 = vector.shape_cast %59 : vector<8xf32> to vector<8x1xf32>
    %cst_39 = arith.constant 3.200000e+01 : f32
    %61 = vector.broadcast %cst_39 : f32 to vector<8x1xf32>
    %62 = arith.divf %60, %61 : vector<8x1xf32>
    %63 = vector.broadcast %55 : vector<8x1xf32> to vector<8x32xf32>
    %64 = arith.subf %49, %63 : vector<8x32xf32>
    %cst_40 = arith.constant 9.99999974E-6 : f32
    %65 = vector.broadcast %cst_40 : f32 to vector<8x1xf32>
    %66 = arith.addf %62, %65 : vector<8x1xf32>
    %67 = math.rsqrt %66 : vector<8x1xf32>
    %68 = vector.broadcast %67 : vector<8x1xf32> to vector<8x32xf32>
    %69 = arith.mulf %64, %68 : vector<8x32xf32>
    %70 = vector.broadcast %50 : vector<1x32xf32> to vector<8x32xf32>
    %71 = arith.mulf %69, %70 : vector<8x32xf32>
    %72 = vector.broadcast %51 : vector<1x32xf32> to vector<8x32xf32>
    %73 = arith.addf %71, %72 : vector<8x32xf32>
    %c0_41 = arith.constant 0 : index
    %c0_42 = arith.constant 0 : index
    %74 = vector.load %arg16[%c0_41, %c0_42] : memref<32x512xf32, #tpu.memory_space<vmem>>, vector<32x512xf32>
    %cst_43 = arith.constant dense<0.000000e+00> : vector<8x512xf32>
    %75 = tpu.matmul %73, %74, %cst_43 {dimension_numbers = #tpu.dot_dimension_numbers<[1], [0], [0], [1], [0, 0, 1, 1], [], []>} : vector<8x32xf32>, vector<32x512xf32>, vector<8x512xf32> -> vector<8x512xf32>
    %c0_44 = arith.constant 0 : index
    %c0_45 = arith.constant 0 : index
    %76 = vector.load %arg17[%c0_44, %c0_45] : memref<1x512xf32, #tpu.memory_space<vmem>>, vector<1x512xf32>
    %77 = vector.broadcast %76 : vector<1x512xf32> to vector<8x512xf32>
    %78 = arith.addf %75, %77 : vector<8x512xf32>
    %cst_46 = arith.constant 0.000000e+00 : f32
    %79 = vector.broadcast %cst_46 : f32 to vector<8x512xf32>
    %80 = arith.maximumf %78, %79 : vector<8x512xf32>
    %c0_47 = arith.constant 0 : index
    %c0_48 = arith.constant 0 : index
    %81 = vector.load %arg18[%c0_47, %c0_48] : memref<512x32xf32, #tpu.memory_space<vmem>>, vector<512x32xf32>
    %cst_49 = arith.constant dense<0.000000e+00> : vector<8x32xf32>
    %82 = tpu.matmul %80, %81, %cst_49 {dimension_numbers = #tpu.dot_dimension_numbers<[1], [0], [0], [1], [0, 0, 1, 1], [], []>} : vector<8x512xf32>, vector<512x32xf32>, vector<8x32xf32> -> vector<8x32xf32>
    %c0_50 = arith.constant 0 : index
    %c0_51 = arith.constant 0 : index
    %83 = vector.load %arg19[%c0_50, %c0_51] : memref<1x32xf32, #tpu.memory_space<vmem>>, vector<1x32xf32>
    %84 = vector.broadcast %83 : vector<1x32xf32> to vector<8x32xf32>
    %85 = arith.addf %82, %84 : vector<8x32xf32>
    %86 = arith.addf %73, %85 : vector<8x32xf32>
    %c0_52 = arith.constant 0 : index
    %c0_53 = arith.constant 0 : index
    %87 = vector.load %arg20[%c0_52, %c0_53] : memref<1x32xf32, #tpu.memory_space<vmem>>, vector<1x32xf32>
    %c0_54 = arith.constant 0 : index
    %c0_55 = arith.constant 0 : index
    %88 = vector.load %arg21[%c0_54, %c0_55] : memref<1x32xf32, #tpu.memory_space<vmem>>, vector<1x32xf32>
    %cst_56 = arith.constant dense<0.000000e+00> : vector<8xf32>
    %89 = vector.multi_reduction <add>, %86, %cst_56 [1] : vector<8x32xf32> to vector<8xf32>
    %90 = vector.shape_cast %89 : vector<8xf32> to vector<8x1xf32>
    %cst_57 = arith.constant 3.200000e+01 : f32
    %91 = vector.broadcast %cst_57 : f32 to vector<8x1xf32>
    %92 = arith.divf %90, %91 : vector<8x1xf32>
    %93 = vector.broadcast %92 : vector<8x1xf32> to vector<8x32xf32>
    %94 = arith.subf %86, %93 : vector<8x32xf32>
    %95 = arith.mulf %94, %94 : vector<8x32xf32>
    %cst_58 = arith.constant dense<0.000000e+00> : vector<8xf32>
    %96 = vector.multi_reduction <add>, %95, %cst_58 [1] : vector<8x32xf32> to vector<8xf32>
    %97 = vector.shape_cast %96 : vector<8xf32> to vector<8x1xf32>
    %cst_59 = arith.constant 3.200000e+01 : f32
    %98 = vector.broadcast %cst_59 : f32 to vector<8x1xf32>
    %99 = arith.divf %97, %98 : vector<8x1xf32>
    %100 = vector.broadcast %92 : vector<8x1xf32> to vector<8x32xf32>
    %101 = arith.subf %86, %100 : vector<8x32xf32>
    %cst_60 = arith.constant 9.99999974E-6 : f32
    %102 = vector.broadcast %cst_60 : f32 to vector<8x1xf32>
    %103 = arith.addf %99, %102 : vector<8x1xf32>
    %104 = math.rsqrt %103 : vector<8x1xf32>
    %105 = vector.broadcast %104 : vector<8x1xf32> to vector<8x32xf32>
    %106 = arith.mulf %101, %105 : vector<8x32xf32>
    %107 = vector.broadcast %87 : vector<1x32xf32> to vector<8x32xf32>
    %108 = arith.mulf %106, %107 : vector<8x32xf32>
    %109 = vector.broadcast %88 : vector<1x32xf32> to vector<8x32xf32>
    %110 = arith.addf %108, %109 : vector<8x32xf32>
    %c0_61 = arith.constant 0 : index
    %c0_62 = arith.constant 0 : index
    %111 = vector.load %arg3[%c0_61, %c0_62] : memref<8x32xf32, #tpu.memory_space<vmem>>, vector<8x32xf32>
    %c0_63 = arith.constant 0 : index
    %c0_64 = arith.constant 0 : index
    %112 = vector.load %arg22[%c0_63, %c0_64] : memref<32x128xf32, #tpu.memory_space<vmem>>, vector<32x128xf32>
    %cst_65 = arith.constant dense<0.000000e+00> : vector<8x128xf32>
    %113 = tpu.matmul %111, %112, %cst_65 {dimension_numbers = #tpu.dot_dimension_numbers<[1], [0], [0], [1], [0, 0, 1, 1], [], []>} : vector<8x32xf32>, vector<32x128xf32>, vector<8x128xf32> -> vector<8x128xf32>
    %c0_66 = arith.constant 0 : index
    %c0_67 = arith.constant 0 : index
    %114 = vector.load %arg23[%c0_66, %c0_67] : memref<32x128xf32, #tpu.memory_space<vmem>>, vector<32x128xf32>
    %cst_68 = arith.constant dense<0.000000e+00> : vector<8x128xf32>
    %115 = tpu.matmul %110, %114, %cst_68 {dimension_numbers = #tpu.dot_dimension_numbers<[1], [0], [0], [1], [0, 0, 1, 1], [], []>} : vector<8x32xf32>, vector<32x128xf32>, vector<8x128xf32> -> vector<8x128xf32>
    %116 = arith.addf %113, %115 : vector<8x128xf32>
    %c0_69 = arith.constant 0 : index
    %c0_70 = arith.constant 0 : index
    %117 = vector.load %arg24[%c0_69, %c0_70] : memref<8x128xf32, #tpu.memory_space<vmem>>, vector<8x128xf32>
    tpu.vector_store %arg24[%c0_69, %c0_70], %116 {strides = array<i32>} : memref<8x128xf32, #tpu.memory_space<vmem>>, vector<8x128xf32>,
    return
  }
  func.func @transform_0(%arg0: i32) -> (i32, i32) {
    %c0_i32 = arith.constant 0 : i32
    %c0_i32_0 = arith.constant 0 : i32
    return %arg0, %c0_i32 : i32, i32
  }
  func.func @transform_1(%arg0: i32) -> (i32, i32) {
    %c0_i32 = arith.constant 0 : i32
    %c0_i32_0 = arith.constant 0 : i32
    return %arg0, %c0_i32 : i32, i32
  }
  func.func @transform_2(%arg0: i32) -> (i32, i32) {
    %c0_i32 = arith.constant 0 : i32
    %c0_i32_0 = arith.constant 0 : i32
    return %arg0, %c0_i32 : i32, i32
  }
  func.func @transform_3(%arg0: i32) -> (i32, i32) {
    %c0_i32 = arith.constant 0 : i32
    %c0_i32_0 = arith.constant 0 : i32
    %c0_i32_1 = arith.constant 0 : i32
    return %c0_i32, %c0_i32_0 : i32, i32
  }
  func.func @transform_4(%arg0: i32) -> (i32, i32) {
    %c0_i32 = arith.constant 0 : i32
    %c0_i32_0 = arith.constant 0 : i32
    %c0_i32_1 = arith.constant 0 : i32
    return %c0_i32, %c0_i32_0 : i32, i32
  }
  func.func @transform_5(%arg0: i32) -> (i32, i32) {
    %c0_i32 = arith.constant 0 : i32
    %c0_i32_0 = arith.constant 0 : i32
    %c0_i32_1 = arith.constant 0 : i32
    return %c0_i32, %c0_i32_0 : i32, i32
  }
  func.func @transform_6(%arg0: i32) -> (i32, i32) {
    %c0_i32 = arith.constant 0 : i32
    %c0_i32_0 = arith.constant 0 : i32
    %c0_i32_1 = arith.constant 0 : i32
    return %c0_i32, %c0_i32_0 : i32, i32
  }
  func.func @transform_7(%arg0: i32) -> (i32, i32) {
    %c0_i32 = arith.constant 0 : i32
    %c0_i32_0 = arith.constant 0 : i32
    %c0_i32_1 = arith.constant 0 : i32
    return %c0_i32, %c0_i32_0 : i32, i32
  }
  func.func @transform_8(%arg0: i32) -> (i32, i32) {
    %c0_i32 = arith.constant 0 : i32
    %c0_i32_0 = arith.constant 0 : i32
    %c0_i32_1 = arith.constant 0 : i32
    return %c0_i32, %c0_i32_0 : i32, i32
  }
  func.func @transform_9(%arg0: i32) -> (i32, i32) {
    %c0_i32 = arith.constant 0 : i32
    %c0_i32_0 = arith.constant 0 : i32
    %c0_i32_1 = arith.constant 0 : i32
    return %c0_i32, %c0_i32_0 : i32, i32
  }
  func.func @transform_10(%arg0: i32) -> (i32, i32) {
    %c0_i32 = arith.constant 0 : i32
    %c0_i32_0 = arith.constant 0 : i32
    %c0_i32_1 = arith.constant 0 : i32
    return %c0_i32, %c0_i32_0 : i32, i32
  }
  func.func @transform_11(%arg0: i32) -> (i32, i32) {
    %c0_i32 = arith.constant 0 : i32
    %c0_i32_0 = arith.constant 0 : i32
    %c0_i32_1 = arith.constant 0 : i32
    return %c0_i32, %c0_i32_0 : i32, i32
  }
  func.func @transform_12(%arg0: i32) -> (i32, i32) {
    %c0_i32 = arith.constant 0 : i32
    %c0_i32_0 = arith.constant 0 : i32
    %c0_i32_1 = arith.constant 0 : i32
    return %c0_i32, %c0_i32_0 : i32, i32
  }
  func.func @transform_13(%arg0: i32) -> (i32, i32) {
    %c0_i32 = arith.constant 0 : i32
    %c0_i32_0 = arith.constant 0 : i32
    %c0_i32_1 = arith.constant 0 : i32
    return %c0_i32, %c0_i32_0 : i32, i32
  }
  func.func @transform_14(%arg0: i32) -> (i32, i32) {
    %c0_i32 = arith.constant 0 : i32
    %c0_i32_0 = arith.constant 0 : i32
    %c0_i32_1 = arith.constant 0 : i32
    return %c0_i32, %c0_i32_0 : i32, i32
  }
  func.func @transform_15(%arg0: i32) -> (i32, i32) {
    %c0_i32 = arith.constant 0 : i32
    %c0_i32_0 = arith.constant 0 : i32
    %c0_i32_1 = arith.constant 0 : i32
    return %c0_i32, %c0_i32_0 : i32, i32
  }
  func.func @transform_16(%arg0: i32) -> (i32, i32) {
    %c0_i32 = arith.constant 0 : i32
    %c0_i32_0 = arith.constant 0 : i32
    %c0_i32_1 = arith.constant 0 : i32
    return %c0_i32, %c0_i32_0 : i32, i32
  }
  func.func @transform_17(%arg0: i32) -> (i32, i32) {
    %c0_i32 = arith.constant 0 : i32
    %c0_i32_0 = arith.constant 0 : i32
    %c0_i32_1 = arith.constant 0 : i32
    return %c0_i32, %c0_i32_0 : i32, i32
  }
  func.func @transform_18(%arg0: i32) -> (i32, i32) {
    %c0_i32 = arith.constant 0 : i32
    %c0_i32_0 = arith.constant 0 : i32
    %c0_i32_1 = arith.constant 0 : i32
    return %c0_i32, %c0_i32_0 : i32, i32
  }
  func.func @transform_19(%arg0: i32) -> (i32, i32) {
    %c0_i32 = arith.constant 0 : i32
    %c0_i32_0 = arith.constant 0 : i32
    %c0_i32_1 = arith.constant 0 : i32
    return %c0_i32, %c0_i32_0 : i32, i32
  }
  func.func @transform_20(%arg0: i32) -> (i32, i32) {
    %c0_i32 = arith.constant 0 : i32
    %c0_i32_0 = arith.constant 0 : i32
    %c0_i32_1 = arith.constant 0 : i32
    return %c0_i32, %c0_i32_0 : i32, i32
  }
  func.func @transform_21(%arg0: i32) -> (i32, i32) {
    %c0_i32 = arith.constant 0 : i32
    %c0_i32_0 = arith.constant 0 : i32
    %c0_i32_1 = arith.constant 0 : i32
    return %c0_i32, %c0_i32_0 : i32, i32
  }
  func.func @transform_22(%arg0: i32) -> (i32, i32) {
    %c0_i32 = arith.constant 0 : i32
    %c0_i32_0 = arith.constant 0 : i32
    %c0_i32_1 = arith.constant 0 : i32
    return %c0_i32, %c0_i32_0 : i32, i32
  }
  func.func @transform_23(%arg0: i32) -> (i32, i32) {
    %c0_i32 = arith.constant 0 : i32
    %c0_i32_0 = arith.constant 0 : i32
    return %arg0, %c0_i32 : i32, i32
  }
}

</mosaic_0001>

<llo_original>
// kernel: tpu_custom_call.1
$region0: #{tpu_custom_call.1}
  #allocation0 [shape = 'u32[]', space=smem, size = 0x4, offset = 0x4, fixed_abs, tag = 'smem constant byte address 0x4 - core index']
  #allocation1 [shape = 'u32[144,128]{1,0:T(1,128)}', space=vmem, size = 0x12000, scoped, tag = 'internal scratch']
  %s0 = inlined_call_operand.vmem [shape: f32[128,32], index: 0, kind: input, shape index: {}]
  %s1 = inlined_call_operand.vmem [shape: f32[16,32], index: 1, kind: input, shape index: {}]
  %s2 = inlined_call_operand.vmem [shape: f32[16,32], index: 2, kind: input, shape index: {}]
  %s3 = inlined_call_operand.vmem [shape: f32[32,8], index: 3, kind: input, shape index: {}]
  %s4 = inlined_call_operand.vmem [shape: f32[8,32], index: 4, kind: input, shape index: {}]
  %s5 = inlined_call_operand.vmem [shape: f32[32,32], index: 5, kind: input, shape index: {}]
  %s6 = inlined_call_operand.vmem [shape: f32[1,32], index: 6, kind: input, shape index: {}]
  %s7 = inlined_call_operand.vmem [shape: f32[32,32], index: 7, kind: input, shape index: {}]
  %s8 = inlined_call_operand.vmem [shape: f32[1,32], index: 8, kind: input, shape index: {}]
  %s9 = inlined_call_operand.vmem [shape: f32[32,32], index: 9, kind: input, shape index: {}]
  %s10 = inlined_call_operand.vmem [shape: f32[1,32], index: 10, kind: input, shape index: {}]
  %s11 = inlined_call_operand.vmem [shape: f32[32,32], index: 11, kind: input, shape index: {}]
  %s12 = inlined_call_operand.vmem [shape: f32[1,32], index: 12, kind: input, shape index: {}]
  %s13 = inlined_call_operand.vmem [shape: f32[1,32], index: 13, kind: input, shape index: {}]
  %s14 = inlined_call_operand.vmem [shape: f32[1,32], index: 14, kind: input, shape index: {}]
  %s15 = inlined_call_operand.vmem [shape: f32[32,512], index: 15, kind: input, shape index: {}]
  %s16 = inlined_call_operand.vmem [shape: f32[1,512], index: 16, kind: input, shape index: {}]
  %s17 = inlined_call_operand.vmem [shape: f32[512,32], index: 17, kind: input, shape index: {}]
  %s18 = inlined_call_operand.vmem [shape: f32[1,32], index: 18, kind: input, shape index: {}]
  %s19 = inlined_call_operand.vmem [shape: f32[1,32], index: 19, kind: input, shape index: {}]
  %s20 = inlined_call_operand.vmem [shape: f32[1,32], index: 20, kind: input, shape index: {}]
  %s21 = inlined_call_operand.vmem [shape: f32[32,128], index: 21, kind: input, shape index: {}]
  %s22 = inlined_call_operand.vmem [shape: f32[32,128], index: 22, kind: input, shape index: {}]
  %s23 = inlined_call_operand.hbm [shape: f32[16,128], index: 23, kind: output, shape index: {}]
  %s24 = sld [smem:[#allocation0]]
  $region125: #{tpu_custom_call.1} parent=0
    _
  %s26 = ssub.s32 1, %s24
  %s27 = scalar_select 0, %s26, %s24
  $region1: #{tpu_custom_call.1} parent=0
    #allocation2 [shape = 'u8[8192]{0}', space=vmem, size = 0x2000, scoped, tag = 'output window, operand 0']
    #allocation3 [shape = 's32[2]{0}', space=sflag, size = 0x8, scoped, tag = 'scoped memory for tpu_custom_call.1']
    %28 = vsyncpa [#allocation3], 0
    %s29 = scalar_lea.sflag [#allocation3], 1
    %30 = vsyncpa %s29, 0
    loop: start=0, step=1, limit=4
    $region2: #{tpu_custom_call.1} parent=1 // loop_pre_header
      _
    $region3: #{tpu_custom_call.1} parent=1 // loop_header
      %s32 = sphi 0, %s36
      %p33 = scmp.ge.s32.totalorder %s32, 4
      %s42 = sphi 0, %s44
      %s45 = sphi 0, %s42
      %s46 = sphi 0, %s45
      %s62 = sphi 0, %s46
      %s68 = sphi 0, %s70
      %s71 = sphi 0, %s68
      %s72 = sphi 0, %s71
      %s88 = sphi 0, %s72
      %s94 = sphi 0, %s96
      %s97 = sphi 0, %s94
      %s98 = sphi 0, %s97
      %s114 = sphi 0, %s98
      %s118 = sphi 0, %s118
      %s120 = sphi 0, %s118
      %s121 = sphi 0, %s120
      %s135 = sphi 0, %s121
      %s139 = sphi 0, %s139
      %s141 = sphi 0, %s139
      %s142 = sphi 0, %s141
      %s156 = sphi 0, %s142
      %s160 = sphi 0, %s160
      %s162 = sphi 0, %s160
      %s163 = sphi 0, %s162
      %s177 = sphi 0, %s163
      %s181 = sphi 0, %s181
      %s183 = sphi 0, %s181
      %s184 = sphi 0, %s183
      %s198 = sphi 0, %s184
      %s202 = sphi 0, %s202
      %s204 = sphi 0, %s202
      %s205 = sphi 0, %s204
      %s219 = sphi 0, %s205
      %s223 = sphi 0, %s223
      %s225 = sphi 0, %s223
      %s226 = sphi 0, %s225
      %s240 = sphi 0, %s226
      %s244 = sphi 0, %s244
      %s246 = sphi 0, %s244
      %s247 = sphi 0, %s246
      %s261 = sphi 0, %s247
      %s265 = sphi 0, %s265
      %s267 = sphi 0, %s265
      %s268 = sphi 0, %s267
      %s282 = sphi 0, %s268
      %s286 = sphi 0, %s286
      %s288 = sphi 0, %s286
      %s289 = sphi 0, %s288
      %s303 = sphi 0, %s289
      %s307 = sphi 0, %s307
      %s309 = sphi 0, %s307
      %s310 = sphi 0, %s309
      %s324 = sphi 0, %s310
      %s328 = sphi 0, %s328
      %s330 = sphi 0, %s328
      %s331 = sphi 0, %s330
      %s345 = sphi 0, %s331
      %s349 = sphi 0, %s349
      %s351 = sphi 0, %s349
      %s352 = sphi 0, %s351
      %s366 = sphi 0, %s352
      %s370 = sphi 0, %s370
      %s372 = sphi 0, %s370
      %s373 = sphi 0, %s372
      %s387 = sphi 0, %s373
      %s391 = sphi 0, %s391
      %s393 = sphi 0, %s391
      %s394 = sphi 0, %s393
      %s408 = sphi 0, %s394
      %s412 = sphi 0, %s412
      %s414 = sphi 0, %s412
      %s415 = sphi 0, %s414
      %s429 = sphi 0, %s415
      %s433 = sphi 0, %s433
      %s435 = sphi 0, %s433
      %s436 = sphi 0, %s435
      %s450 = sphi 0, %s436
      %s454 = sphi 0, %s454
      %s456 = sphi 0, %s454
      %s457 = sphi 0, %s456
      %s471 = sphi 0, %s457
      %s475 = sphi 0, %s475
      %s477 = sphi 0, %s475
      %s478 = sphi 0, %s477
      %s492 = sphi 0, %s478
      %s496 = sphi 0, %s496
      %s498 = sphi 0, %s496
      %s499 = sphi 0, %s498
      %s513 = sphi 0, %s499
      %s517 = sphi 0, %s517
      %s519 = sphi 0, %s517
      %s520 = sphi 0, %s519
      %s534 = sphi 0, %s520
      %s540 = sphi 0, %s542
      %s543 = sphi 0, %s540
      %s544 = sphi 0, %s543
      %s560 = sphi 0, %s544
    $region4: #{tpu_custom_call.1} parent=1 // loop_header_branch
      %35 = sbr.rel (%p33) target = $region8
    $region5: #{tpu_custom_call.1} parent=1 // loop_body
      %s37 = ssub.s32 %s32, 1
      %s38 = ssub.s32 %s32, 2
      %s39 = sadd.s32 %s32, 1
      %s40 = ssub.s32 %s32, %s39
      %p41 = scmp.eq.s32.totalorder %s40, 0
      %s43 = sadd.s32 %s42, 1
      %s44 = scalar_select %p41, %s42, %s43
      %p47 = pneg %p41
      %p48 = scmp.eq.s32.totalorder %s32, 1
      %p49 = por %p47, %p48
      %p50 = scmp.ne.s32.totalorder %s42, %s45
      %p51 = scmp.eq.s32.totalorder %s32, 0
      %p52 = por %p50, %p51
      %p53 = scmp.ne.s32.totalorder %s42, %s45
      %p54 = scmp.eq.s32.totalorder %s37, 1
      %p55 = por %p53, %p54
      %p56 = scmp.ne.s32.totalorder %s45, %s46
      %p57 = scmp.eq.s32.totalorder %s37, 0
      %p58 = por %p56, %p57
      %p59 = scmp.ne.s32.totalorder %s45, %s46
      %p60 = scmp.eq.s32.totalorder %s38, 1
      %p61 = por %p59, %p60
      %p63 = scmp.ne.s32.totalorder %s46, %s62
      %p64 = scmp.eq.s32.totalorder %s38, 0
      %p65 = por %p63, %p64
      %s66 = ssub.s32 %s32, %s39
      %p67 = scmp.eq.s32.totalorder %s66, 0
      %s69 = sadd.s32 %s68, 1
      %s70 = scalar_select %p67, %s68, %s69
      %p73 = pneg %p67
      %p74 = scmp.eq.s32.totalorder %s32, 1
      %p75 = por %p73, %p74
      %p76 = scmp.ne.s32.totalorder %s68, %s71
      %p77 = scmp.eq.s32.totalorder %s32, 0
      %p78 = por %p76, %p77
      %p79 = scmp.ne.s32.totalorder %s68, %s71
      %p80 = scmp.eq.s32.totalorder %s37, 1
      %p81 = por %p79, %p80
      %p82 = scmp.ne.s32.totalorder %s71, %s72
      %p83 = scmp.eq.s32.totalorder %s37, 0
      %p84 = por %p82, %p83
      %p85 = scmp.ne.s32.totalorder %s71, %s72
      %p86 = scmp.eq.s32.totalorder %s38, 1
      %p87 = por %p85, %p86
      %p89 = scmp.ne.s32.totalorder %s72, %s88
      %p90 = scmp.eq.s32.totalorder %s38, 0
      %p91 = por %p89, %p90
      %s92 = ssub.s32 %s32, %s39
      %p93 = scmp.eq.s32.totalorder %s92, 0
      %s95 = sadd.s32 %s94, 1
      %s96 = scalar_select %p93, %s94, %s95
      %p99 = pneg %p93
      %p100 = scmp.eq.s32.totalorder %s32, 1
      %p101 = por %p99, %p100
      %p102 = scmp.ne.s32.totalorder %s94, %s97
      %p103 = scmp.eq.s32.totalorder %s32, 0
      %p104 = por %p102, %p103
      %p105 = scmp.ne.s32.totalorder %s94, %s97
      %p106 = scmp.eq.s32.totalorder %s37, 1
      %p107 = por %p105, %p106
      %p108 = scmp.ne.s32.totalorder %s97, %s98
      %p109 = scmp.eq.s32.totalorder %s37, 0
      %p110 = por %p108, %p109
      %p111 = scmp.ne.s32.totalorder %s97, %s98
      %p112 = scmp.eq.s32.totalorder %s38, 1
      %p113 = por %p111, %p112
      %p115 = scmp.ne.s32.totalorder %s98, %s114
      %p116 = scmp.eq.s32.totalorder %s38, 0
      %p117 = por %p115, %p116
      %s119 = sadd.s32 %s118, 1
      %p122 = scmp.eq.s32.totalorder %s32, 1
      %p123 = scmp.ne.s32.totalorder %s118, %s120
      %p124 = scmp.eq.s32.totalorder %s32, 0
      %p125 = por %p123, %p124
      %p126 = scmp.ne.s32.totalorder %s118, %s120
      %p127 = scmp.eq.s32.totalorder %s37, 1
      %p128 = por %p126, %p127
      %p129 = scmp.ne.s32.totalorder %s120, %s121
      %p130 = scmp.eq.s32.totalorder %s37, 0
      %p131 = por %p129, %p130
      %p132 = scmp.ne.s32.totalorder %s120, %s121
      %p133 = scmp.eq.s32.totalorder %s38, 1
      %p134 = por %p132, %p133
      %p136 = scmp.ne.s32.totalorder %s121, %s135
      %p137 = scmp.eq.s32.totalorder %s38, 0
      %p138 = por %p136, %p137
      %s140 = sadd.s32 %s139, 1
      %p143 = scmp.eq.s32.totalorder %s32, 1
      %p144 = scmp.ne.s32.totalorder %s139, %s141
      %p145 = scmp.eq.s32.totalorder %s32, 0
      %p146 = por %p144, %p145
      %p147 = scmp.ne.s32.totalorder %s139, %s141
      %p148 = scmp.eq.s32.totalorder %s37, 1
      %p149 = por %p147, %p148
      %p150 = scmp.ne.s32.totalorder %s141, %s142
      %p151 = scmp.eq.s32.totalorder %s37, 0
      %p152 = por %p150, %p151
      %p153 = scmp.ne.s32.totalorder %s141, %s142
      %p154 = scmp.eq.s32.totalorder %s38, 1
      %p155 = por %p153, %p154
      %p157 = scmp.ne.s32.totalorder %s142, %s156
      %p158 = scmp.eq.s32.totalorder %s38, 0
      %p159 = por %p157, %p158
      %s161 = sadd.s32 %s160, 1
      %p164 = scmp.eq.s32.totalorder %s32, 1
      %p165 = scmp.ne.s32.totalorder %s160, %s162
      %p166 = scmp.eq.s32.totalorder %s32, 0
      %p167 = por %p165, %p166
      %p168 = scmp.ne.s32.totalorder %s160, %s162
      %p169 = scmp.eq.s32.totalorder %s37, 1
      %p170 = por %p168, %p169
      %p171 = scmp.ne.s32.totalorder %s162, %s163
      %p172 = scmp.eq.s32.totalorder %s37, 0
      %p173 = por %p171, %p172
      %p174 = scmp.ne.s32.totalorder %s162, %s163
      %p175 = scmp.eq.s32.totalorder %s38, 1
      %p176 = por %p174, %p175
      %p178 = scmp.ne.s32.totalorder %s163, %s177
      %p179 = scmp.eq.s32.totalorder %s38, 0
      %p180 = por %p178, %p179
      %s182 = sadd.s32 %s181, 1
      %p185 = scmp.eq.s32.totalorder %s32, 1
      %p186 = scmp.ne.s32.totalorder %s181, %s183
      %p187 = scmp.eq.s32.totalorder %s32, 0
      %p188 = por %p186, %p187
      %p189 = scmp.ne.s32.totalorder %s181, %s183
      %p190 = scmp.eq.s32.totalorder %s37, 1
      %p191 = por %p189, %p190
      %p192 = scmp.ne.s32.totalorder %s183, %s184
      %p193 = scmp.eq.s32.totalorder %s37, 0
      %p194 = por %p192, %p193
      %p195 = scmp.ne.s32.totalorder %s183, %s184
      %p196 = scmp.eq.s32.totalorder %s38, 1
      %p197 = por %p195, %p196
      %p199 = scmp.ne.s32.totalorder %s184, %s198
      %p200 = scmp.eq.s32.totalorder %s38, 0
      %p201 = por %p199, %p200
      %s203 = sadd.s32 %s202, 1
      %p206 = scmp.eq.s32.totalorder %s32, 1
      %p207 = scmp.ne.s32.totalorder %s202, %s204
      %p208 = scmp.eq.s32.totalorder %s32, 0
      %p209 = por %p207, %p208
      %p210 = scmp.ne.s32.totalorder %s202, %s204
      %p211 = scmp.eq.s32.totalorder %s37, 1
      %p212 = por %p210, %p211
      %p213 = scmp.ne.s32.totalorder %s204, %s205
      %p214 = scmp.eq.s32.totalorder %s37, 0
      %p215 = por %p213, %p214
      %p216 = scmp.ne.s32.totalorder %s204, %s205
      %p217 = scmp.eq.s32.totalorder %s38, 1
      %p218 = por %p216, %p217
      %p220 = scmp.ne.s32.totalorder %s205, %s219
      %p221 = scmp.eq.s32.totalorder %s38, 0
      %p222 = por %p220, %p221
      %s224 = sadd.s32 %s223, 1
      %p227 = scmp.eq.s32.totalorder %s32, 1
      %p228 = scmp.ne.s32.totalorder %s223, %s225
      %p229 = scmp.eq.s32.totalorder %s32, 0
      %p230 = por %p228, %p229
      %p231 = scmp.ne.s32.totalorder %s223, %s225
      %p232 = scmp.eq.s32.totalorder %s37, 1
      %p233 = por %p231, %p232
      %p234 = scmp.ne.s32.totalorder %s225, %s226
      %p235 = scmp.eq.s32.totalorder %s37, 0
      %p236 = por %p234, %p235
      %p237 = scmp.ne.s32.totalorder %s225, %s226
      %p238 = scmp.eq.s32.totalorder %s38, 1
      %p239 = por %p237, %p238
      %p241 = scmp.ne.s32.totalorder %s226, %s240
      %p242 = scmp.eq.s32.totalorder %s38, 0
      %p243 = por %p241, %p242
      %s245 = sadd.s32 %s244, 1
      %p248 = scmp.eq.s32.totalorder %s32, 1
      %p249 = scmp.ne.s32.totalorder %s244, %s246
      %p250 = scmp.eq.s32.totalorder %s32, 0
      %p251 = por %p249, %p250
      %p252 = scmp.ne.s32.totalorder %s244, %s246
      %p253 = scmp.eq.s32.totalorder %s37, 1
      %p254 = por %p252, %p253
      %p255 = scmp.ne.s32.totalorder %s246, %s247
      %p256 = scmp.eq.s32.totalorder %s37, 0
      %p257 = por %p255, %p256
      %p258 = scmp.ne.s32.totalorder %s246, %s247
      %p259 = scmp.eq.s32.totalorder %s38, 1
      %p260 = por %p258, %p259
      %p262 = scmp.ne.s32.totalorder %s247, %s261
      %p263 = scmp.eq.s32.totalorder %s38, 0
      %p264 = por %p262, %p263
      %s266 = sadd.s32 %s265, 1
      %p269 = scmp.eq.s32.totalorder %s32, 1
      %p270 = scmp.ne.s32.totalorder %s265, %s267
      %p271 = scmp.eq.s32.totalorder %s32, 0
      %p272 = por %p270, %p271
      %p273 = scmp.ne.s32.totalorder %s265, %s267
      %p274 = scmp.eq.s32.totalorder %s37, 1
      %p275 = por %p273, %p274
      %p276 = scmp.ne.s32.totalorder %s267, %s268
      %p277 = scmp.eq.s32.totalorder %s37, 0
      %p278 = por %p276, %p277
      %p279 = scmp.ne.s32.totalorder %s267, %s268
      %p280 = scmp.eq.s32.totalorder %s38, 1
      %p281 = por %p279, %p280
      %p283 = scmp.ne.s32.totalorder %s268, %s282
      %p284 = scmp.eq.s32.totalorder %s38, 0
      %p285 = por %p283, %p284
      %s287 = sadd.s32 %s286, 1
      %p290 = scmp.eq.s32.totalorder %s32, 1
      %p291 = scmp.ne.s32.totalorder %s286, %s288
      %p292 = scmp.eq.s32.totalorder %s32, 0
      %p293 = por %p291, %p292
      %p294 = scmp.ne.s32.totalorder %s286, %s288
      %p295 = scmp.eq.s32.totalorder %s37, 1
      %p296 = por %p294, %p295
      %p297 = scmp.ne.s32.totalorder %s288, %s289
      %p298 = scmp.eq.s32.totalorder %s37, 0
      %p299 = por %p297, %p298
      %p300 = scmp.ne.s32.totalorder %s288, %s289
      %p301 = scmp.eq.s32.totalorder %s38, 1
      %p302 = por %p300, %p301
      %p304 = scmp.ne.s32.totalorder %s289, %s303
      %p305 = scmp.eq.s32.totalorder %s38, 0
      %p306 = por %p304, %p305
      %s308 = sadd.s32 %s307, 1
      %p311 = scmp.eq.s32.totalorder %s32, 1
      %p312 = scmp.ne.s32.totalorder %s307, %s309
      %p313 = scmp.eq.s32.totalorder %s32, 0
      %p314 = por %p312, %p313
      %p315 = scmp.ne.s32.totalorder %s307, %s309
      %p316 = scmp.eq.s32.totalorder %s37, 1
      %p317 = por %p315, %p316
      %p318 = scmp.ne.s32.totalorder %s309, %s310
      %p319 = scmp.eq.s32.totalorder %s37, 0
      %p320 = por %p318, %p319
      %p321 = scmp.ne.s32.totalorder %s309, %s310
      %p322 = scmp.eq.s32.totalorder %s38, 1
      %p323 = por %p321, %p322
      %p325 = scmp.ne.s32.totalorder %s310, %s324
      %p326 = scmp.eq.s32.totalorder %s38, 0
      %p327 = por %p325, %p326
      %s329 = sadd.s32 %s328, 1
      %p332 = scmp.eq.s32.totalorder %s32, 1
      %p333 = scmp.ne.s32.totalorder %s328, %s330
      %p334 = scmp.eq.s32.totalorder %s32, 0
      %p335 = por %p333, %p334
      %p336 = scmp.ne.s32.totalorder %s328, %s330
      %p337 = scmp.eq.s32.totalorder %s37, 1
      %p338 = por %p336, %p337
      %p339 = scmp.ne.s32.totalorder %s330, %s331
      %p340 = scmp.eq.s32.totalorder %s37, 0
      %p341 = por %p339, %p340
      %p342 = scmp.ne.s32.totalorder %s330, %s331
      %p343 = scmp.eq.s32.totalorder %s38, 1
      %p344 = por %p342, %p343
      %p346 = scmp.ne.s32.totalorder %s331, %s345
      %p347 = scmp.eq.s32.totalorder %s38, 0
      %p348 = por %p346, %p347
      %s350 = sadd.s32 %s349, 1
      %p353 = scmp.eq.s32.totalorder %s32, 1
      %p354 = scmp.ne.s32.totalorder %s349, %s351
      %p355 = scmp.eq.s32.totalorder %s32, 0
      %p356 = por %p354, %p355
      %p357 = scmp.ne.s32.totalorder %s349, %s351
      %p358 = scmp.eq.s32.totalorder %s37, 1
      %p359 = por %p357, %p358
      %p360 = scmp.ne.s32.totalorder %s351, %s352
      %p361 = scmp.eq.s32.totalorder %s37, 0
      %p362 = por %p360, %p361
      %p363 = scmp.ne.s32.totalorder %s351, %s352
      %p364 = scmp.eq.s32.totalorder %s38, 1
      %p365 = por %p363, %p364
      %p367 = scmp.ne.s32.totalorder %s352, %s366
      %p368 = scmp.eq.s32.totalorder %s38, 0
      %p369 = por %p367, %p368
      %s371 = sadd.s32 %s370, 1
      %p374 = scmp.eq.s32.totalorder %s32, 1
      %p375 = scmp.ne.s32.totalorder %s370, %s372
      %p376 = scmp.eq.s32.totalorder %s32, 0
      %p377 = por %p375, %p376
      %p378 = scmp.ne.s32.totalorder %s370, %s372
      %p379 = scmp.eq.s32.totalorder %s37, 1
      %p380 = por %p378, %p379
      %p381 = scmp.ne.s32.totalorder %s372, %s373
      %p382 = scmp.eq.s32.totalorder %s37, 0
      %p383 = por %p381, %p382
      %p384 = scmp.ne.s32.totalorder %s372, %s373
      %p385 = scmp.eq.s32.totalorder %s38, 1
      %p386 = por %p384, %p385
      %p388 = scmp.ne.s32.totalorder %s373, %s387
      %p389 = scmp.eq.s32.totalorder %s38, 0
      %p390 = por %p388, %p389
      %s392 = sadd.s32 %s391, 1
      %p395 = scmp.eq.s32.totalorder %s32, 1
      %p396 = scmp.ne.s32.totalorder %s391, %s393
      %p397 = scmp.eq.s32.totalorder %s32, 0
      %p398 = por %p396, %p397
      %p399 = scmp.ne.s32.totalorder %s391, %s393
      %p400 = scmp.eq.s32.totalorder %s37, 1
      %p401 = por %p399, %p400
      %p402 = scmp.ne.s32.totalorder %s393, %s394
      %p403 = scmp.eq.s32.totalorder %s37, 0
      %p404 = por %p402, %p403
      %p405 = scmp.ne.s32.totalorder %s393, %s394
      %p406 = scmp.eq.s32.totalorder %s38, 1
      %p407 = por %p405, %p406
      %p409 = scmp.ne.s32.totalorder %s394, %s408
      %p410 = scmp.eq.s32.totalorder %s38, 0
      %p411 = por %p409, %p410
      %s413 = sadd.s32 %s412, 1
      %p416 = scmp.eq.s32.totalorder %s32, 1
      %p417 = scmp.ne.s32.totalorder %s412, %s414
      %p418 = scmp.eq.s32.totalorder %s32, 0
      %p419 = por %p417, %p418
      %p420 = scmp.ne.s32.totalorder %s412, %s414
      %p421 = scmp.eq.s32.totalorder %s37, 1
      %p422 = por %p420, %p421
      %p423 = scmp.ne.s32.totalorder %s414, %s415
      %p424 = scmp.eq.s32.totalorder %s37, 0
      %p425 = por %p423, %p424
      %p426 = scmp.ne.s32.totalorder %s414, %s415
      %p427 = scmp.eq.s32.totalorder %s38, 1
      %p428 = por %p426, %p427
      %p430 = scmp.ne.s32.totalorder %s415, %s429
      %p431 = scmp.eq.s32.totalorder %s38, 0
      %p432 = por %p430, %p431
      %s434 = sadd.s32 %s433, 1
      %p437 = scmp.eq.s32.totalorder %s32, 1
      %p438 = scmp.ne.s32.totalorder %s433, %s435
      %p439 = scmp.eq.s32.totalorder %s32, 0
      %p440 = por %p438, %p439
      %p441 = scmp.ne.s32.totalorder %s433, %s435
      %p442 = scmp.eq.s32.totalorder %s37, 1
      %p443 = por %p441, %p442
      %p444 = scmp.ne.s32.totalorder %s435, %s436
      %p445 = scmp.eq.s32.totalorder %s37, 0
      %p446 = por %p444, %p445
      %p447 = scmp.ne.s32.totalorder %s435, %s436
      %p448 = scmp.eq.s32.totalorder %s38, 1
      %p449 = por %p447, %p448
      %p451 = scmp.ne.s32.totalorder %s436, %s450
      %p452 = scmp.eq.s32.totalorder %s38, 0
      %p453 = por %p451, %p452
      %s455 = sadd.s32 %s454, 1
      %p458 = scmp.eq.s32.totalorder %s32, 1
      %p459 = scmp.ne.s32.totalorder %s454, %s456
      %p460 = scmp.eq.s32.totalorder %s32, 0
      %p461 = por %p459, %p460
      %p462 = scmp.ne.s32.totalorder %s454, %s456
      %p463 = scmp.eq.s32.totalorder %s37, 1
      %p464 = por %p462, %p463
      %p465 = scmp.ne.s32.totalorder %s456, %s457
      %p466 = scmp.eq.s32.totalorder %s37, 0
      %p467 = por %p465, %p466
      %p468 = scmp.ne.s32.totalorder %s456, %s457
      %p469 = scmp.eq.s32.totalorder %s38, 1
      %p470 = por %p468, %p469
      %p472 = scmp.ne.s32.totalorder %s457, %s471
      %p473 = scmp.eq.s32.totalorder %s38, 0
      %p474 = por %p472, %p473
      %s476 = sadd.s32 %s475, 1
      %p479 = scmp.eq.s32.totalorder %s32, 1
      %p480 = scmp.ne.s32.totalorder %s475, %s477
      %p481 = scmp.eq.s32.totalorder %s32, 0
      %p482 = por %p480, %p481
      %p483 = scmp.ne.s32.totalorder %s475, %s477
      %p484 = scmp.eq.s32.totalorder %s37, 1
      %p485 = por %p483, %p484
      %p486 = scmp.ne.s32.totalorder %s477, %s478
      %p487 = scmp.eq.s32.totalorder %s37, 0
      %p488 = por %p486, %p487
      %p489 = scmp.ne.s32.totalorder %s477, %s478
      %p490 = scmp.eq.s32.totalorder %s38, 1
      %p491 = por %p489, %p490
      %p493 = scmp.ne.s32.totalorder %s478, %s492
      %p494 = scmp.eq.s32.totalorder %s38, 0
      %p495 = por %p493, %p494
      %s497 = sadd.s32 %s496, 1
      %p500 = scmp.eq.s32.totalorder %s32, 1
      %p501 = scmp.ne.s32.totalorder %s496, %s498
      %p502 = scmp.eq.s32.totalorder %s32, 0
      %p503 = por %p501, %p502
      %p504 = scmp.ne.s32.totalorder %s496, %s498
      %p505 = scmp.eq.s32.totalorder %s37, 1
      %p506 = por %p504, %p505
      %p507 = scmp.ne.s32.totalorder %s498, %s499
      %p508 = scmp.eq.s32.totalorder %s37, 0
      %p509 = por %p507, %p508
      %p510 = scmp.ne.s32.totalorder %s498, %s499
      %p511 = scmp.eq.s32.totalorder %s38, 1
      %p512 = por %p510, %p511
      %p514 = scmp.ne.s32.totalorder %s499, %s513
      %p515 = scmp.eq.s32.totalorder %s38, 0
      %p516 = por %p514, %p515
      %s518 = sadd.s32 %s517, 1
      %p521 = scmp.eq.s32.totalorder %s32, 1
      %p522 = scmp.ne.s32.totalorder %s517, %s519
      %p523 = scmp.eq.s32.totalorder %s32, 0
      %p524 = por %p522, %p523
      %p525 = scmp.ne.s32.totalorder %s517, %s519
      %p526 = scmp.eq.s32.totalorder %s37, 1
      %p527 = por %p525, %p526
      %p528 = scmp.ne.s32.totalorder %s519, %s520
      %p529 = scmp.eq.s32.totalorder %s37, 0
      %p530 = por %p528, %p529
      %p531 = scmp.ne.s32.totalorder %s519, %s520
      %p532 = scmp.eq.s32.totalorder %s38, 1
      %p533 = por %p531, %p532
      %p535 = scmp.ne.s32.totalorder %s520, %s534
      %p536 = scmp.eq.s32.totalorder %s38, 0
      %p537 = por %p535, %p536
      %s538 = ssub.s32 %s32, %s39
      %p539 = scmp.eq.s32.totalorder %s538, 0
      %s541 = sadd.s32 %s540, 1
      %s542 = scalar_select %p539, %s540, %s541
      %p545 = pneg %p539
      %p546 = scmp.eq.s32.totalorder %s32, 1
      %p547 = por %p545, %p546
      %p548 = scmp.ne.s32.totalorder %s540, %s543
      %p549 = scmp.eq.s32.totalorder %s32, 0
      %p550 = por %p548, %p549
      %p551 = scmp.ne.s32.totalorder %s540, %s543
      %p552 = scmp.eq.s32.totalorder %s37, 1
      %p553 = por %p551, %p552
      %p554 = scmp.ne.s32.totalorder %s543, %s544
      %p555 = scmp.eq.s32.totalorder %s37, 0
      %p556 = por %p554, %p555
      %p557 = scmp.ne.s32.totalorder %s543, %s544
      %p558 = scmp.eq.s32.totalorder %s38, 1
      %p559 = por %p557, %p558
      %p561 = scmp.ne.s32.totalorder %s544, %s560
      %p562 = scmp.eq.s32.totalorder %s38, 0
      %p563 = por %p561, %p562
      %p564 = scmp.le.s32.totalorder 1, %s32
      %p565 = scmp.lt.s32.totalorder %s32, 3
      %p566 = pnand %p564, %p565
      %p567 = pneg %p566
      // Predicated region
      $region9: #{tpu_custom_call.1} parent=5 // pred_check
        _
      $region10: #{tpu_custom_call.1} parent=5 // pred_check_branch
        %569 = sbr.rel (%p566) target = $region12
      $region11: #{tpu_custom_call.1} parent=5 // pred_region
        %s570 = ssub.s32 %s32, 1
        // Predicated region
        $region13: #{tpu_custom_call.1} parent=11 // pred_check
          %p571 = pneg %p131
        $region14: #{tpu_custom_call.1} parent=11 // pred_check_branch
          %573 = sbr.rel (%p571) target = $region16
        $region15: #{tpu_custom_call.1} parent=11 // pred_region
          _
        $region16: #{tpu_custom_call.1} parent=11 // pred_fallthru
          _
        // Predicated region
        $region17: #{tpu_custom_call.1} parent=11 // pred_check
          %p574 = pneg %p152
        $region18: #{tpu_custom_call.1} parent=11 // pred_check_branch
          %576 = sbr.rel (%p574) target = $region20
        $region19: #{tpu_custom_call.1} parent=11 // pred_region
          _
        $region20: #{tpu_custom_call.1} parent=11 // pred_fallthru
          _
        // Predicated region
        $region21: #{tpu_custom_call.1} parent=11 // pred_check
          %p577 = pneg %p173
        $region22: #{tpu_custom_call.1} parent=11 // pred_check_branch
          %579 = sbr.rel (%p577) target = $region24
        $region23: #{tpu_custom_call.1} parent=11 // pred_region
          _
        $region24: #{tpu_custom_call.1} parent=11 // pred_fallthru
          _
        // Predicated region
        $region25: #{tpu_custom_call.1} parent=11 // pred_check
          %p580 = pneg %p194
        $region26: #{tpu_custom_call.1} parent=11 // pred_check_branch
          %582 = sbr.rel (%p580) target = $region28
        $region27: #{tpu_custom_call.1} parent=11 // pred_region
          _
        $region28: #{tpu_custom_call.1} parent=11 // pred_fallthru
          _
        // Predicated region
        $region29: #{tpu_custom_call.1} parent=11 // pred_check
          %p583 = pneg %p215
        $region30: #{tpu_custom_call.1} parent=11 // pred_check_branch
          %585 = sbr.rel (%p583) target = $region32
        $region31: #{tpu_custom_call.1} parent=11 // pred_region
          _
        $region32: #{tpu_custom_call.1} parent=11 // pred_fallthru
          _
        // Predicated region
        $region33: #{tpu_custom_call.1} parent=11 // pred_check
          %p586 = pneg %p236
        $region34: #{tpu_custom_call.1} parent=11 // pred_check_branch
          %588 = sbr.rel (%p586) target = $region36
        $region35: #{tpu_custom_call.1} parent=11 // pred_region
          _
        $region36: #{tpu_custom_call.1} parent=11 // pred_fallthru
          _
        // Predicated region
        $region37: #{tpu_custom_call.1} parent=11 // pred_check
          %p589 = pneg %p257
        $region38: #{tpu_custom_call.1} parent=11 // pred_check_branch
          %591 = sbr.rel (%p589) target = $region40
        $region39: #{tpu_custom_call.1} parent=11 // pred_region
          _
        $region40: #{tpu_custom_call.1} parent=11 // pred_fallthru
          _
        // Predicated region
        $region41: #{tpu_custom_call.1} parent=11 // pred_check
          %p592 = pneg %p278
        $region42: #{tpu_custom_call.1} parent=11 // pred_check_branch
          %594 = sbr.rel (%p592) target = $region44
        $region43: #{tpu_custom_call.1} parent=11 // pred_region
          _
        $region44: #{tpu_custom_call.1} parent=11 // pred_fallthru
          _
        // Predicated region
        $region45: #{tpu_custom_call.1} parent=11 // pred_check
          %p595 = pneg %p299
        $region46: #{tpu_custom_call.1} parent=11 // pred_check_branch
          %597 = sbr.rel (%p595) target = $region48
        $region47: #{tpu_custom_call.1} parent=11 // pred_region
          _
        $region48: #{tpu_custom_call.1} parent=11 // pred_fallthru
          _
        // Predicated region
        $region49: #{tpu_custom_call.1} parent=11 // pred_check
          %p598 = pneg %p320
        $region50: #{tpu_custom_call.1} parent=11 // pred_check_branch
          %600 = sbr.rel (%p598) target = $region52
        $region51: #{tpu_custom_call.1} parent=11 // pred_region
          _
        $region52: #{tpu_custom_call.1} parent=11 // pred_fallthru
          _
        // Predicated region
        $region53: #{tpu_custom_call.1} parent=11 // pred_check
          %p601 = pneg %p341
        $region54: #{tpu_custom_call.1} parent=11 // pred_check_branch
          %603 = sbr.rel (%p601) target = $region56
        $region55: #{tpu_custom_call.1} parent=11 // pred_region
          _
        $region56: #{tpu_custom_call.1} parent=11 // pred_fallthru
          _
        // Predicated region
        $region57: #{tpu_custom_call.1} parent=11 // pred_check
          %p604 = pneg %p362
        $region58: #{tpu_custom_call.1} parent=11 // pred_check_branch
          %606 = sbr.rel (%p604) target = $region60
        $region59: #{tpu_custom_call.1} parent=11 // pred_region
          _
        $region60: #{tpu_custom_call.1} parent=11 // pred_fallthru
          _
        // Predicated region
        $region61: #{tpu_custom_call.1} parent=11 // pred_check
          %p607 = pneg %p383
        $region62: #{tpu_custom_call.1} parent=11 // pred_check_branch
          %609 = sbr.rel (%p607) target = $region64
        $region63: #{tpu_custom_call.1} parent=11 // pred_region
          _
        $region64: #{tpu_custom_call.1} parent=11 // pred_fallthru
          _
        // Predicated region
        $region65: #{tpu_custom_call.1} parent=11 // pred_check
          %p610 = pneg %p404
        $region66: #{tpu_custom_call.1} parent=11 // pred_check_branch
          %612 = sbr.rel (%p610) target = $region68
        $region67: #{tpu_custom_call.1} parent=11 // pred_region
          _
        $region68: #{tpu_custom_call.1} parent=11 // pred_fallthru
          _
        // Predicated region
        $region69: #{tpu_custom_call.1} parent=11 // pred_check
          %p613 = pneg %p425
        $region70: #{tpu_custom_call.1} parent=11 // pred_check_branch
          %615 = sbr.rel (%p613) target = $region72
        $region71: #{tpu_custom_call.1} parent=11 // pred_region
          _
        $region72: #{tpu_custom_call.1} parent=11 // pred_fallthru
          _
        // Predicated region
        $region73: #{tpu_custom_call.1} parent=11 // pred_check
          %p616 = pneg %p446
        $region74: #{tpu_custom_call.1} parent=11 // pred_check_branch
          %618 = sbr.rel (%p616) target = $region76
        $region75: #{tpu_custom_call.1} parent=11 // pred_region
          _
        $region76: #{tpu_custom_call.1} parent=11 // pred_fallthru
          _
        // Predicated region
        $region77: #{tpu_custom_call.1} parent=11 // pred_check
          %p619 = pneg %p467
        $region78: #{tpu_custom_call.1} parent=11 // pred_check_branch
          %621 = sbr.rel (%p619) target = $region80
        $region79: #{tpu_custom_call.1} parent=11 // pred_region
          _
        $region80: #{tpu_custom_call.1} parent=11 // pred_fallthru
          _
        // Predicated region
        $region81: #{tpu_custom_call.1} parent=11 // pred_check
          %p622 = pneg %p488
        $region82: #{tpu_custom_call.1} parent=11 // pred_check_branch
          %624 = sbr.rel (%p622) target = $region84
        $region83: #{tpu_custom_call.1} parent=11 // pred_region
          _
        $region84: #{tpu_custom_call.1} parent=11 // pred_fallthru
          _
        // Predicated region
        $region85: #{tpu_custom_call.1} parent=11 // pred_check
          %p625 = pneg %p509
        $region86: #{tpu_custom_call.1} parent=11 // pred_check_branch
          %627 = sbr.rel (%p625) target = $region88
        $region87: #{tpu_custom_call.1} parent=11 // pred_region
          _
        $region88: #{tpu_custom_call.1} parent=11 // pred_fallthru
          _
        // Predicated region
        $region89: #{tpu_custom_call.1} parent=11 // pred_check
          %p628 = pneg %p530
        $region90: #{tpu_custom_call.1} parent=11 // pred_check_branch
          %630 = sbr.rel (%p628) target = $region92
        $region91: #{tpu_custom_call.1} parent=11 // pred_region
          _
        $region92: #{tpu_custom_call.1} parent=11 // pred_fallthru
          _
      $region12: #{tpu_custom_call.1} parent=5 // pred_fallthru
        _
      %p631 = scmp.lt.s32.totalorder %s32, 2
      // Predicated region
      $region93: #{tpu_custom_call.1} parent=5 // pred_check
        %p632 = pneg %p631
      $region94: #{tpu_custom_call.1} parent=5 // pred_check_branch
        %634 = sbr.rel (%p632) target = $region96
      $region95: #{tpu_custom_call.1} parent=5 // pred_region
        // Predicated region
        $region97: #{tpu_custom_call.1} parent=95 // pred_check
          %p635 = pneg %p52
        $region98: #{tpu_custom_call.1} parent=95 // pred_check_branch
          %637 = sbr.rel (%p635) target = $region100
        $region99: #{tpu_custom_call.1} parent=95 // pred_region
          %s638 = smul.u32 8, %s32
          %p639 = scmp.lt.s32.totalorder %s638, 15
          %s640 = scalar_select %p639, %s638, 15
          %s641 = smul.addr %s640, 8
          %s642 = scalar_lea.vmem %s0, %s641
          %s643 = smul.u32 8, %s32
        $region100: #{tpu_custom_call.1} parent=95 // pred_fallthru
          _
        // Predicated region
        $region101: #{tpu_custom_call.1} parent=95 // pred_check
          %p644 = pneg %p78
        $region102: #{tpu_custom_call.1} parent=95 // pred_check_branch
          %646 = sbr.rel (%p644) target = $region104
        $region103: #{tpu_custom_call.1} parent=95 // pred_region
          %p647 = scmp.lt.s32.totalorder %s32, 1
          %s648 = scalar_select %p647, %s32, 1
          %s649 = smul.addr %s648, 8
          %s650 = scalar_lea.vmem %s1, %s649
        $region104: #{tpu_custom_call.1} parent=95 // pred_fallthru
          _
        // Predicated region
        $region105: #{tpu_custom_call.1} parent=95 // pred_check
          %p651 = pneg %p104
        $region106: #{tpu_custom_call.1} parent=95 // pred_check_branch
          %653 = sbr.rel (%p651) target = $region108
        $region107: #{tpu_custom_call.1} parent=95 // pred_region
          %p654 = scmp.lt.s32.totalorder %s32, 1
          %s655 = scalar_select %p654, %s32, 1
          %s656 = smul.addr %s655, 8
          %s657 = scalar_lea.vmem %s2, %s656
        $region108: #{tpu_custom_call.1} parent=95 // pred_fallthru
          _
      $region96: #{tpu_custom_call.1} parent=5 // pred_fallthru
        _
      %p658 = scmp.le.s32.totalorder 1, %s32
      %p659 = scmp.lt.s32.totalorder %s32, 3
      %p660 = pnand %p658, %p659
      %p661 = pneg %p660
      // Predicated region
      $region109: #{tpu_custom_call.1} parent=5 // pred_check
        _
      $region110: #{tpu_custom_call.1} parent=5 // pred_check_branch
        %663 = sbr.rel (%p660) target = $region112
      $region111: #{tpu_custom_call.1} parent=5 // pred_region
        %s664 = ssub.s32 %s32, 1
        %s665 = smul.u32 8, %s37
        %p666 = scmp.lt.s32.totalorder %s665, 15
        %s667 = scalar_select %p666, %s665, 15
        %s668 = smul.addr %s667, 8
        %s669 = scalar_lea.vmem %s0, %s668
        %p670 = pneg %p58
        %p671 = pneg %p55
        %p672 = scmp.lt.s32.totalorder %s37, 1
        %s673 = scalar_select %p672, %s37, 1
        %s674 = smul.addr %s673, 8
        %s675 = scalar_lea.vmem %s1, %s674
        %p676 = pneg %p84
        %p677 = pneg %p81
        %p678 = scmp.lt.s32.totalorder %s37, 1
        %s679 = scalar_select %p678, %s37, 1
        %s680 = smul.addr %s679, 8
        %s681 = scalar_lea.vmem %s2, %s680
        %p682 = pneg %p110
        %p683 = pneg %p107
        %p684 = pneg %p131
        %p685 = pneg %p128
        %p686 = pneg %p152
        %p687 = pneg %p149
        %p688 = pneg %p173
        %p689 = pneg %p170
        %p690 = pneg %p194
        %p691 = pneg %p191
        %p692 = pneg %p215
        %p693 = pneg %p212
        %p694 = pneg %p236
        %p695 = pneg %p233
        %p696 = pneg %p257
        %p697 = pneg %p254
        %p698 = pneg %p278
        %p699 = pneg %p275
        %p700 = pneg %p299
        %p701 = pneg %p296
        %p702 = pneg %p320
        %p703 = pneg %p317
        %p704 = pneg %p341
        %p705 = pneg %p338
        %p706 = pneg %p362
        %p707 = pneg %p359
        %p708 = pneg %p383
        %p709 = pneg %p380
        %p710 = pneg %p404
        %p711 = pneg %p401
        %p712 = pneg %p425
        %p713 = pneg %p422
        %p714 = pneg %p446
        %p715 = pneg %p443
        %p716 = pneg %p467
        %p717 = pneg %p464
        %p718 = pneg %p488
        %p719 = pneg %p485
        %p720 = pneg %p509
        %p721 = pneg %p506
        %p722 = pneg %p530
        %p723 = pneg %p527
        %p724 = pneg %p556
        %p725 = pneg %p553
        %s726 = sand.u32 %s543, 1
        %s727 = scalar_lea.sflag [#allocation3], %s726
        %s728 = sand.u32 %s543, 1
        %s729 = smul.addr %s728, 8
        %s730 = scalar_lea.vmem [#allocation2], %s729
        %s731 = smul.u32 8, %s37
        %p732 = scmp.lt.s32.totalorder %s731, 15
        %s733 = scalar_select %p732, %s731, 15
        %s734 = smul.addr %s733, 8
        %s735 = scalar_lea.vmem %s0, %s734
        %s736 = smul.u32 8, %s37
        %p737 = scmp.lt.s32.totalorder %s37, 1
        %s738 = scalar_select %p737, %s37, 1
        %s739 = smul.addr %s738, 8
        %s740 = scalar_lea.vmem %s1, %s739
        %p741 = scmp.lt.s32.totalorder %s37, 1
        %s742 = scalar_select %p741, %s37, 1
        %s743 = smul.addr %s742, 8
        %s744 = scalar_lea.vmem %s2, %s743
        %v745 = vld [vmem:[%s735] sm:$0xff]
        %v746 = vld [vmem:[%s735 + $0x8] sm:$0xff]
        %v747 = vld [vmem:[%s735 + $0x10] sm:$0xff]
        %v748 = vld [vmem:[%s735 + $0x18] sm:$0xff]
        %v749 = vld [vmem:[%s735 + $0x20] sm:$0xff]
        %v750 = vld [vmem:[%s735 + $0x28] sm:$0xff]
        %v751 = vld [vmem:[%s735 + $0x30] sm:$0xff]
        %v752 = vld [vmem:[%s735 + $0x38] sm:$0xff]
        %v753 = vld [vmem:[%s740] sm:$0xff]
        %v754 = vld [vmem:[%s5] sm:$0xff]
        %v755 = vld [vmem:[%s5 + $0x8] sm:$0xff]
        %v756 = vld [vmem:[%s5 + $0x10] sm:$0xff]
        %v757 = vld [vmem:[%s5 + $0x18] sm:$0xff]
        %v758 = vld [vmem:[%s6] sm:$0x1]
        %v760 = vlaneseq
        %v761 = vshrl.u32 %v760, 7
        %v762 = vsub.s32 0, %v761
        %v763 = vrot.slane %v758, %v762
        %vm765 = vcmask 261120
        %v767 = vsel %vm765, %v753, 0
        %769 = vmatprep.subr.mxu0 0.0
        %770 = vmatpush1.msra.mxu0 %v754
        %771 = vmatprep.subr.mxu0 0.0
        %772 = vmatpush1.msra.mxu0 %v755
        %773 = vmatprep.subr.mxu0 0.0
        %774 = vmatpush1.msra.mxu0 %v756
        %775 = vmatprep.subr.mxu0 0.0
        %776 = vmatpush1.msra.mxu0 %v757
        %777 = vmatprep.subr.mxu0 0.0
        %778 = vmatpush1.msra.mxu0 0.0
        %779 = vmatprep.subr.mxu0 0.0
        %780 = vmatpush1.msra.mxu0 0.0
        %781 = vmatprep.subr.mxu0 0.0
        %782 = vmatpush1.msra.mxu0 0.0
        %783 = vmatprep.subr.mxu0 0.0
        %784 = vmatpush1.msra.mxu0 0.0
        %785 = vmatprep.subr.mxu0 0.0
        %786 = vmatpush1.msra.mxu0 0.0
        %787 = vmatprep.subr.mxu0 0.0
        %788 = vmatpush1.msra.mxu0 0.0
        %789 = vmatprep.subr.mxu0 0.0
        %790 = vmatpush1.msra.mxu0 0.0
        %791 = vmatprep.subr.mxu0 0.0
        %792 = vmatpush1.msra.mxu0 0.0
        %793 = vmatprep.subr.mxu0 0.0
        %794 = vmatpush1.msra.mxu0 0.0
        %795 = vmatprep.subr.mxu0 0.0
        %796 = vmatpush1.msra.mxu0 0.0
        %797 = vmatprep.subr.mxu0 0.0
        %798 = vmatpush1.msra.mxu0 0.0
        %799 = vmatprep.subr.mxu0 0.0
        %800 = vmatpush1.msra.mxu0 0.0
        %801 = vmatprep.subr.mxu0 0.0
        %802 = vmatpush1.msra.mxu0 0.0
        %803 = vmatprep.subr.mxu0 0.0
        %804 = vmatpush1.msra.mxu0 0.0
        %805 = vmatprep.subr.mxu0 0.0
        %806 = vmatpush1.msra.mxu0 0.0
        %807 = vmatprep.subr.mxu0 0.0
        %808 = vmatpush1.msra.mxu0 0.0
        %809 = vmatprep.subr.mxu0 0.0
        %810 = vmatpush1.msra.mxu0 0.0
        %811 = vmatprep.subr.mxu0 0.0
        %812 = vmatpush1.msra.mxu0 0.0
        %813 = vmatprep.subr.mxu0 0.0
        %814 = vmatpush1.msra.mxu0 0.0
        %815 = vmatprep.subr.mxu0 0.0
        %816 = vmatpush1.msra.mxu0 0.0
        %817 = vmatprep.subr.mxu0 0.0
        %818 = vmatpush1.msra.mxu0 0.0
        %819 = vmatprep.subr.mxu0 0.0
        %820 = vmatpush1.msra.mxu0 0.0
        %821 = vmatprep.subr.mxu0 0.0
        %822 = vmatpush1.msra.mxu0 0.0
        %823 = vmatprep.subr.mxu0 0.0
        %824 = vmatpush1.msra.mxu0 0.0
        %825 = vmatprep.subr.mxu0 0.0
        %826 = vmatpush1.msra.mxu0 0.0
        %827 = vmatprep.subr.mxu0 0.0
        %828 = vmatpush1.msra.mxu0 0.0
        %829 = vmatprep.subr.mxu0 0.0
        %830 = vmatpush1.msra.mxu0 0.0
        %831 = vmatprep.subr.mxu0 0.0
        %832 = vmatpush1.msra.mxu0 0.0
        %833 = vmatprep.mubr.f32.mxu0 0.0
        %834 = vmatmul.mubr.f32.gmra.mrb[0].mxu0 %v767
        %v835 = vpop.f32.mrb[0].mxu0
        %v836 = vadd.f32 %v763, %v835
        %v837 = vpop.f32.mrb[0].mxu0
        %838 = vdwg.mxu0
        %v839 = vld [vmem:[%s7] sm:$0xff]
        %v840 = vld [vmem:[%s7 + $0x8] sm:$0xff]
        %v841 = vld [vmem:[%s7 + $0x10] sm:$0xff]
        %v842 = vld [vmem:[%s7 + $0x18] sm:$0xff]
        %v843 = vld [vmem:[%s8] sm:$0x1]
        %v845 = vlaneseq
        %v846 = vshrl.u32 %v845, 7
        %v847 = vsub.s32 0, %v846
        %v848 = vrot.slane %v843, %v847
        %v851 = vsel %vm765, %v745, 0
        %v854 = vsel %vm765, %v746, 0
        %v857 = vsel %vm765, %v747, 0
        %v860 = vsel %vm765, %v748, 0
        %v863 = vsel %vm765, %v749, 0
        %v866 = vsel %vm765, %v750, 0
        %v869 = vsel %vm765, %v751, 0
        %v872 = vsel %vm765, %v752, 0
        %874 = vmatprep.subr.mxu0 0.0
        %875 = vmatpush1.msra.mxu0 %v839
        %876 = vmatprep.subr.mxu0 0.0
        %877 = vmatpush1.msra.mxu0 %v840
        %878 = vmatprep.subr.mxu0 0.0
        %879 = vmatpush1.msra.mxu0 %v841
        %880 = vmatprep.subr.mxu0 0.0
        %881 = vmatpush1.msra.mxu0 %v842
        %882 = vmatprep.subr.mxu0 0.0
        %883 = vmatpush1.msra.mxu0 0.0
        %884 = vmatprep.subr.mxu0 0.0
        %885 = vmatpush1.msra.mxu0 0.0
        %886 = vmatprep.subr.mxu0 0.0
        %887 = vmatpush1.msra.mxu0 0.0
        %888 = vmatprep.subr.mxu0 0.0
        %889 = vmatpush1.msra.mxu0 0.0
        %890 = vmatprep.subr.mxu0 0.0
        %891 = vmatpush1.msra.mxu0 0.0
        %892 = vmatprep.subr.mxu0 0.0
        %893 = vmatpush1.msra.mxu0 0.0
        %894 = vmatprep.subr.mxu0 0.0
        %895 = vmatpush1.msra.mxu0 0.0
        %896 = vmatprep.subr.mxu0 0.0
        %897 = vmatpush1.msra.mxu0 0.0
        %898 = vmatprep.subr.mxu0 0.0
        %899 = vmatpush1.msra.mxu0 0.0
        %900 = vmatprep.subr.mxu0 0.0
        %901 = vmatpush1.msra.mxu0 0.0
        %902 = vmatprep.subr.mxu0 0.0
        %903 = vmatpush1.msra.mxu0 0.0
        %904 = vmatprep.subr.mxu0 0.0
        %905 = vmatpush1.msra.mxu0 0.0
        %906 = vmatprep.subr.mxu0 0.0
        %907 = vmatpush1.msra.mxu0 0.0
        %908 = vmatprep.subr.mxu0 0.0
        %909 = vmatpush1.msra.mxu0 0.0
        %910 = vmatprep.subr.mxu0 0.0
        %911 = vmatpush1.msra.mxu0 0.0
        %912 = vmatprep.subr.mxu0 0.0
        %913 = vmatpush1.msra.mxu0 0.0
        %914 = vmatprep.subr.mxu0 0.0
        %915 = vmatpush1.msra.mxu0 0.0
        %916 = vmatprep.subr.mxu0 0.0
        %917 = vmatpush1.msra.mxu0 0.0
        %918 = vmatprep.subr.mxu0 0.0
        %919 = vmatpush1.msra.mxu0 0.0
        %920 = vmatprep.subr.mxu0 0.0
        %921 = vmatpush1.msra.mxu0 0.0
        %922 = vmatprep.subr.mxu0 0.0
        %923 = vmatpush1.msra.mxu0 0.0
        %924 = vmatprep.subr.mxu0 0.0
        %925 = vmatpush1.msra.mxu0 0.0
        %926 = vmatprep.subr.mxu0 0.0
        %927 = vmatpush1.msra.mxu0 0.0
        %928 = vmatprep.subr.mxu0 0.0
        %929 = vmatpush1.msra.mxu0 0.0
        %930 = vmatprep.subr.mxu0 0.0
        %931 = vmatpush1.msra.mxu0 0.0
        %932 = vmatprep.subr.mxu0 0.0
        %933 = vmatpush1.msra.mxu0 0.0
        %934 = vmatprep.subr.mxu0 0.0
        %935 = vmatpush1.msra.mxu0 0.0
        %936 = vmatprep.subr.mxu0 0.0
        %937 = vmatpush1.msra.mxu0 0.0
        %938 = vmatprep.mubr.f32.mxu0 0.0
        %939 = vmatmul.mubr.f32.gmra.mrb[0].mxu0 %v851
        %v940 = vpop.f32.mrb[0].mxu0
        %v941 = vadd.f32 %v848, %v940
        %v942 = vpop.f32.mrb[0].mxu0
        %943 = vmatprep.mubr.f32.mxu0 0.0
        %944 = vmatmul.mubr.f32.gmra.mrb[0].mxu0 %v854
        %v945 = vpop.f32.mrb[0].mxu0
        %v946 = vadd.f32 %v848, %v945
        %v947 = vpop.f32.mrb[0].mxu0
        %948 = vmatprep.mubr.f32.mxu0 0.0
        %949 = vmatmul.mubr.f32.gmra.mrb[0].mxu0 %v857
        %v950 = vpop.f32.mrb[0].mxu0
        %v951 = vadd.f32 %v848, %v950
        %v952 = vpop.f32.mrb[0].mxu0
        %953 = vmatprep.mubr.f32.mxu0 0.0
        %954 = vmatmul.mubr.f32.gmra.mrb[0].mxu0 %v860
        %v955 = vpop.f32.mrb[0].mxu0
        %v956 = vadd.f32 %v848, %v955
        %v957 = vpop.f32.mrb[0].mxu0
        %958 = vmatprep.mubr.f32.mxu0 0.0
        %959 = vmatmul.mubr.f32.gmra.mrb[0].mxu0 %v863
        %v960 = vpop.f32.mrb[0].mxu0
        %v961 = vadd.f32 %v848, %v960
        %v962 = vpop.f32.mrb[0].mxu0
        %963 = vmatprep.mubr.f32.mxu0 0.0
        %964 = vmatmul.mubr.f32.gmra.mrb[0].mxu0 %v866
        %v965 = vpop.f32.mrb[0].mxu0
        %v966 = vadd.f32 %v848, %v965
        %v967 = vpop.f32.mrb[0].mxu0
        %968 = vmatprep.mubr.f32.mxu0 0.0
        %969 = vmatmul.mubr.f32.gmra.mrb[0].mxu0 %v869
        %v970 = vpop.f32.mrb[0].mxu0
        %v971 = vadd.f32 %v848, %v970
        %v972 = vpop.f32.mrb[0].mxu0
        %973 = vmatprep.mubr.f32.mxu0 0.0
        %974 = vmatmul.mubr.f32.gmra.mrb[0].mxu0 %v872
        %v975 = vpop.f32.mrb[0].mxu0
        %v976 = vadd.f32 %v848, %v975
        %v977 = vpop.f32.mrb[0].mxu0
        %978 = vdwg.mxu0
        %v979 = vld [vmem:[%s9] sm:$0xff]
        %v980 = vld [vmem:[%s9 + $0x8] sm:$0xff]
        %v981 = vld [vmem:[%s9 + $0x10] sm:$0xff]
        %v982 = vld [vmem:[%s9 + $0x18] sm:$0xff]
        %v983 = vld [vmem:[%s10] sm:$0x1]
        %v985 = vlaneseq
        %v986 = vshrl.u32 %v985, 7
        %v987 = vsub.s32 0, %v986
        %v988 = vrot.slane %v983, %v987
        %990 = vmatprep.subr.mxu0 0.0
        %991 = vmatpush1.msra.mxu0 %v979
        %992 = vmatprep.subr.mxu0 0.0
        %993 = vmatpush1.msra.mxu0 %v980
        %994 = vmatprep.subr.mxu0 0.0
        %995 = vmatpush1.msra.mxu0 %v981
        %996 = vmatprep.subr.mxu0 0.0
        %997 = vmatpush1.msra.mxu0 %v982
        %998 = vmatprep.subr.mxu0 0.0
        %999 = vmatpush1.msra.mxu0 0.0
        %1000 = vmatprep.subr.mxu0 0.0
        %1001 = vmatpush1.msra.mxu0 0.0
        %1002 = vmatprep.subr.mxu0 0.0
        %1003 = vmatpush1.msra.mxu0 0.0
        %1004 = vmatprep.subr.mxu0 0.0
        %1005 = vmatpush1.msra.mxu0 0.0
        %1006 = vmatprep.subr.mxu0 0.0
        %1007 = vmatpush1.msra.mxu0 0.0
        %1008 = vmatprep.subr.mxu0 0.0
        %1009 = vmatpush1.msra.mxu0 0.0
        %1010 = vmatprep.subr.mxu0 0.0
        %1011 = vmatpush1.msra.mxu0 0.0
        %1012 = vmatprep.subr.mxu0 0.0
        %1013 = vmatpush1.msra.mxu0 0.0
        %1014 = vmatprep.subr.mxu0 0.0
        %1015 = vmatpush1.msra.mxu0 0.0
        %1016 = vmatprep.subr.mxu0 0.0
        %1017 = vmatpush1.msra.mxu0 0.0
        %1018 = vmatprep.subr.mxu0 0.0
        %1019 = vmatpush1.msra.mxu0 0.0
        %1020 = vmatprep.subr.mxu0 0.0
        %1021 = vmatpush1.msra.mxu0 0.0
        %1022 = vmatprep.subr.mxu0 0.0
        %1023 = vmatpush1.msra.mxu0 0.0
        %1024 = vmatprep.subr.mxu0 0.0
        %1025 = vmatpush1.msra.mxu0 0.0
        %1026 = vmatprep.subr.mxu0 0.0
        %1027 = vmatpush1.msra.mxu0 0.0
        %1028 = vmatprep.subr.mxu0 0.0
        %1029 = vmatpush1.msra.mxu0 0.0
        %1030 = vmatprep.subr.mxu0 0.0
        %1031 = vmatpush1.msra.mxu0 0.0
        %1032 = vmatprep.subr.mxu0 0.0
        %1033 = vmatpush1.msra.mxu0 0.0
        %1034 = vmatprep.subr.mxu0 0.0
        %1035 = vmatpush1.msra.mxu0 0.0
        %1036 = vmatprep.subr.mxu0 0.0
        %1037 = vmatpush1.msra.mxu0 0.0
        %1038 = vmatprep.subr.mxu0 0.0
        %1039 = vmatpush1.msra.mxu0 0.0
        %1040 = vmatprep.subr.mxu0 0.0
        %1041 = vmatpush1.msra.mxu0 0.0
        %1042 = vmatprep.subr.mxu0 0.0
        %1043 = vmatpush1.msra.mxu0 0.0
        %1044 = vmatprep.subr.mxu0 0.0
        %1045 = vmatpush1.msra.mxu0 0.0
        %1046 = vmatprep.subr.mxu0 0.0
        %1047 = vmatpush1.msra.mxu0 0.0
        %1048 = vmatprep.subr.mxu0 0.0
        %1049 = vmatpush1.msra.mxu0 0.0
        %1050 = vmatprep.subr.mxu0 0.0
        %1051 = vmatpush1.msra.mxu0 0.0
        %1052 = vmatprep.subr.mxu0 0.0
        %1053 = vmatpush1.msra.mxu0 0.0
        %1054 = vmatprep.mubr.f32.mxu0 0.0
        %1055 = vmatmul.mubr.f32.gmra.mrb[0].mxu0 %v851
        %v1056 = vpop.f32.mrb[0].mxu0
        %v1057 = vadd.f32 %v988, %v1056
        %v1058 = vpop.f32.mrb[0].mxu0
        %1059 = vmatprep.mubr.f32.mxu0 0.0
        %1060 = vmatmul.mubr.f32.gmra.mrb[0].mxu0 %v854
        %v1061 = vpop.f32.mrb[0].mxu0
        %v1062 = vadd.f32 %v988, %v1061
        %v1063 = vpop.f32.mrb[0].mxu0
        %1064 = vmatprep.mubr.f32.mxu0 0.0
        %1065 = vmatmul.mubr.f32.gmra.mrb[0].mxu0 %v857
        %v1066 = vpop.f32.mrb[0].mxu0
        %v1067 = vadd.f32 %v988, %v1066
        %v1068 = vpop.f32.mrb[0].mxu0
        %1069 = vmatprep.mubr.f32.mxu0 0.0
        %1070 = vmatmul.mubr.f32.gmra.mrb[0].mxu0 %v860
        %v1071 = vpop.f32.mrb[0].mxu0
        %v1072 = vadd.f32 %v988, %v1071
        %v1073 = vpop.f32.mrb[0].mxu0
        %1074 = vmatprep.mubr.f32.mxu0 0.0
        %1075 = vmatmul.mubr.f32.gmra.mrb[0].mxu0 %v863
        %v1076 = vpop.f32.mrb[0].mxu0
        %v1077 = vadd.f32 %v988, %v1076
        %v1078 = vpop.f32.mrb[0].mxu0
        %1079 = vmatprep.mubr.f32.mxu0 0.0
        %1080 = vmatmul.mubr.f32.gmra.mrb[0].mxu0 %v866
        %v1081 = vpop.f32.mrb[0].mxu0
        %v1082 = vadd.f32 %v988, %v1081
        %v1083 = vpop.f32.mrb[0].mxu0
        %1084 = vmatprep.mubr.f32.mxu0 0.0
        %1085 = vmatmul.mubr.f32.gmra.mrb[0].mxu0 %v869
        %v1086 = vpop.f32.mrb[0].mxu0
        %v1087 = vadd.f32 %v988, %v1086
        %v1088 = vpop.f32.mrb[0].mxu0
        %1089 = vmatprep.mubr.f32.mxu0 0.0
        %1090 = vmatmul.mubr.f32.gmra.mrb[0].mxu0 %v872
        %v1091 = vpop.f32.mrb[0].mxu0
        %v1092 = vadd.f32 %v988, %v1091
        %v1093 = vpop.f32.mrb[0].mxu0
        %1094 = vdwg.mxu0
        %v1096 = vcombine.high %v836, %v836
        %v1098 = vunpack.c.l.s4 1966171168
        %v1099 = vunpack.c.0.s8 %v1098
        %v1100 = vlaneseq
        %v1101 = vshrl.u32 %v1100, 7
        %v1102 = vsub.s32 %v1099, %v1101
        %v1103 = vrot.slane %v836, %v1102
        %v1105 = vunpack.c.l.s4 1966171168
        %v1106 = vunpack.c.0.s8 %v1105
        %v1107 = vlaneseq
        %v1108 = vshrl.u32 %v1107, 7
        %v1109 = vsub.s32 %v1106, %v1108
        %v1110 = vrot.slane %v1096, %v1109
        %v1111 = vcombine.high %v1103, %v1103
        %v1112 = vcombine.high %v1110, %v1110
        %v1114 = vunpack.c.l.s4 1966171168
        %v1115 = vunpack.c.0.s8 %v1114
        %v1116 = vlaneseq
        %v1117 = vshrl.u32 %v1116, 7
        %v1118 = vsub.s32 %v1115, %v1117
        %v1119 = vrot.slane %v1103, %v1118
        %v1121 = vunpack.c.l.s4 1966171168
        %v1122 = vunpack.c.0.s8 %v1121
        %v1123 = vlaneseq
        %v1124 = vshrl.u32 %v1123, 7
        %v1125 = vsub.s32 %v1122, %v1124
        %v1126 = vrot.slane %v1110, %v1125
        %v1128 = vunpack.c.l.s4 1966171168
        %v1129 = vunpack.c.0.s8 %v1128
        %v1130 = vlaneseq
        %v1131 = vshrl.u32 %v1130, 7
        %v1132 = vsub.s32 %v1129, %v1131
        %v1133 = vrot.slane %v1111, %v1132
        %v1135 = vunpack.c.l.s4 1966171168
        %v1136 = vunpack.c.0.s8 %v1135
        %v1137 = vlaneseq
        %v1138 = vshrl.u32 %v1137, 7
        %v1139 = vsub.s32 %v1136, %v1138
        %v1140 = vrot.slane %v1112, %v1139
        %v1141 = vcombine.high %v1119, %v1119
        %v1142 = vcombine.high %v1126, %v1126
        %v1143 = vcombine.high %v1133, %v1133
        %v1144 = vcombine.high %v1140, %v1140
        %v1145 = vlaneseq
        %v1146 = vshrl.u32 %v1145, 7
        %v1147 = vsub.s32 0, %v1146
        %v1148 = vrot.slane %v1119, %v1147
        %v1149 = vlaneseq
        %v1150 = vshrl.u32 %v1149, 7
        %v1151 = vsub.s32 0, %v1150
        %v1152 = vrot.slane %v1133, %v1151
        %v1153 = vlaneseq
        %v1154 = vshrl.u32 %v1153, 7
        %v1155 = vsub.s32 0, %v1154
        %v1156 = vrot.slane %v1141, %v1155
        %v1157 = vlaneseq
        %v1158 = vshrl.u32 %v1157, 7
        %v1159 = vsub.s32 0, %v1158
        %v1160 = vrot.slane %v1143, %v1159
        %v1161 = vlaneseq
        %v1162 = vshrl.u32 %v1161, 7
        %v1163 = vsub.s32 0, %v1162
        %v1164 = vrot.slane %v1126, %v1163
        %v1165 = vlaneseq
        %v1166 = vshrl.u32 %v1165, 7
        %v1167 = vsub.s32 0, %v1166
        %v1168 = vrot.slane %v1140, %v1167
        %v1169 = vlaneseq
        %v1170 = vshrl.u32 %v1169, 7
        %v1171 = vsub.s32 0, %v1170
        %v1172 = vrot.slane %v1142, %v1171
        %v1173 = vlaneseq
        %v1174 = vshrl.u32 %v1173, 7
        %v1175 = vsub.s32 0, %v1174
        %v1176 = vrot.slane %v1144, %v1175
        %v1185 = vmul.f32 %v1148, %v941
        %v1186 = vmul.f32 %v1152, %v946
        %v1187 = vmul.f32 %v1156, %v951
        %v1188 = vmul.f32 %v1160, %v956
        %v1189 = vmul.f32 %v1164, %v961
        %v1190 = vmul.f32 %v1168, %v966
        %v1191 = vmul.f32 %v1172, %v971
        %v1192 = vmul.f32 %v1176, %v976
        %v1193 = vld [vmem:[%s3] sm:$0xff]
        %v1194 = vld [vmem:[%s3 + $0x8] sm:$0xff]
        %v1195 = vld [vmem:[%s3 + $0x10] sm:$0xff]
        %v1196 = vld [vmem:[%s3 + $0x18] sm:$0xff]
        %v1198 = vsel %vm765, %v1185, 0
        %v1201 = vsel %vm765, %v1186, 0
        %v1204 = vsel %vm765, %v1187, 0
        %v1207 = vsel %vm765, %v1188, 0
        %v1210 = vsel %vm765, %v1189, 0
        %v1213 = vsel %vm765, %v1190, 0
        %v1216 = vsel %vm765, %v1191, 0
        %v1219 = vsel %vm765, %v1192, 0
        %1221 = vmatprep.subr.mxu0 0.0
        %1222 = vmatpush1.msra.mxu0 %v1193
        %1223 = vmatprep.subr.mxu0 0.0
        %1224 = vmatpush1.msra.mxu0 %v1194
        %1225 = vmatprep.subr.mxu0 0.0
        %1226 = vmatpush1.msra.mxu0 %v1195
        %1227 = vmatprep.subr.mxu0 0.0
        %1228 = vmatpush1.msra.mxu0 %v1196
        %1229 = vmatprep.subr.mxu0 0.0
        %1230 = vmatpush1.msra.mxu0 0.0
        %1231 = vmatprep.subr.mxu0 0.0
        %1232 = vmatpush1.msra.mxu0 0.0
        %1233 = vmatprep.subr.mxu0 0.0
        %1234 = vmatpush1.msra.mxu0 0.0
        %1235 = vmatprep.subr.mxu0 0.0
        %1236 = vmatpush1.msra.mxu0 0.0
        %1237 = vmatprep.subr.mxu0 0.0
        %1238 = vmatpush1.msra.mxu0 0.0
        %1239 = vmatprep.subr.mxu0 0.0
        %1240 = vmatpush1.msra.mxu0 0.0
        %1241 = vmatprep.subr.mxu0 0.0
        %1242 = vmatpush1.msra.mxu0 0.0
        %1243 = vmatprep.subr.mxu0 0.0
        %1244 = vmatpush1.msra.mxu0 0.0
        %1245 = vmatprep.subr.mxu0 0.0
        %1246 = vmatpush1.msra.mxu0 0.0
        %1247 = vmatprep.subr.mxu0 0.0
        %1248 = vmatpush1.msra.mxu0 0.0
        %1249 = vmatprep.subr.mxu0 0.0
        %1250 = vmatpush1.msra.mxu0 0.0
        %1251 = vmatprep.subr.mxu0 0.0
        %1252 = vmatpush1.msra.mxu0 0.0
        %1253 = vmatprep.subr.mxu0 0.0
        %1254 = vmatpush1.msra.mxu0 0.0
        %1255 = vmatprep.subr.mxu0 0.0
        %1256 = vmatpush1.msra.mxu0 0.0
        %1257 = vmatprep.subr.mxu0 0.0
        %1258 = vmatpush1.msra.mxu0 0.0
        %1259 = vmatprep.subr.mxu0 0.0
        %1260 = vmatpush1.msra.mxu0 0.0
        %1261 = vmatprep.subr.mxu0 0.0
        %1262 = vmatpush1.msra.mxu0 0.0
        %1263 = vmatprep.subr.mxu0 0.0
        %1264 = vmatpush1.msra.mxu0 0.0
        %1265 = vmatprep.subr.mxu0 0.0
        %1266 = vmatpush1.msra.mxu0 0.0
        %1267 = vmatprep.subr.mxu0 0.0
        %1268 = vmatpush1.msra.mxu0 0.0
        %1269 = vmatprep.subr.mxu0 0.0
        %1270 = vmatpush1.msra.mxu0 0.0
        %1271 = vmatprep.subr.mxu0 0.0
        %1272 = vmatpush1.msra.mxu0 0.0
        %1273 = vmatprep.subr.mxu0 0.0
        %1274 = vmatpush1.msra.mxu0 0.0
        %1275 = vmatprep.subr.mxu0 0.0
        %1276 = vmatpush1.msra.mxu0 0.0
        %1277 = vmatprep.subr.mxu0 0.0
        %1278 = vmatpush1.msra.mxu0 0.0
        %1279 = vmatprep.subr.mxu0 0.0
        %1280 = vmatpush1.msra.mxu0 0.0
        %1281 = vmatprep.subr.mxu0 0.0
        %1282 = vmatpush1.msra.mxu0 0.0
        %1283 = vmatprep.subr.mxu0 0.0
        %1284 = vmatpush1.msra.mxu0 0.0
        %1285 = vmatprep.mubr.f32.mxu0 0.0
        %1286 = vmatmul.mubr.f32.gmra.mrb[0].mxu0 %v1198
        %v1287 = vpop.f32.mrb[0].mxu0
        %v1288 = vadd.f32 0.0, %v1287
        %v1289 = vpop.f32.mrb[0].mxu0
        %1290 = vmatprep.mubr.f32.mxu0 0.0
        %1291 = vmatmul.mubr.f32.gmra.mrb[0].mxu0 %v1201
        %v1292 = vpop.f32.mrb[0].mxu0
        %v1293 = vadd.f32 0.0, %v1292
        %v1294 = vpop.f32.mrb[0].mxu0
        %1295 = vmatprep.mubr.f32.mxu0 0.0
        %1296 = vmatmul.mubr.f32.gmra.mrb[0].mxu0 %v1204
        %v1297 = vpop.f32.mrb[0].mxu0
        %v1298 = vadd.f32 0.0, %v1297
        %v1299 = vpop.f32.mrb[0].mxu0
        %1300 = vmatprep.mubr.f32.mxu0 0.0
        %1301 = vmatmul.mubr.f32.gmra.mrb[0].mxu0 %v1207
        %v1302 = vpop.f32.mrb[0].mxu0
        %v1303 = vadd.f32 0.0, %v1302
        %v1304 = vpop.f32.mrb[0].mxu0
        %1305 = vmatprep.mubr.f32.mxu0 0.0
        %1306 = vmatmul.mubr.f32.gmra.mrb[0].mxu0 %v1210
        %v1307 = vpop.f32.mrb[0].mxu0
        %v1308 = vadd.f32 0.0, %v1307
        %v1309 = vpop.f32.mrb[0].mxu0
        %1310 = vmatprep.mubr.f32.mxu0 0.0
        %1311 = vmatmul.mubr.f32.gmra.mrb[0].mxu0 %v1213
        %v1312 = vpop.f32.mrb[0].mxu0
        %v1313 = vadd.f32 0.0, %v1312
        %v1314 = vpop.f32.mrb[0].mxu0
        %1315 = vmatprep.mubr.f32.mxu0 0.0
        %1316 = vmatmul.mubr.f32.gmra.mrb[0].mxu0 %v1216
        %v1317 = vpop.f32.mrb[0].mxu0
        %v1318 = vadd.f32 0.0, %v1317
        %v1319 = vpop.f32.mrb[0].mxu0
        %1320 = vmatprep.mubr.f32.mxu0 0.0
        %1321 = vmatmul.mubr.f32.gmra.mrb[0].mxu0 %v1219
        %v1322 = vpop.f32.mrb[0].mxu0
        %v1323 = vadd.f32 0.0, %v1322
        %v1324 = vpop.f32.mrb[0].mxu0
        %1325 = vdwg.mxu0
        %v1326 = vmul.f32 %v1288, 0.5
        %v1327 = vmul.f32 %v1293, 0.5
        %v1328 = vmul.f32 %v1298, 0.5
        %v1329 = vmul.f32 %v1303, 0.5
        %v1330 = vmul.f32 %v1308, 0.5
        %v1331 = vmul.f32 %v1313, 0.5
        %v1332 = vmul.f32 %v1318, 0.5
        %v1333 = vmul.f32 %v1323, 0.5
        %vm1334 = vcmask 64512
        %v1335 = vsel %vm1334, %v1326, -inf
        %v1336 = vrot.slane %v1335, 4
        %v1337 = vmax.f32 %v1335, %v1336
        %v1338 = vrot.slane %v1337, 2
        %v1339 = vmax.f32 %v1337, %v1338
        %v1340 = vrot.slane %v1339, 1
        %v1341 = vmax.f32 %v1339, %v1340
        %v1342 = vsel %vm1334, %v1327, -inf
        %v1343 = vrot.slane %v1342, 4
        %v1344 = vmax.f32 %v1342, %v1343
        %v1345 = vrot.slane %v1344, 2
        %v1346 = vmax.f32 %v1344, %v1345
        %v1347 = vrot.slane %v1346, 1
        %v1348 = vmax.f32 %v1346, %v1347
        %v1349 = vsel %vm1334, %v1328, -inf
        %v1350 = vrot.slane %v1349, 4
        %v1351 = vmax.f32 %v1349, %v1350
        %v1352 = vrot.slane %v1351, 2
        %v1353 = vmax.f32 %v1351, %v1352
        %v1354 = vrot.slane %v1353, 1
        %v1355 = vmax.f32 %v1353, %v1354
        %v1356 = vsel %vm1334, %v1329, -inf
        %v1357 = vrot.slane %v1356, 4
        %v1358 = vmax.f32 %v1356, %v1357
        %v1359 = vrot.slane %v1358, 2
        %v1360 = vmax.f32 %v1358, %v1359
        %v1361 = vrot.slane %v1360, 1
        %v1362 = vmax.f32 %v1360, %v1361
        %v1363 = vsel %vm1334, %v1330, -inf
        %v1364 = vrot.slane %v1363, 4
        %v1365 = vmax.f32 %v1363, %v1364
        %v1366 = vrot.slane %v1365, 2
        %v1367 = vmax.f32 %v1365, %v1366
        %v1368 = vrot.slane %v1367, 1
        %v1369 = vmax.f32 %v1367, %v1368
        %v1370 = vsel %vm1334, %v1331, -inf
        %v1371 = vrot.slane %v1370, 4
        %v1372 = vmax.f32 %v1370, %v1371
        %v1373 = vrot.slane %v1372, 2
        %v1374 = vmax.f32 %v1372, %v1373
        %v1375 = vrot.slane %v1374, 1
        %v1376 = vmax.f32 %v1374, %v1375
        %v1377 = vsel %vm1334, %v1332, -inf
        %v1378 = vrot.slane %v1377, 4
        %v1379 = vmax.f32 %v1377, %v1378
        %v1380 = vrot.slane %v1379, 2
        %v1381 = vmax.f32 %v1379, %v1380
        %v1382 = vrot.slane %v1381, 1
        %v1383 = vmax.f32 %v1381, %v1382
        %v1384 = vsel %vm1334, %v1333, -inf
        %v1385 = vrot.slane %v1384, 4
        %v1386 = vmax.f32 %v1384, %v1385
        %v1387 = vrot.slane %v1386, 2
        %v1388 = vmax.f32 %v1386, %v1387
        %v1389 = vrot.slane %v1388, 1
        %v1390 = vmax.f32 %v1388, %v1389
        %v1391 = vsub.f32 %v1326, %v1341
        %v1392 = vsub.f32 %v1327, %v1348
        %v1393 = vsub.f32 %v1328, %v1355
        %v1394 = vsub.f32 %v1329, %v1362
        %v1395 = vsub.f32 %v1330, %v1369
        %v1396 = vsub.f32 %v1331, %v1376
        %v1397 = vsub.f32 %v1332, %v1383
        %v1398 = vsub.f32 %v1333, %v1390
        %v1399 = vmul.f32 %v1391, 1.442695
        %v1400 = vpow.pop %v1399
        %v1401 = vmul.f32 %v1392, 1.442695
        %v1402 = vpow.pop %v1401
        %v1403 = vmul.f32 %v1393, 1.442695
        %v1404 = vpow.pop %v1403
        %v1405 = vmul.f32 %v1394, 1.442695
        %v1406 = vpow.pop %v1405
        %v1407 = vmul.f32 %v1395, 1.442695
        %v1408 = vpow.pop %v1407
        %v1409 = vmul.f32 %v1396, 1.442695
        %v1410 = vpow.pop %v1409
        %v1411 = vmul.f32 %v1397, 1.442695
        %v1412 = vpow.pop %v1411
        %v1413 = vmul.f32 %v1398, 1.442695
        %v1414 = vpow.pop %v1413
        %v1415 = vsel %vm1334, %v1400, 0.0
        %v1416 = vrot.slane %v1415, 4
        %v1417 = vadd.f32 %v1415, %v1416
        %v1418 = vrot.slane %v1417, 2
        %v1419 = vadd.f32 %v1417, %v1418
        %v1420 = vrot.slane %v1419, 1
        %v1421 = vadd.f32 %v1419, %v1420
        %v1422 = vsel %vm1334, %v1402, 0.0
        %v1423 = vrot.slane %v1422, 4
        %v1424 = vadd.f32 %v1422, %v1423
        %v1425 = vrot.slane %v1424, 2
        %v1426 = vadd.f32 %v1424, %v1425
        %v1427 = vrot.slane %v1426, 1
        %v1428 = vadd.f32 %v1426, %v1427
        %v1429 = vsel %vm1334, %v1404, 0.0
        %v1430 = vrot.slane %v1429, 4
        %v1431 = vadd.f32 %v1429, %v1430
        %v1432 = vrot.slane %v1431, 2
        %v1433 = vadd.f32 %v1431, %v1432
        %v1434 = vrot.slane %v1433, 1
        %v1435 = vadd.f32 %v1433, %v1434
        %v1436 = vsel %vm1334, %v1406, 0.0
        %v1437 = vrot.slane %v1436, 4
        %v1438 = vadd.f32 %v1436, %v1437
        %v1439 = vrot.slane %v1438, 2
        %v1440 = vadd.f32 %v1438, %v1439
        %v1441 = vrot.slane %v1440, 1
        %v1442 = vadd.f32 %v1440, %v1441
        %v1443 = vsel %vm1334, %v1408, 0.0
        %v1444 = vrot.slane %v1443, 4
        %v1445 = vadd.f32 %v1443, %v1444
        %v1446 = vrot.slane %v1445, 2
        %v1447 = vadd.f32 %v1445, %v1446
        %v1448 = vrot.slane %v1447, 1
        %v1449 = vadd.f32 %v1447, %v1448
        %v1450 = vsel %vm1334, %v1410, 0.0
        %v1451 = vrot.slane %v1450, 4
        %v1452 = vadd.f32 %v1450, %v1451
        %v1453 = vrot.slane %v1452, 2
        %v1454 = vadd.f32 %v1452, %v1453
        %v1455 = vrot.slane %v1454, 1
        %v1456 = vadd.f32 %v1454, %v1455
        %v1457 = vsel %vm1334, %v1412, 0.0
        %v1458 = vrot.slane %v1457, 4
        %v1459 = vadd.f32 %v1457, %v1458
        %v1460 = vrot.slane %v1459, 2
        %v1461 = vadd.f32 %v1459, %v1460
        %v1462 = vrot.slane %v1461, 1
        %v1463 = vadd.f32 %v1461, %v1462
        %v1464 = vsel %vm1334, %v1414, 0.0
        %v1465 = vrot.slane %v1464, 4
        %v1466 = vadd.f32 %v1464, %v1465
        %v1467 = vrot.slane %v1466, 2
        %v1468 = vadd.f32 %v1466, %v1467
        %v1469 = vrot.slane %v1468, 1
        %v1470 = vadd.f32 %v1468, %v1469
        %v1471 = vrcp.pop %v1421
        %v1472 = vrcp.pop %v1428
        %v1473 = vrcp.pop %v1435
        %v1474 = vrcp.pop %v1442
        %v1475 = vrcp.pop %v1449
        %v1476 = vrcp.pop %v1456
        %v1477 = vrcp.pop %v1463
        %v1478 = vrcp.pop %v1470
        %v1479 = vmul.f32 %v1400, %v1471
        %v1480 = vmul.f32 %v1402, %v1472
        %v1481 = vmul.f32 %v1404, %v1473
        %v1482 = vmul.f32 %v1406, %v1474
        %v1483 = vmul.f32 %v1408, %v1475
        %v1484 = vmul.f32 %v1410, %v1476
        %v1485 = vmul.f32 %v1412, %v1477
        %v1486 = vmul.f32 %v1414, %v1478
        %v1487 = vld [vmem:[%s4] sm:$0xff]
        %v1489 = vsel %vm1334, %v1479, 0
        %v1492 = vsel %vm1334, %v1480, 0
        %v1495 = vsel %vm1334, %v1481, 0
        %v1498 = vsel %vm1334, %v1482, 0
        %v1501 = vsel %vm1334, %v1483, 0
        %v1504 = vsel %vm1334, %v1484, 0
        %v1507 = vsel %vm1334, %v1485, 0
        %v1510 = vsel %vm1334, %v1486, 0
        %1512 = vmatprep.subr.mxu0 0.0
        %1513 = vmatpush1.msra.mxu0 %v1487
        %1514 = vmatprep.subr.mxu0 0.0
        %1515 = vmatpush1.msra.mxu0 0.0
        %1516 = vmatprep.subr.mxu0 0.0
        %1517 = vmatpush1.msra.mxu0 0.0
        %1518 = vmatprep.subr.mxu0 0.0
        %1519 = vmatpush1.msra.mxu0 0.0
        %1520 = vmatprep.subr.mxu0 0.0
        %1521 = vmatpush1.msra.mxu0 0.0
        %1522 = vmatprep.subr.mxu0 0.0
        %1523 = vmatpush1.msra.mxu0 0.0
        %1524 = vmatprep.subr.mxu0 0.0
        %1525 = vmatpush1.msra.mxu0 0.0
        %1526 = vmatprep.subr.mxu0 0.0
        %1527 = vmatpush1.msra.mxu0 0.0
        %1528 = vmatprep.subr.mxu0 0.0
        %1529 = vmatpush1.msra.mxu0 0.0
        %1530 = vmatprep.subr.mxu0 0.0
        %1531 = vmatpush1.msra.mxu0 0.0
        %1532 = vmatprep.subr.mxu0 0.0
        %1533 = vmatpush1.msra.mxu0 0.0
        %1534 = vmatprep.subr.mxu0 0.0
        %1535 = vmatpush1.msra.mxu0 0.0
        %1536 = vmatprep.subr.mxu0 0.0
        %1537 = vmatpush1.msra.mxu0 0.0
        %1538 = vmatprep.subr.mxu0 0.0
        %1539 = vmatpush1.msra.mxu0 0.0
        %1540 = vmatprep.subr.mxu0 0.0
        %1541 = vmatpush1.msra.mxu0 0.0
        %1542 = vmatprep.subr.mxu0 0.0
        %1543 = vmatpush1.msra.mxu0 0.0
        %1544 = vmatprep.subr.mxu0 0.0
        %1545 = vmatpush1.msra.mxu0 0.0
        %1546 = vmatprep.subr.mxu0 0.0
        %1547 = vmatpush1.msra.mxu0 0.0
        %1548 = vmatprep.subr.mxu0 0.0
        %1549 = vmatpush1.msra.mxu0 0.0
        %1550 = vmatprep.subr.mxu0 0.0
        %1551 = vmatpush1.msra.mxu0 0.0
        %1552 = vmatprep.subr.mxu0 0.0
        %1553 = vmatpush1.msra.mxu0 0.0
        %1554 = vmatprep.subr.mxu0 0.0
        %1555 = vmatpush1.msra.mxu0 0.0
        %1556 = vmatprep.subr.mxu0 0.0
        %1557 = vmatpush1.msra.mxu0 0.0
        %1558 = vmatprep.subr.mxu0 0.0
        %1559 = vmatpush1.msra.mxu0 0.0
        %1560 = vmatprep.subr.mxu0 0.0
        %1561 = vmatpush1.msra.mxu0 0.0
        %1562 = vmatprep.subr.mxu0 0.0
        %1563 = vmatpush1.msra.mxu0 0.0
        %1564 = vmatprep.subr.mxu0 0.0
        %1565 = vmatpush1.msra.mxu0 0.0
        %1566 = vmatprep.subr.mxu0 0.0
        %1567 = vmatpush1.msra.mxu0 0.0
        %1568 = vmatprep.subr.mxu0 0.0
        %1569 = vmatpush1.msra.mxu0 0.0
        %1570 = vmatprep.subr.mxu0 0.0
        %1571 = vmatpush1.msra.mxu0 0.0
        %1572 = vmatprep.subr.mxu0 0.0
        %1573 = vmatpush1.msra.mxu0 0.0
        %1574 = vmatprep.subr.mxu0 0.0
        %1575 = vmatpush1.msra.mxu0 0.0
        %1576 = vmatprep.mubr.f32.mxu0 0.0
        %1577 = vmatmul.mubr.f32.gmra.mrb[0].mxu0 %v1489
        %v1578 = vpop.f32.mrb[0].mxu0
        %v1579 = vadd.f32 0.0, %v1578
        %v1580 = vpop.f32.mrb[0].mxu0
        %1581 = vmatprep.mubr.f32.mxu0 0.0
        %1582 = vmatmul.mubr.f32.gmra.mrb[0].mxu0 %v1492
        %v1583 = vpop.f32.mrb[0].mxu0
        %v1584 = vadd.f32 0.0, %v1583
        %v1585 = vpop.f32.mrb[0].mxu0
        %1586 = vmatprep.mubr.f32.mxu0 0.0
        %1587 = vmatmul.mubr.f32.gmra.mrb[0].mxu0 %v1495
        %v1588 = vpop.f32.mrb[0].mxu0
        %v1589 = vadd.f32 0.0, %v1588
        %v1590 = vpop.f32.mrb[0].mxu0
        %1591 = vmatprep.mubr.f32.mxu0 0.0
        %1592 = vmatmul.mubr.f32.gmra.mrb[0].mxu0 %v1498
        %v1593 = vpop.f32.mrb[0].mxu0
        %v1594 = vadd.f32 0.0, %v1593
        %v1595 = vpop.f32.mrb[0].mxu0
        %1596 = vmatprep.mubr.f32.mxu0 0.0
        %1597 = vmatmul.mubr.f32.gmra.mrb[0].mxu0 %v1501
        %v1598 = vpop.f32.mrb[0].mxu0
        %v1599 = vadd.f32 0.0, %v1598
        %v1600 = vpop.f32.mrb[0].mxu0
        %1601 = vmatprep.mubr.f32.mxu0 0.0
        %1602 = vmatmul.mubr.f32.gmra.mrb[0].mxu0 %v1504
        %v1603 = vpop.f32.mrb[0].mxu0
        %v1604 = vadd.f32 0.0, %v1603
        %v1605 = vpop.f32.mrb[0].mxu0
        %1606 = vmatprep.mubr.f32.mxu0 0.0
        %1607 = vmatmul.mubr.f32.gmra.mrb[0].mxu0 %v1507
        %v1608 = vpop.f32.mrb[0].mxu0
        %v1609 = vadd.f32 0.0, %v1608
        %v1610 = vpop.f32.mrb[0].mxu0
        %1611 = vmatprep.mubr.f32.mxu0 0.0
        %1612 = vmatmul.mubr.f32.gmra.mrb[0].mxu0 %v1510
        %v1613 = vpop.f32.mrb[0].mxu0
        %v1614 = vadd.f32 0.0, %v1613
        %v1615 = vpop.f32.mrb[0].mxu0
        %1616 = vdwg.mxu0
        %v1617 = vmul.f32 %v1579, %v1057
        %v1618 = vmul.f32 %v1584, %v1062
        %v1619 = vmul.f32 %v1589, %v1067
        %v1620 = vmul.f32 %v1594, %v1072
        %v1621 = vmul.f32 %v1599, %v1077
        %v1622 = vmul.f32 %v1604, %v1082
        %v1623 = vmul.f32 %v1609, %v1087
        %v1624 = vmul.f32 %v1614, %v1092
        %v1625 = vsel %vm765, %v1617, 0.0
        %v1626 = vrot.slane %v1625, 4
        %v1627 = vadd.f32 %v1625, %v1626
        %v1628 = vrot.slane %v1627, 2
        %v1629 = vadd.f32 %v1627, %v1628
        %v1630 = vrot.slane %v1629, 1
        %v1631 = vadd.f32 %v1629, %v1630
        %v1632 = vsel %vm765, %v1618, 0.0
        %v1633 = vrot.slane %v1632, 4
        %v1634 = vadd.f32 %v1632, %v1633
        %v1635 = vrot.slane %v1634, 2
        %v1636 = vadd.f32 %v1634, %v1635
        %v1637 = vrot.slane %v1636, 1
        %v1638 = vadd.f32 %v1636, %v1637
        %v1639 = vsel %vm765, %v1619, 0.0
        %v1640 = vrot.slane %v1639, 4
        %v1641 = vadd.f32 %v1639, %v1640
        %v1642 = vrot.slane %v1641, 2
        %v1643 = vadd.f32 %v1641, %v1642
        %v1644 = vrot.slane %v1643, 1
        %v1645 = vadd.f32 %v1643, %v1644
        %v1646 = vsel %vm765, %v1620, 0.0
        %v1647 = vrot.slane %v1646, 4
        %v1648 = vadd.f32 %v1646, %v1647
        %v1649 = vrot.slane %v1648, 2
        %v1650 = vadd.f32 %v1648, %v1649
        %v1651 = vrot.slane %v1650, 1
        %v1652 = vadd.f32 %v1650, %v1651
        %v1653 = vsel %vm765, %v1621, 0.0
        %v1654 = vrot.slane %v1653, 4
        %v1655 = vadd.f32 %v1653, %v1654
        %v1656 = vrot.slane %v1655, 2
        %v1657 = vadd.f32 %v1655, %v1656
        %v1658 = vrot.slane %v1657, 1
        %v1659 = vadd.f32 %v1657, %v1658
        %v1660 = vsel %vm765, %v1622, 0.0
        %v1661 = vrot.slane %v1660, 4
        %v1662 = vadd.f32 %v1660, %v1661
        %v1663 = vrot.slane %v1662, 2
        %v1664 = vadd.f32 %v1662, %v1663
        %v1665 = vrot.slane %v1664, 1
        %v1666 = vadd.f32 %v1664, %v1665
        %v1667 = vsel %vm765, %v1623, 0.0
        %v1668 = vrot.slane %v1667, 4
        %v1669 = vadd.f32 %v1667, %v1668
        %v1670 = vrot.slane %v1669, 2
        %v1671 = vadd.f32 %v1669, %v1670
        %v1672 = vrot.slane %v1671, 1
        %v1673 = vadd.f32 %v1671, %v1672
        %v1674 = vsel %vm765, %v1624, 0.0
        %v1675 = vrot.slane %v1674, 4
        %v1676 = vadd.f32 %v1674, %v1675
        %v1677 = vrot.slane %v1676, 2
        %v1678 = vadd.f32 %v1676, %v1677
        %v1679 = vrot.slane %v1678, 1
        %v1680 = vadd.f32 %v1678, %v1679
        %v1681 = vld [vmem:[%s11] sm:$0xff]
        %v1682 = vld [vmem:[%s11 + $0x8] sm:$0xff]
        %v1683 = vld [vmem:[%s11 + $0x10] sm:$0xff]
        %v1684 = vld [vmem:[%s11 + $0x18] sm:$0xff]
        %v1685 = vld [vmem:[%s12] sm:$0x1]
        %v1687 = vlaneseq
        %v1688 = vshrl.u32 %v1687, 7
        %v1689 = vsub.s32 0, %v1688
        %v1690 = vrot.slane %v1685, %v1689
        %vm1700 = vcmask 1041409
        %v1701 = vsel %vm1700, %v1638, %v1631
        %vm1702 = vcmask 1042434
        %v1703 = vsel %vm1702, %v1645, %v1701
        %vm1704 = vcmask 1043459
        %v1705 = vsel %vm1704, %v1652, %v1703
        %vm1706 = vcmask 1044484
        %v1707 = vsel %vm1706, %v1659, %v1705
        %vm1708 = vcmask 1045509
        %v1709 = vsel %vm1708, %v1666, %v1707
        %vm1710 = vcmask 1046534
        %v1711 = vsel %vm1710, %v1673, %v1709
        %vm1712 = vcmask 1047559
        %v1713 = vsel %vm1712, %v1680, %v1711
        %v1714 = vsel %vm765, %v1713, 0
        %1716 = vmatprep.subr.mxu0 0.0
        %1717 = vmatpush1.msra.mxu0 %v1681
        %1718 = vmatprep.subr.mxu0 0.0
        %1719 = vmatpush1.msra.mxu0 %v1682
        %1720 = vmatprep.subr.mxu0 0.0
        %1721 = vmatpush1.msra.mxu0 %v1683
        %1722 = vmatprep.subr.mxu0 0.0
        %1723 = vmatpush1.msra.mxu0 %v1684
        %1724 = vmatprep.subr.mxu0 0.0
        %1725 = vmatpush1.msra.mxu0 0.0
        %1726 = vmatprep.subr.mxu0 0.0
        %1727 = vmatpush1.msra.mxu0 0.0
        %1728 = vmatprep.subr.mxu0 0.0
        %1729 = vmatpush1.msra.mxu0 0.0
        %1730 = vmatprep.subr.mxu0 0.0
        %1731 = vmatpush1.msra.mxu0 0.0
        %1732 = vmatprep.subr.mxu0 0.0
        %1733 = vmatpush1.msra.mxu0 0.0
        %1734 = vmatprep.subr.mxu0 0.0
        %1735 = vmatpush1.msra.mxu0 0.0
        %1736 = vmatprep.subr.mxu0 0.0
        %1737 = vmatpush1.msra.mxu0 0.0
        %1738 = vmatprep.subr.mxu0 0.0
        %1739 = vmatpush1.msra.mxu0 0.0
        %1740 = vmatprep.subr.mxu0 0.0
        %1741 = vmatpush1.msra.mxu0 0.0
        %1742 = vmatprep.subr.mxu0 0.0
        %1743 = vmatpush1.msra.mxu0 0.0
        %1744 = vmatprep.subr.mxu0 0.0
        %1745 = vmatpush1.msra.mxu0 0.0
        %1746 = vmatprep.subr.mxu0 0.0
        %1747 = vmatpush1.msra.mxu0 0.0
        %1748 = vmatprep.subr.mxu0 0.0
        %1749 = vmatpush1.msra.mxu0 0.0
        %1750 = vmatprep.subr.mxu0 0.0
        %1751 = vmatpush1.msra.mxu0 0.0
        %1752 = vmatprep.subr.mxu0 0.0
        %1753 = vmatpush1.msra.mxu0 0.0
        %1754 = vmatprep.subr.mxu0 0.0
        %1755 = vmatpush1.msra.mxu0 0.0
        %1756 = vmatprep.subr.mxu0 0.0
        %1757 = vmatpush1.msra.mxu0 0.0
        %1758 = vmatprep.subr.mxu0 0.0
        %1759 = vmatpush1.msra.mxu0 0.0
        %1760 = vmatprep.subr.mxu0 0.0
        %1761 = vmatpush1.msra.mxu0 0.0
        %1762 = vmatprep.subr.mxu0 0.0
        %1763 = vmatpush1.msra.mxu0 0.0
        %1764 = vmatprep.subr.mxu0 0.0
        %1765 = vmatpush1.msra.mxu0 0.0
        %1766 = vmatprep.subr.mxu0 0.0
        %1767 = vmatpush1.msra.mxu0 0.0
        %1768 = vmatprep.subr.mxu0 0.0
        %1769 = vmatpush1.msra.mxu0 0.0
        %1770 = vmatprep.subr.mxu0 0.0
        %1771 = vmatpush1.msra.mxu0 0.0
        %1772 = vmatprep.subr.mxu0 0.0
        %1773 = vmatpush1.msra.mxu0 0.0
        %1774 = vmatprep.subr.mxu0 0.0
        %1775 = vmatpush1.msra.mxu0 0.0
        %1776 = vmatprep.subr.mxu0 0.0
        %1777 = vmatpush1.msra.mxu0 0.0
        %1778 = vmatprep.subr.mxu0 0.0
        %1779 = vmatpush1.msra.mxu0 0.0
        %1780 = vmatprep.mubr.f32.mxu0 0.0
        %1781 = vmatmul.mubr.f32.gmra.mrb[0].mxu0 %v1714
        %v1782 = vpop.f32.mrb[0].mxu0
        %v1783 = vadd.f32 %v1690, %v1782
        %v1784 = vpop.f32.mrb[0].mxu0
        %1785 = vdwg.mxu0
        %v1786 = vadd.f32 %v753, %v1783
        %v1787 = vld [vmem:[%s13] sm:$0x1]
        %v1788 = vld [vmem:[%s14] sm:$0x1]
        %v1789 = vsel %vm765, %v1786, 0.0
        %1790 = vadd.xlane.f32.xlu0 %v1789
        %v1791 = vpop.xlane.xlu0 %1790
        %v1792 = vrcp.pop 32.0
        %v1793 = vmul.f32 %v1791, %v1792
        %v1794 = vsub.f32 %v1786, %v1793
        %v1795 = vmul.f32 %v1794, %v1794
        %v1796 = vsel %vm765, %v1795, 0.0
        %1797 = vadd.xlane.f32.xlu0 %v1796
        %v1798 = vpop.xlane.xlu0 %1797
        %v1799 = vmul.f32 %v1798, %v1792
        %v1800 = vadd.f32 %v1799, 1e-05
        %v1801 = vrsqrt.pop %v1800
        %v1802 = vmul.f32 %v1794, %v1801
        %v1804 = vlaneseq
        %v1805 = vshrl.u32 %v1804, 7
        %v1806 = vsub.s32 0, %v1805
        %v1807 = vrot.slane %v1787, %v1806
        %v1809 = vmul.f32 %v1802, %v1807
        %v1811 = vlaneseq
        %v1812 = vshrl.u32 %v1811, 7
        %v1813 = vsub.s32 0, %v1812
        %v1814 = vrot.slane %v1788, %v1813
        %v1816 = vadd.f32 %v1809, %v1814
        %v1817 = vld [vmem:[%s15] sm:$0xff]
        %v1818 = vld [vmem:[%s15 + $0x8] sm:$0xff]
        %v1819 = vld [vmem:[%s15 + $0x10] sm:$0xff]
        %v1820 = vld [vmem:[%s15 + $0x18] sm:$0xff]
        %v1821 = vld [vmem:[%s15 + $0x20] sm:$0xff]
        %v1822 = vld [vmem:[%s15 + $0x28] sm:$0xff]
        %v1823 = vld [vmem:[%s15 + $0x30] sm:$0xff]
        %v1824 = vld [vmem:[%s15 + $0x38] sm:$0xff]
        %v1825 = vld [vmem:[%s15 + $0x40] sm:$0xff]
        %v1826 = vld [vmem:[%s15 + $0x48] sm:$0xff]
        %v1827 = vld [vmem:[%s15 + $0x50] sm:$0xff]
        %v1828 = vld [vmem:[%s15 + $0x58] sm:$0xff]
        %v1829 = vld [vmem:[%s15 + $0x60] sm:$0xff]
        %v1830 = vld [vmem:[%s15 + $0x68] sm:$0xff]
        %v1831 = vld [vmem:[%s15 + $0x70] sm:$0xff]
        %v1832 = vld [vmem:[%s15 + $0x78] sm:$0xff]
        %v1833 = vld [vmem:[%s16] sm:$0xf]
        %v1835 = vlaneseq
        %v1836 = vshrl.u32 %v1835, 7
        %v1837 = vsub.s32 0, %v1836
        %v1838 = vrot.slane %v1833, %v1837
        %v1839 = vlaneseq
        %v1840 = vshrl.u32 %v1839, 7
        %v1841 = vsub.s32 1, %v1840
        %v1842 = vrot.slane %v1833, %v1841
        %v1843 = vlaneseq
        %v1844 = vshrl.u32 %v1843, 7
        %v1845 = vsub.s32 2, %v1844
        %v1846 = vrot.slane %v1833, %v1845
        %v1847 = vlaneseq
        %v1848 = vshrl.u32 %v1847, 7
        %v1849 = vsub.s32 3, %v1848
        %v1850 = vrot.slane %v1833, %v1849
        %v1856 = vsel %vm765, %v1816, 0
        %1858 = vmatprep.subr.mxu0 %v1818
        %1859 = vmatpush1.msra.mxu0 %v1817
        %1860 = vmatprep.subr.mxu0 %v1822
        %1861 = vmatpush1.msra.mxu0 %v1821
        %1862 = vmatprep.subr.mxu0 %v1826
        %1863 = vmatpush1.msra.mxu0 %v1825
        %1864 = vmatprep.subr.mxu0 %v1830
        %1865 = vmatpush1.msra.mxu0 %v1829
        %1866 = vmatprep.subr.mxu0 0.0
        %1867 = vmatpush1.msra.mxu0 0.0
        %1868 = vmatprep.subr.mxu0 0.0
        %1869 = vmatpush1.msra.mxu0 0.0
        %1870 = vmatprep.subr.mxu0 0.0
        %1871 = vmatpush1.msra.mxu0 0.0
        %1872 = vmatprep.subr.mxu0 0.0
        %1873 = vmatpush1.msra.mxu0 0.0
        %1874 = vmatprep.subr.mxu0 0.0
        %1875 = vmatpush1.msra.mxu0 0.0
        %1876 = vmatprep.subr.mxu0 0.0
        %1877 = vmatpush1.msra.mxu0 0.0
        %1878 = vmatprep.subr.mxu0 0.0
        %1879 = vmatpush1.msra.mxu0 0.0
        %1880 = vmatprep.subr.mxu0 0.0
        %1881 = vmatpush1.msra.mxu0 0.0
        %1882 = vmatprep.subr.mxu0 0.0
        %1883 = vmatpush1.msra.mxu0 0.0
        %1884 = vmatprep.subr.mxu0 0.0
        %1885 = vmatpush1.msra.mxu0 0.0
        %1886 = vmatprep.subr.mxu0 0.0
        %1887 = vmatpush1.msra.mxu0 0.0
        %1888 = vmatprep.subr.mxu0 0.0
        %1889 = vmatpush1.msra.mxu0 0.0
        %1890 = vmatprep.subr.mxu0 0.0
        %1891 = vmatpush1.msra.mxu0 0.0
        %1892 = vmatprep.subr.mxu0 0.0
        %1893 = vmatpush1.msra.mxu0 0.0
        %1894 = vmatprep.subr.mxu0 0.0
        %1895 = vmatpush1.msra.mxu0 0.0
        %1896 = vmatprep.subr.mxu0 0.0
        %1897 = vmatpush1.msra.mxu0 0.0
        %1898 = vmatprep.subr.mxu0 0.0
        %1899 = vmatpush1.msra.mxu0 0.0
        %1900 = vmatprep.subr.mxu0 0.0
        %1901 = vmatpush1.msra.mxu0 0.0
        %1902 = vmatprep.subr.mxu0 0.0
        %1903 = vmatpush1.msra.mxu0 0.0
        %1904 = vmatprep.subr.mxu0 0.0
        %1905 = vmatpush1.msra.mxu0 0.0
        %1906 = vmatprep.subr.mxu0 0.0
        %1907 = vmatpush1.msra.mxu0 0.0
        %1908 = vmatprep.subr.mxu0 0.0
        %1909 = vmatpush1.msra.mxu0 0.0
        %1910 = vmatprep.subr.mxu0 0.0
        %1911 = vmatpush1.msra.mxu0 0.0
        %1912 = vmatprep.subr.mxu0 0.0
        %1913 = vmatpush1.msra.mxu0 0.0
        %1914 = vmatprep.subr.mxu0 0.0
        %1915 = vmatpush1.msra.mxu0 0.0
        %1916 = vmatprep.subr.mxu0 0.0
        %1917 = vmatpush1.msra.mxu0 0.0
        %1918 = vmatprep.subr.mxu0 0.0
        %1919 = vmatpush1.msra.mxu0 0.0
        %1920 = vmatprep.subr.mxu0 0.0
        %1921 = vmatpush1.msra.mxu0 0.0
        %1922 = vmatprep.mubr.f32.mxu0 0.0
        %1923 = vmatmul.mubr.f32.gmra.mrb[0].mxu0 %v1856
        %v1924 = vpop.f32.mrb[0].mxu0
        %v1925 = vadd.f32 %v1838, %v1924
        %v1926 = vpop.f32.mrb[0].mxu0
        %v1927 = vadd.f32 %v1842, %v1926
        %1928 = vdwg.mxu0
        %1929 = vmatprep.subr.mxu0 %v1820
        %1930 = vmatpush1.msra.mxu0 %v1819
        %1931 = vmatprep.subr.mxu0 %v1824
        %1932 = vmatpush1.msra.mxu0 %v1823
        %1933 = vmatprep.subr.mxu0 %v1828
        %1934 = vmatpush1.msra.mxu0 %v1827
        %1935 = vmatprep.subr.mxu0 %v1832
        %1936 = vmatpush1.msra.mxu0 %v1831
        %1937 = vmatprep.subr.mxu0 0.0
        %1938 = vmatpush1.msra.mxu0 0.0
        %1939 = vmatprep.subr.mxu0 0.0
        %1940 = vmatpush1.msra.mxu0 0.0
        %1941 = vmatprep.subr.mxu0 0.0
        %1942 = vmatpush1.msra.mxu0 0.0
        %1943 = vmatprep.subr.mxu0 0.0
        %1944 = vmatpush1.msra.mxu0 0.0
        %1945 = vmatprep.subr.mxu0 0.0
        %1946 = vmatpush1.msra.mxu0 0.0
        %1947 = vmatprep.subr.mxu0 0.0
        %1948 = vmatpush1.msra.mxu0 0.0
        %1949 = vmatprep.subr.mxu0 0.0
        %1950 = vmatpush1.msra.mxu0 0.0
        %1951 = vmatprep.subr.mxu0 0.0
        %1952 = vmatpush1.msra.mxu0 0.0
        %1953 = vmatprep.subr.mxu0 0.0
        %1954 = vmatpush1.msra.mxu0 0.0
        %1955 = vmatprep.subr.mxu0 0.0
        %1956 = vmatpush1.msra.mxu0 0.0
        %1957 = vmatprep.subr.mxu0 0.0
        %1958 = vmatpush1.msra.mxu0 0.0
        %1959 = vmatprep.subr.mxu0 0.0
        %1960 = vmatpush1.msra.mxu0 0.0
        %1961 = vmatprep.subr.mxu0 0.0
        %1962 = vmatpush1.msra.mxu0 0.0
        %1963 = vmatprep.subr.mxu0 0.0
        %1964 = vmatpush1.msra.mxu0 0.0
        %1965 = vmatprep.subr.mxu0 0.0
        %1966 = vmatpush1.msra.mxu0 0.0
        %1967 = vmatprep.subr.mxu0 0.0
        %1968 = vmatpush1.msra.mxu0 0.0
        %1969 = vmatprep.subr.mxu0 0.0
        %1970 = vmatpush1.msra.mxu0 0.0
        %1971 = vmatprep.subr.mxu0 0.0
        %1972 = vmatpush1.msra.mxu0 0.0
        %1973 = vmatprep.subr.mxu0 0.0
        %1974 = vmatpush1.msra.mxu0 0.0
        %1975 = vmatprep.subr.mxu0 0.0
        %1976 = vmatpush1.msra.mxu0 0.0
        %1977 = vmatprep.subr.mxu0 0.0
        %1978 = vmatpush1.msra.mxu0 0.0
        %1979 = vmatprep.subr.mxu0 0.0
        %1980 = vmatpush1.msra.mxu0 0.0
        %1981 = vmatprep.subr.mxu0 0.0
        %1982 = vmatpush1.msra.mxu0 0.0
        %1983 = vmatprep.subr.mxu0 0.0
        %1984 = vmatpush1.msra.mxu0 0.0
        %1985 = vmatprep.subr.mxu0 0.0
        %1986 = vmatpush1.msra.mxu0 0.0
        %1987 = vmatprep.subr.mxu0 0.0
        %1988 = vmatpush1.msra.mxu0 0.0
        %1989 = vmatprep.subr.mxu0 0.0
        %1990 = vmatpush1.msra.mxu0 0.0
        %1991 = vmatprep.subr.mxu0 0.0
        %1992 = vmatpush1.msra.mxu0 0.0
        %1993 = vmatprep.mubr.f32.mxu0 0.0
        %1994 = vmatmul.mubr.f32.gmra.mrb[0].mxu0 %v1856
        %v1995 = vpop.f32.mrb[0].mxu0
        %v1996 = vadd.f32 %v1846, %v1995
        %v1997 = vpop.f32.mrb[0].mxu0
        %v1998 = vadd.f32 %v1850, %v1997
        %1999 = vdwg.mxu0
        %v2000 = vmax.f32 %v1925, 0.0
        %v2001 = vmax.f32 %v1927, 0.0
        %v2002 = vmax.f32 %v1996, 0.0
        %v2003 = vmax.f32 %v1998, 0.0
        %v2004 = vld [vmem:[%s17] sm:$0xff]
        %v2005 = vld [vmem:[%s17 + $0x8] sm:$0xff]
        %v2006 = vld [vmem:[%s17 + $0x10] sm:$0xff]
        %v2007 = vld [vmem:[%s17 + $0x18] sm:$0xff]
        %v2008 = vld [vmem:[%s17 + $0x20] sm:$0xff]
        %v2009 = vld [vmem:[%s17 + $0x28] sm:$0xff]
        %v2010 = vld [vmem:[%s17 + $0x30] sm:$0xff]
        %v2011 = vld [vmem:[%s17 + $0x38] sm:$0xff]
        %v2012 = vld [vmem:[%s17 + $0x40] sm:$0xff]
        %v2013 = vld [vmem:[%s17 + $0x48] sm:$0xff]
        %v2014 = vld [vmem:[%s17 + $0x50] sm:$0xff]
        %v2015 = vld [vmem:[%s17 + $0x58] sm:$0xff]
        %v2016 = vld [vmem:[%s17 + $0x60] sm:$0xff]
        %v2017 = vld [vmem:[%s17 + $0x68] sm:$0xff]
        %v2018 = vld [vmem:[%s17 + $0x70] sm:$0xff]
        %v2019 = vld [vmem:[%s17 + $0x78] sm:$0xff]
        %v2020 = vld [vmem:[%s17 + $0x80] sm:$0xff]
        %v2021 = vld [vmem:[%s17 + $0x88] sm:$0xff]
        %v2022 = vld [vmem:[%s17 + $0x90] sm:$0xff]
        %v2023 = vld [vmem:[%s17 + $0x98] sm:$0xff]
        %v2024 = vld [vmem:[%s17 + $0xa0] sm:$0xff]
        %v2025 = vld [vmem:[%s17 + $0xa8] sm:$0xff]
        %v2026 = vld [vmem:[%s17 + $0xb0] sm:$0xff]
        %v2027 = vld [vmem:[%s17 + $0xb8] sm:$0xff]
        %v2028 = vld [vmem:[%s17 + $0xc0] sm:$0xff]
        %v2029 = vld [vmem:[%s17 + $0xc8] sm:$0xff]
        %v2030 = vld [vmem:[%s17 + $0xd0] sm:$0xff]
        %v2031 = vld [vmem:[%s17 + $0xd8] sm:$0xff]
        %v2032 = vld [vmem:[%s17 + $0xe0] sm:$0xff]
        %v2033 = vld [vmem:[%s17 + $0xe8] sm:$0xff]
        %v2034 = vld [vmem:[%s17 + $0xf0] sm:$0xff]
        %v2035 = vld [vmem:[%s17 + $0xf8] sm:$0xff]
        %v2036 = vld [vmem:[%s17 + $0x100] sm:$0xff]
        %v2037 = vld [vmem:[%s17 + $0x108] sm:$0xff]
        %v2038 = vld [vmem:[%s17 + $0x110] sm:$0xff]
        %v2039 = vld [vmem:[%s17 + $0x118] sm:$0xff]
        %v2040 = vld [vmem:[%s17 + $0x120] sm:$0xff]
        %v2041 = vld [vmem:[%s17 + $0x128] sm:$0xff]
        %v2042 = vld [vmem:[%s17 + $0x130] sm:$0xff]
        %v2043 = vld [vmem:[%s17 + $0x138] sm:$0xff]
        %v2044 = vld [vmem:[%s17 + $0x140] sm:$0xff]
        %v2045 = vld [vmem:[%s17 + $0x148] sm:$0xff]
        %v2046 = vld [vmem:[%s17 + $0x150] sm:$0xff]
        %v2047 = vld [vmem:[%s17 + $0x158] sm:$0xff]
        %v2048 = vld [vmem:[%s17 + $0x160] sm:$0xff]
        %v2049 = vld [vmem:[%s17 + $0x168] sm:$0xff]
        %v2050 = vld [vmem:[%s17 + $0x170] sm:$0xff]
        %v2051 = vld [vmem:[%s17 + $0x178] sm:$0xff]
        %v2052 = vld [vmem:[%s17 + $0x180] sm:$0xff]
        %v2053 = vld [vmem:[%s17 + $0x188] sm:$0xff]
        %v2054 = vld [vmem:[%s17 + $0x190] sm:$0xff]
        %v2055 = vld [vmem:[%s17 + $0x198] sm:$0xff]
        %v2056 = vld [vmem:[%s17 + $0x1a0] sm:$0xff]
        %v2057 = vld [vmem:[%s17 + $0x1a8] sm:$0xff]
        %v2058 = vld [vmem:[%s17 + $0x1b0] sm:$0xff]
        %v2059 = vld [vmem:[%s17 + $0x1b8] sm:$0xff]
        %v2060 = vld [vmem:[%s17 + $0x1c0] sm:$0xff]
        %v2061 = vld [vmem:[%s17 + $0x1c8] sm:$0xff]
        %v2062 = vld [vmem:[%s17 + $0x1d0] sm:$0xff]
        %v2063 = vld [vmem:[%s17 + $0x1d8] sm:$0xff]
        %v2064 = vld [vmem:[%s17 + $0x1e0] sm:$0xff]
        %v2065 = vld [vmem:[%s17 + $0x1e8] sm:$0xff]
        %v2066 = vld [vmem:[%s17 + $0x1f0] sm:$0xff]
        %v2067 = vld [vmem:[%s17 + $0x1f8] sm:$0xff]
        %v2068 = vld [vmem:[%s18] sm:$0x1]
        %v2070 = vlaneseq
        %v2071 = vshrl.u32 %v2070, 7
        %v2072 = vsub.s32 0, %v2071
        %v2073 = vrot.slane %v2068, %v2072
        %2075 = vmatprep.subr.mxu0 0.0
        %2076 = vmatpush1.msra.mxu0 %v2004
        %2077 = vmatprep.subr.mxu0 0.0
        %2078 = vmatpush1.msra.mxu0 %v2005
        %2079 = vmatprep.subr.mxu0 0.0
        %2080 = vmatpush1.msra.mxu0 %v2006
        %2081 = vmatprep.subr.mxu0 0.0
        %2082 = vmatpush1.msra.mxu0 %v2007
        %2083 = vmatprep.subr.mxu0 0.0
        %2084 = vmatpush1.msra.mxu0 %v2008
        %2085 = vmatprep.subr.mxu0 0.0
        %2086 = vmatpush1.msra.mxu0 %v2009
        %2087 = vmatprep.subr.mxu0 0.0
        %2088 = vmatpush1.msra.mxu0 %v2010
        %2089 = vmatprep.subr.mxu0 0.0
        %2090 = vmatpush1.msra.mxu0 %v2011
        %2091 = vmatprep.subr.mxu0 0.0
        %2092 = vmatpush1.msra.mxu0 %v2012
        %2093 = vmatprep.subr.mxu0 0.0
        %2094 = vmatpush1.msra.mxu0 %v2013
        %2095 = vmatprep.subr.mxu0 0.0
        %2096 = vmatpush1.msra.mxu0 %v2014
        %2097 = vmatprep.subr.mxu0 0.0
        %2098 = vmatpush1.msra.mxu0 %v2015
        %2099 = vmatprep.subr.mxu0 0.0
        %2100 = vmatpush1.msra.mxu0 %v2016
        %2101 = vmatprep.subr.mxu0 0.0
        %2102 = vmatpush1.msra.mxu0 %v2017
        %2103 = vmatprep.subr.mxu0 0.0
        %2104 = vmatpush1.msra.mxu0 %v2018
        %2105 = vmatprep.subr.mxu0 0.0
        %2106 = vmatpush1.msra.mxu0 %v2019
        %2107 = vmatprep.subr.mxu0 0.0
        %2108 = vmatpush1.msra.mxu0 %v2020
        %2109 = vmatprep.subr.mxu0 0.0
        %2110 = vmatpush1.msra.mxu0 %v2021
        %2111 = vmatprep.subr.mxu0 0.0
        %2112 = vmatpush1.msra.mxu0 %v2022
        %2113 = vmatprep.subr.mxu0 0.0
        %2114 = vmatpush1.msra.mxu0 %v2023
        %2115 = vmatprep.subr.mxu0 0.0
        %2116 = vmatpush1.msra.mxu0 %v2024
        %2117 = vmatprep.subr.mxu0 0.0
        %2118 = vmatpush1.msra.mxu0 %v2025
        %2119 = vmatprep.subr.mxu0 0.0
        %2120 = vmatpush1.msra.mxu0 %v2026
        %2121 = vmatprep.subr.mxu0 0.0
        %2122 = vmatpush1.msra.mxu0 %v2027
        %2123 = vmatprep.subr.mxu0 0.0
        %2124 = vmatpush1.msra.mxu0 %v2028
        %2125 = vmatprep.subr.mxu0 0.0
        %2126 = vmatpush1.msra.mxu0 %v2029
        %2127 = vmatprep.subr.mxu0 0.0
        %2128 = vmatpush1.msra.mxu0 %v2030
        %2129 = vmatprep.subr.mxu0 0.0
        %2130 = vmatpush1.msra.mxu0 %v2031
        %2131 = vmatprep.subr.mxu0 0.0
        %2132 = vmatpush1.msra.mxu0 %v2032
        %2133 = vmatprep.subr.mxu0 0.0
        %2134 = vmatpush1.msra.mxu0 %v2033
        %2135 = vmatprep.subr.mxu0 0.0
        %2136 = vmatpush1.msra.mxu0 %v2034
        %2137 = vmatprep.subr.mxu0 0.0
        %2138 = vmatpush1.msra.mxu0 %v2035
        %2139 = vmatprep.mubr.f32.mxu0 %v2001
        %2140 = vmatmul.mubr.f32.gmra.mrb[0].mxu0 %v2000
        %v2141 = vpop.f32.mrb[0].mxu0
        %v2142 = vadd.f32 %v2073, %v2141
        %v2143 = vpop.f32.mrb[0].mxu0
        %2144 = vdwg.mxu0
        %2145 = vmatprep.subr.mxu0 0.0
        %2146 = vmatpush1.msra.mxu0 %v2036
        %2147 = vmatprep.subr.mxu0 0.0
        %2148 = vmatpush1.msra.mxu0 %v2037
        %2149 = vmatprep.subr.mxu0 0.0
        %2150 = vmatpush1.msra.mxu0 %v2038
        %2151 = vmatprep.subr.mxu0 0.0
        %2152 = vmatpush1.msra.mxu0 %v2039
        %2153 = vmatprep.subr.mxu0 0.0
        %2154 = vmatpush1.msra.mxu0 %v2040
        %2155 = vmatprep.subr.mxu0 0.0
        %2156 = vmatpush1.msra.mxu0 %v2041
        %2157 = vmatprep.subr.mxu0 0.0
        %2158 = vmatpush1.msra.mxu0 %v2042
        %2159 = vmatprep.subr.mxu0 0.0
        %2160 = vmatpush1.msra.mxu0 %v2043
        %2161 = vmatprep.subr.mxu0 0.0
        %2162 = vmatpush1.msra.mxu0 %v2044
        %2163 = vmatprep.subr.mxu0 0.0
        %2164 = vmatpush1.msra.mxu0 %v2045
        %2165 = vmatprep.subr.mxu0 0.0
        %2166 = vmatpush1.msra.mxu0 %v2046
        %2167 = vmatprep.subr.mxu0 0.0
        %2168 = vmatpush1.msra.mxu0 %v2047
        %2169 = vmatprep.subr.mxu0 0.0
        %2170 = vmatpush1.msra.mxu0 %v2048
        %2171 = vmatprep.subr.mxu0 0.0
        %2172 = vmatpush1.msra.mxu0 %v2049
        %2173 = vmatprep.subr.mxu0 0.0
        %2174 = vmatpush1.msra.mxu0 %v2050
        %2175 = vmatprep.subr.mxu0 0.0
        %2176 = vmatpush1.msra.mxu0 %v2051
        %2177 = vmatprep.subr.mxu0 0.0
        %2178 = vmatpush1.msra.mxu0 %v2052
        %2179 = vmatprep.subr.mxu0 0.0
        %2180 = vmatpush1.msra.mxu0 %v2053
        %2181 = vmatprep.subr.mxu0 0.0
        %2182 = vmatpush1.msra.mxu0 %v2054
        %2183 = vmatprep.subr.mxu0 0.0
        %2184 = vmatpush1.msra.mxu0 %v2055
        %2185 = vmatprep.subr.mxu0 0.0
        %2186 = vmatpush1.msra.mxu0 %v2056
        %2187 = vmatprep.subr.mxu0 0.0
        %2188 = vmatpush1.msra.mxu0 %v2057
        %2189 = vmatprep.subr.mxu0 0.0
        %2190 = vmatpush1.msra.mxu0 %v2058
        %2191 = vmatprep.subr.mxu0 0.0
        %2192 = vmatpush1.msra.mxu0 %v2059
        %2193 = vmatprep.subr.mxu0 0.0
        %2194 = vmatpush1.msra.mxu0 %v2060
        %2195 = vmatprep.subr.mxu0 0.0
        %2196 = vmatpush1.msra.mxu0 %v2061
        %2197 = vmatprep.subr.mxu0 0.0
        %2198 = vmatpush1.msra.mxu0 %v2062
        %2199 = vmatprep.subr.mxu0 0.0
        %2200 = vmatpush1.msra.mxu0 %v2063
        %2201 = vmatprep.subr.mxu0 0.0
        %2202 = vmatpush1.msra.mxu0 %v2064
        %2203 = vmatprep.subr.mxu0 0.0
        %2204 = vmatpush1.msra.mxu0 %v2065
        %2205 = vmatprep.subr.mxu0 0.0
        %2206 = vmatpush1.msra.mxu0 %v2066
        %2207 = vmatprep.subr.mxu0 0.0
        %2208 = vmatpush1.msra.mxu0 %v2067
        %2209 = vmatprep.mubr.f32.mxu0 %v2003
        %2210 = vmatmul.mubr.f32.gmra.mrb[0].mxu0 %v2002
        %v2211 = vpop.f32.mrb[0].mxu0
        %v2212 = vadd.f32 %v2142, %v2211
        %v2213 = vpop.f32.mrb[0].mxu0
        %2214 = vdwg.mxu0
        %v2215 = vadd.f32 %v1816, %v2212
        %v2216 = vld [vmem:[%s19] sm:$0x1]
        %v2217 = vld [vmem:[%s20] sm:$0x1]
        %v2218 = vsel %vm765, %v2215, 0.0
        %2219 = vadd.xlane.f32.xlu0 %v2218
        %v2220 = vpop.xlane.xlu0 %2219
        %v2221 = vmul.f32 %v2220, %v1792
        %v2222 = vsub.f32 %v2215, %v2221
        %v2223 = vmul.f32 %v2222, %v2222
        %v2224 = vsel %vm765, %v2223, 0.0
        %2225 = vadd.xlane.f32.xlu0 %v2224
        %v2226 = vpop.xlane.xlu0 %2225
        %v2227 = vmul.f32 %v2226, %v1792
        %v2228 = vadd.f32 %v2227, 1e-05
        %v2229 = vrsqrt.pop %v2228
        %v2230 = vmul.f32 %v2222, %v2229
        %v2232 = vlaneseq
        %v2233 = vshrl.u32 %v2232, 7
        %v2234 = vsub.s32 0, %v2233
        %v2235 = vrot.slane %v2216, %v2234
        %v2237 = vmul.f32 %v2230, %v2235
        %v2239 = vlaneseq
        %v2240 = vshrl.u32 %v2239, 7
        %v2241 = vsub.s32 0, %v2240
        %v2242 = vrot.slane %v2217, %v2241
        %v2244 = vadd.f32 %v2237, %v2242
        %v2245 = vld [vmem:[%s744] sm:$0xff]
        %v2246 = vld [vmem:[%s21] sm:$0xff]
        %v2247 = vld [vmem:[%s21 + $0x8] sm:$0xff]
        %v2248 = vld [vmem:[%s21 + $0x10] sm:$0xff]
        %v2249 = vld [vmem:[%s21 + $0x18] sm:$0xff]
        %v2250 = vld [vmem:[%s22] sm:$0xff]
        %v2251 = vld [vmem:[%s22 + $0x8] sm:$0xff]
        %v2252 = vld [vmem:[%s22 + $0x10] sm:$0xff]
        %v2253 = vld [vmem:[%s22 + $0x18] sm:$0xff]
        %v2255 = vsel %vm765, %v2244, 0
        %2257 = vmatprep.subr.mxu0 0.0
        %2258 = vmatpush1.msra.mxu0 %v2250
        %2259 = vmatprep.subr.mxu0 0.0
        %2260 = vmatpush1.msra.mxu0 %v2251
        %2261 = vmatprep.subr.mxu0 0.0
        %2262 = vmatpush1.msra.mxu0 %v2252
        %2263 = vmatprep.subr.mxu0 0.0
        %2264 = vmatpush1.msra.mxu0 %v2253
        %2265 = vmatprep.subr.mxu0 0.0
        %2266 = vmatpush1.msra.mxu0 0.0
        %2267 = vmatprep.subr.mxu0 0.0
        %2268 = vmatpush1.msra.mxu0 0.0
        %2269 = vmatprep.subr.mxu0 0.0
        %2270 = vmatpush1.msra.mxu0 0.0
        %2271 = vmatprep.subr.mxu0 0.0
        %2272 = vmatpush1.msra.mxu0 0.0
        %2273 = vmatprep.subr.mxu0 0.0
        %2274 = vmatpush1.msra.mxu0 0.0
        %2275 = vmatprep.subr.mxu0 0.0
        %2276 = vmatpush1.msra.mxu0 0.0
        %2277 = vmatprep.subr.mxu0 0.0
        %2278 = vmatpush1.msra.mxu0 0.0
        %2279 = vmatprep.subr.mxu0 0.0
        %2280 = vmatpush1.msra.mxu0 0.0
        %2281 = vmatprep.subr.mxu0 0.0
        %2282 = vmatpush1.msra.mxu0 0.0
        %2283 = vmatprep.subr.mxu0 0.0
        %2284 = vmatpush1.msra.mxu0 0.0
        %2285 = vmatprep.subr.mxu0 0.0
        %2286 = vmatpush1.msra.mxu0 0.0
        %2287 = vmatprep.subr.mxu0 0.0
        %2288 = vmatpush1.msra.mxu0 0.0
        %2289 = vmatprep.subr.mxu0 0.0
        %2290 = vmatpush1.msra.mxu0 0.0
        %2291 = vmatprep.subr.mxu0 0.0
        %2292 = vmatpush1.msra.mxu0 0.0
        %2293 = vmatprep.subr.mxu0 0.0
        %2294 = vmatpush1.msra.mxu0 0.0
        %2295 = vmatprep.subr.mxu0 0.0
        %2296 = vmatpush1.msra.mxu0 0.0
        %2297 = vmatprep.subr.mxu0 0.0
        %2298 = vmatpush1.msra.mxu0 0.0
        %2299 = vmatprep.subr.mxu0 0.0
        %2300 = vmatpush1.msra.mxu0 0.0
        %2301 = vmatprep.subr.mxu0 0.0
        %2302 = vmatpush1.msra.mxu0 0.0
        %2303 = vmatprep.subr.mxu0 0.0
        %2304 = vmatpush1.msra.mxu0 0.0
        %2305 = vmatprep.subr.mxu0 0.0
        %2306 = vmatpush1.msra.mxu0 0.0
        %2307 = vmatprep.subr.mxu0 0.0
        %2308 = vmatpush1.msra.mxu0 0.0
        %2309 = vmatprep.subr.mxu0 0.0
        %2310 = vmatpush1.msra.mxu0 0.0
        %2311 = vmatprep.subr.mxu0 0.0
        %2312 = vmatpush1.msra.mxu0 0.0
        %2313 = vmatprep.subr.mxu0 0.0
        %2314 = vmatpush1.msra.mxu0 0.0
        %2315 = vmatprep.subr.mxu0 0.0
        %2316 = vmatpush1.msra.mxu0 0.0
        %2317 = vmatprep.subr.mxu0 0.0
        %2318 = vmatpush1.msra.mxu0 0.0
        %2319 = vmatprep.subr.mxu0 0.0
        %2320 = vmatpush1.msra.mxu0 0.0
        %2321 = vmatprep.mubr.f32.mxu0 0.0
        %2322 = vmatmul.mubr.f32.gmra.mrb[0].mxu0 %v2255
        %v2323 = vpop.f32.mrb[0].mxu0
        %v2324 = vadd.f32 0.0, %v2323
        %v2325 = vpop.f32.mrb[0].mxu0
        %2326 = vdwg.mxu0
        %v2328 = vsel %vm765, %v2245, 0
        %2330 = vmatprep.subr.mxu0 0.0
        %2331 = vmatpush1.msra.mxu0 %v2246
        %2332 = vmatprep.subr.mxu0 0.0
        %2333 = vmatpush1.msra.mxu0 %v2247
        %2334 = vmatprep.subr.mxu0 0.0
        %2335 = vmatpush1.msra.mxu0 %v2248
        %2336 = vmatprep.subr.mxu0 0.0
        %2337 = vmatpush1.msra.mxu0 %v2249
        %2338 = vmatprep.subr.mxu0 0.0
        %2339 = vmatpush1.msra.mxu0 0.0
        %2340 = vmatprep.subr.mxu0 0.0
        %2341 = vmatpush1.msra.mxu0 0.0
        %2342 = vmatprep.subr.mxu0 0.0
        %2343 = vmatpush1.msra.mxu0 0.0
        %2344 = vmatprep.subr.mxu0 0.0
        %2345 = vmatpush1.msra.mxu0 0.0
        %2346 = vmatprep.subr.mxu0 0.0
        %2347 = vmatpush1.msra.mxu0 0.0
        %2348 = vmatprep.subr.mxu0 0.0
        %2349 = vmatpush1.msra.mxu0 0.0
        %2350 = vmatprep.subr.mxu0 0.0
        %2351 = vmatpush1.msra.mxu0 0.0
        %2352 = vmatprep.subr.mxu0 0.0
        %2353 = vmatpush1.msra.mxu0 0.0
        %2354 = vmatprep.subr.mxu0 0.0
        %2355 = vmatpush1.msra.mxu0 0.0
        %2356 = vmatprep.subr.mxu0 0.0
        %2357 = vmatpush1.msra.mxu0 0.0
        %2358 = vmatprep.subr.mxu0 0.0
        %2359 = vmatpush1.msra.mxu0 0.0
        %2360 = vmatprep.subr.mxu0 0.0
        %2361 = vmatpush1.msra.mxu0 0.0
        %2362 = vmatprep.subr.mxu0 0.0
        %2363 = vmatpush1.msra.mxu0 0.0
        %2364 = vmatprep.subr.mxu0 0.0
        %2365 = vmatpush1.msra.mxu0 0.0
        %2366 = vmatprep.subr.mxu0 0.0
        %2367 = vmatpush1.msra.mxu0 0.0
        %2368 = vmatprep.subr.mxu0 0.0
        %2369 = vmatpush1.msra.mxu0 0.0
        %2370 = vmatprep.subr.mxu0 0.0
        %2371 = vmatpush1.msra.mxu0 0.0
        %2372 = vmatprep.subr.mxu0 0.0
        %2373 = vmatpush1.msra.mxu0 0.0
        %2374 = vmatprep.subr.mxu0 0.0
        %2375 = vmatpush1.msra.mxu0 0.0
        %2376 = vmatprep.subr.mxu0 0.0
        %2377 = vmatpush1.msra.mxu0 0.0
        %2378 = vmatprep.subr.mxu0 0.0
        %2379 = vmatpush1.msra.mxu0 0.0
        %2380 = vmatprep.subr.mxu0 0.0
        %2381 = vmatpush1.msra.mxu0 0.0
        %2382 = vmatprep.subr.mxu0 0.0
        %2383 = vmatpush1.msra.mxu0 0.0
        %2384 = vmatprep.subr.mxu0 0.0
        %2385 = vmatpush1.msra.mxu0 0.0
        %2386 = vmatprep.subr.mxu0 0.0
        %2387 = vmatpush1.msra.mxu0 0.0
        %2388 = vmatprep.subr.mxu0 0.0
        %2389 = vmatpush1.msra.mxu0 0.0
        %2390 = vmatprep.subr.mxu0 0.0
        %2391 = vmatpush1.msra.mxu0 0.0
        %2392 = vmatprep.subr.mxu0 0.0
        %2393 = vmatpush1.msra.mxu0 0.0
        %2394 = vmatprep.mubr.f32.mxu0 0.0
        %2395 = vmatmul.mubr.f32.gmra.mrb[0].mxu0 %v2328
        %v2396 = vpop.f32.mrb[0].mxu0
        %v2397 = vadd.f32 %v2324, %v2396
        %v2398 = vpop.f32.mrb[0].mxu0
        %2399 = vdwg.mxu0
        %2400 = vst [vmem:[%s730] sm:$0xff] %v2397
        %s2401 = sand.u32 %s543, 1
        %s2402 = scalar_lea.sflag [#allocation3], %s2401
        %s2403 = sand.u32 %s543, 1
        %s2404 = smul.addr %s2403, 8
        %s2405 = scalar_lea.vmem [#allocation2], %s2404
        // Predicated region
        $region113: #{tpu_custom_call.1} parent=111 // pred_check
          %p2406 = pneg %p553
        $region114: #{tpu_custom_call.1} parent=111 // pred_check_branch
          %2408 = sbr.rel (%p2406) target = $region116
        $region115: #{tpu_custom_call.1} parent=111 // pred_region
          %s2410 = ssub.s32 128, 128
          %2411 = vsyncadd %s2402, %s2410
          %s2412 = smul.addr %s37, 128
          %s2413 = scalar_lea.hbm %s23, %s2412
          %s2415 = sshll.u32 %s2405, 4
          %s2416 = int_to_ptr.vmem [resolvable:$true] %s2415
          %2418 = dma.vmem_to_hbm [thread:$0]  %s2416, 128, %s2413, %s2402
        $region116: #{tpu_custom_call.1} parent=111 // pred_fallthru
          _
      $region112: #{tpu_custom_call.1} parent=5 // pred_fallthru
        _
      %p2419 = scmp.le.s32.totalorder 2, %s32
      // Predicated region
      $region117: #{tpu_custom_call.1} parent=5 // pred_check
        %p2420 = pneg %p2419
      $region118: #{tpu_custom_call.1} parent=5 // pred_check_branch
        %2422 = sbr.rel (%p2420) target = $region120
      $region119: #{tpu_custom_call.1} parent=5 // pred_region
        %s2423 = ssub.s32 %s32, 2
        // Predicated region
        $region121: #{tpu_custom_call.1} parent=119 // pred_check
          %p2424 = pneg %p559
        $region122: #{tpu_custom_call.1} parent=119 // pred_check_branch
          %2426 = sbr.rel (%p2424) target = $region124
        $region123: #{tpu_custom_call.1} parent=119 // pred_region
          %s2427 = sand.u32 %s544, 1
          %s2428 = scalar_lea.sflag [#allocation3], %s2427
          %s2429 = sand.u32 %s544, 1
          %s2430 = smul.addr %s2429, 8
          %s2431 = scalar_lea.vmem [#allocation2], %s2430
          %2432 = dma.done %s2428, 128
        $region124: #{tpu_custom_call.1} parent=119 // pred_fallthru
          _
      $region120: #{tpu_custom_call.1} parent=5 // pred_fallthru
        _
    $region6: #{tpu_custom_call.1} parent=1 // loop_footer
      %s36 = sadd.s32 1, %s32
    $region7: #{tpu_custom_call.1} parent=1 // loop_footer_branch
      %31 = sbr.rel target = $region3
    $region8: #{tpu_custom_call.1} parent=1 // loop_exit
      _
    %2433 = vsyncpa [#allocation3], 1
    %s2434 = scalar_lea.sflag [#allocation3], 1
    %2435 = vsyncpa %s2434, 1

// kernel: tpu_custom_call.1
$region0: #{tpu_custom_call.1}
  #allocation0 [shape = 'u32[]', space=smem, size = 0x4, offset = 0x4, fixed_abs, tag = 'smem constant byte address 0x4 - core index']
  #allocation1 [shape = 'u32[144,128]{1,0:T(1,128)}', space=vmem, size = 0x12000, scoped, tag = 'internal scratch']
  %s0 = inlined_call_operand.vmem [shape: f32[128,32], index: 0, kind: input, shape index: {}]
  %s1 = inlined_call_operand.vmem [shape: f32[16,32], index: 1, kind: input, shape index: {}]
  %s2 = inlined_call_operand.vmem [shape: f32[16,32], index: 2, kind: input, shape index: {}]
  %s3 = inlined_call_operand.vmem [shape: f32[32,8], index: 3, kind: input, shape index: {}]
  %s4 = inlined_call_operand.vmem [shape: f32[8,32], index: 4, kind: input, shape index: {}]
  %s5 = inlined_call_operand.vmem [shape: f32[32,32], index: 5, kind: input, shape index: {}]
  %s6 = inlined_call_operand.vmem [shape: f32[1,32], index: 6, kind: input, shape index: {}]
  %s7 = inlined_call_operand.vmem [shape: f32[32,32], index: 7, kind: input, shape index: {}]
  %s8 = inlined_call_operand.vmem [shape: f32[1,32], index: 8, kind: input, shape index: {}]
  %s9 = inlined_call_operand.vmem [shape: f32[32,32], index: 9, kind: input, shape index: {}]
  %s10 = inlined_call_operand.vmem [shape: f32[1,32], index: 10, kind: input, shape index: {}]
  %s11 = inlined_call_operand.vmem [shape: f32[32,32], index: 11, kind: input, shape index: {}]
  %s12 = inlined_call_operand.vmem [shape: f32[1,32], index: 12, kind: input, shape index: {}]
  %s13 = inlined_call_operand.vmem [shape: f32[1,32], index: 13, kind: input, shape index: {}]
  %s14 = inlined_call_operand.vmem [shape: f32[1,32], index: 14, kind: input, shape index: {}]
  %s15 = inlined_call_operand.vmem [shape: f32[32,512], index: 15, kind: input, shape index: {}]
  %s16 = inlined_call_operand.vmem [shape: f32[1,512], index: 16, kind: input, shape index: {}]
  %s17 = inlined_call_operand.vmem [shape: f32[512,32], index: 17, kind: input, shape index: {}]
  %s18 = inlined_call_operand.vmem [shape: f32[1,32], index: 18, kind: input, shape index: {}]
  %s19 = inlined_call_operand.vmem [shape: f32[1,32], index: 19, kind: input, shape index: {}]
  %s20 = inlined_call_operand.vmem [shape: f32[1,32], index: 20, kind: input, shape index: {}]
  %s21 = inlined_call_operand.vmem [shape: f32[32,128], index: 21, kind: input, shape index: {}]
  %s22 = inlined_call_operand.vmem [shape: f32[32,128], index: 22, kind: input, shape index: {}]
  %s23 = inlined_call_operand.hbm [shape: f32[16,128], index: 23, kind: output, shape index: {}]
  %s24 = sld [smem:[#allocation0]]
  $region125: #{tpu_custom_call.1} parent=0
    _
  %s26 = ssub.s32 1, %s24
  %s27 = scalar_select 0, %s26, %s24
  $region1: #{tpu_custom_call.1} parent=0
    #allocation2 [shape = 'u8[8192]{0}', space=vmem, size = 0x2000, scoped, tag = 'output window, operand 0']
    #allocation3 [shape = 's32[2]{0}', space=sflag, size = 0x8, scoped, tag = 'scoped memory for tpu_custom_call.1']
    %28 = vsyncpa [#allocation3], 0
    %s29 = scalar_lea.sflag [#allocation3], 1
    %30 = vsyncpa %s29, 0
    loop: start=0, step=1, limit=4
    $region2: #{tpu_custom_call.1} parent=1 // loop_pre_header
      _
    $region3: #{tpu_custom_call.1} parent=1 // loop_header
      %s32 = sphi 0, %s36
      %p33 = scmp.ge.s32.totalorder %s32, 4
      %s42 = sphi 0, %s44
      %s45 = sphi 0, %s42
      %s46 = sphi 0, %s45
      %s62 = sphi 0, %s46
      %s68 = sphi 0, %s70
      %s71 = sphi 0, %s68
      %s72 = sphi 0, %s71
      %s88 = sphi 0, %s72
      %s94 = sphi 0, %s96
      %s97 = sphi 0, %s94
      %s98 = sphi 0, %s97
      %s114 = sphi 0, %s98
      %s118 = sphi 0, %s118
      %s120 = sphi 0, %s118
      %s121 = sphi 0, %s120
      %s135 = sphi 0, %s121
      %s139 = sphi 0, %s139
      %s141 = sphi 0, %s139
      %s142 = sphi 0, %s141
      %s156 = sphi 0, %s142
      %s160 = sphi 0, %s160
      %s162 = sphi 0, %s160
      %s163 = sphi 0, %s162
      %s177 = sphi 0, %s163
      %s181 = sphi 0, %s181
      %s183 = sphi 0, %s181
      %s184 = sphi 0, %s183
      %s198 = sphi 0, %s184
      %s202 = sphi 0, %s202
      %s204 = sphi 0, %s202
      %s205 = sphi 0, %s204
      %s219 = sphi 0, %s205
      %s223 = sphi 0, %s223
      %s225 = sphi 0, %s223
      %s226 = sphi 0, %s225
      %s240 = sphi 0, %s226
      %s244 = sphi 0, %s244
      %s246 = sphi 0, %s244
      %s247 = sphi 0, %s246
      %s261 = sphi 0, %s247
      %s265 = sphi 0, %s265
      %s267 = sphi 0, %s265
      %s268 = sphi 0, %s267
      %s282 = sphi 0, %s268
      %s286 = sphi 0, %s286
      %s288 = sphi 0, %s286
      %s289 = sphi 0, %s288
      %s303 = sphi 0, %s289
      %s307 = sphi 0, %s307
      %s309 = sphi 0, %s307
      %s310 = sphi 0, %s309
      %s324 = sphi 0, %s310
      %s328 = sphi 0, %s328
      %s330 = sphi 0, %s328
      %s331 = sphi 0, %s330
      %s345 = sphi 0, %s331
      %s349 = sphi 0, %s349
      %s351 = sphi 0, %s349
      %s352 = sphi 0, %s351
      %s366 = sphi 0, %s352
      %s370 = sphi 0, %s370
      %s372 = sphi 0, %s370
      %s373 = sphi 0, %s372
      %s387 = sphi 0, %s373
      %s391 = sphi 0, %s391
      %s393 = sphi 0, %s391
      %s394 = sphi 0, %s393
      %s408 = sphi 0, %s394
      %s412 = sphi 0, %s412
      %s414 = sphi 0, %s412
      %s415 = sphi 0, %s414
      %s429 = sphi 0, %s415
      %s433 = sphi 0, %s433
      %s435 = sphi 0, %s433
      %s436 = sphi 0, %s435
      %s450 = sphi 0, %s436
      %s454 = sphi 0, %s454
      %s456 = sphi 0, %s454
      %s457 = sphi 0, %s456
      %s471 = sphi 0, %s457
      %s475 = sphi 0, %s475
      %s477 = sphi 0, %s475
      %s478 = sphi 0, %s477
      %s492 = sphi 0, %s478
      %s496 = sphi 0, %s496
      %s498 = sphi 0, %s496
      %s499 = sphi 0, %s498
      %s513 = sphi 0, %s499
      %s517 = sphi 0, %s517
      %s519 = sphi 0, %s517
      %s520 = sphi 0, %s519
      %s534 = sphi 0, %s520
      %s540 = sphi 0, %s542
      %s543 = sphi 0, %s540
      %s544 = sphi 0, %s543
      %s560 = sphi 0, %s544
    $region4: #{tpu_custom_call.1} parent=1 // loop_header_branch
      %35 = sbr.rel (%p33) target = $region8
    $region5: #{tpu_custom_call.1} parent=1 // loop_body
      %s37 = ssub.s32 %s32, 1
      %s38 = ssub.s32 %s32, 2
      %s39 = sadd.s32 %s32, 1
      %s40 = ssub.s32 %s32, %s39
      %p41 = scmp.eq.s32.totalorder %s40, 0
      %s43 = sadd.s32 %s42, 1
      %s44 = scalar_select %p41, %s42, %s43
      %p47 = pneg %p41
      %p48 = scmp.eq.s32.totalorder %s32, 1
      %p49 = por %p47, %p48
      %p50 = scmp.ne.s32.totalorder %s42, %s45
      %p51 = scmp.eq.s32.totalorder %s32, 0
      %p52 = por %p50, %p51
      %p53 = scmp.ne.s32.totalorder %s42, %s45
      %p54 = scmp.eq.s32.totalorder %s37, 1
      %p55 = por %p53, %p54
      %p56 = scmp.ne.s32.totalorder %s45, %s46
      %p57 = scmp.eq.s32.totalorder %s37, 0
      %p58 = por %p56, %p57
      %p59 = scmp.ne.s32.totalorder %s45, %s46
      %p60 = scmp.eq.s32.totalorder %s38, 1
      %p61 = por %p59, %p60
      %p63 = scmp.ne.s32.totalorder %s46, %s62
      %p64 = scmp.eq.s32.totalorder %s38, 0
      %p65 = por %p63, %p64
      %s66 = ssub.s32 %s32, %s39
      %p67 = scmp.eq.s32.totalorder %s66, 0
      %s69 = sadd.s32 %s68, 1
      %s70 = scalar_select %p67, %s68, %s69
      %p73 = pneg %p67
      %p74 = scmp.eq.s32.totalorder %s32, 1
      %p75 = por %p73, %p74
      %p76 = scmp.ne.s32.totalorder %s68, %s71
      %p77 = scmp.eq.s32.totalorder %s32, 0
      %p78 = por %p76, %p77
      %p79 = scmp.ne.s32.totalorder %s68, %s71
      %p80 = scmp.eq.s32.totalorder %s37, 1
      %p81 = por %p79, %p80
      %p82 = scmp.ne.s32.totalorder %s71, %s72
      %p83 = scmp.eq.s32.totalorder %s37, 0
      %p84 = por %p82, %p83
      %p85 = scmp.ne.s32.totalorder %s71, %s72
      %p86 = scmp.eq.s32.totalorder %s38, 1
      %p87 = por %p85, %p86
      %p89 = scmp.ne.s32.totalorder %s72, %s88
      %p90 = scmp.eq.s32.totalorder %s38, 0
      %p91 = por %p89, %p90
      %s92 = ssub.s32 %s32, %s39
      %p93 = scmp.eq.s32.totalorder %s92, 0
      %s95 = sadd.s32 %s94, 1
      %s96 = scalar_select %p93, %s94, %s95
      %p99 = pneg %p93
      %p100 = scmp.eq.s32.totalorder %s32, 1
      %p101 = por %p99, %p100
      %p102 = scmp.ne.s32.totalorder %s94, %s97
      %p103 = scmp.eq.s32.totalorder %s32, 0
      %p104 = por %p102, %p103
      %p105 = scmp.ne.s32.totalorder %s94, %s97
      %p106 = scmp.eq.s32.totalorder %s37, 1
      %p107 = por %p105, %p106
      %p108 = scmp.ne.s32.totalorder %s97, %s98
      %p109 = scmp.eq.s32.totalorder %s37, 0
      %p110 = por %p108, %p109
      %p111 = scmp.ne.s32.totalorder %s97, %s98
      %p112 = scmp.eq.s32.totalorder %s38, 1
      %p113 = por %p111, %p112
      %p115 = scmp.ne.s32.totalorder %s98, %s114
      %p116 = scmp.eq.s32.totalorder %s38, 0
      %p117 = por %p115, %p116
      %s119 = sadd.s32 %s118, 1
      %p122 = scmp.eq.s32.totalorder %s32, 1
      %p123 = scmp.ne.s32.totalorder %s118, %s120
      %p124 = scmp.eq.s32.totalorder %s32, 0
      %p125 = por %p123, %p124
      %p126 = scmp.ne.s32.totalorder %s118, %s120
      %p127 = scmp.eq.s32.totalorder %s37, 1
      %p128 = por %p126, %p127
      %p129 = scmp.ne.s32.totalorder %s120, %s121
      %p130 = scmp.eq.s32.totalorder %s37, 0
      %p131 = por %p129, %p130
      %p132 = scmp.ne.s32.totalorder %s120, %s121
      %p133 = scmp.eq.s32.totalorder %s38, 1
      %p134 = por %p132, %p133
      %p136 = scmp.ne.s32.totalorder %s121, %s135
      %p137 = scmp.eq.s32.totalorder %s38, 0
      %p138 = por %p136, %p137
      %s140 = sadd.s32 %s139, 1
      %p143 = scmp.eq.s32.totalorder %s32, 1
      %p144 = scmp.ne.s32.totalorder %s139, %s141
      %p145 = scmp.eq.s32.totalorder %s32, 0
      %p146 = por %p144, %p145
      %p147 = scmp.ne.s32.totalorder %s139, %s141
      %p148 = scmp.eq.s32.totalorder %s37, 1
      %p149 = por %p147, %p148
      %p150 = scmp.ne.s32.totalorder %s141, %s142
      %p151 = scmp.eq.s32.totalorder %s37, 0
      %p152 = por %p150, %p151
      %p153 = scmp.ne.s32.totalorder %s141, %s142
      %p154 = scmp.eq.s32.totalorder %s38, 1
      %p155 = por %p153, %p154
      %p157 = scmp.ne.s32.totalorder %s142, %s156
      %p158 = scmp.eq.s32.totalorder %s38, 0
      %p159 = por %p157, %p158
      %s161 = sadd.s32 %s160, 1
      %p164 = scmp.eq.s32.totalorder %s32, 1
      %p165 = scmp.ne.s32.totalorder %s160, %s162
      %p166 = scmp.eq.s32.totalorder %s32, 0
      %p167 = por %p165, %p166
      %p168 = scmp.ne.s32.totalorder %s160, %s162
      %p169 = scmp.eq.s32.totalorder %s37, 1
      %p170 = por %p168, %p169
      %p171 = scmp.ne.s32.totalorder %s162, %s163
      %p172 = scmp.eq.s32.totalorder %s37, 0
      %p173 = por %p171, %p172
      %p174 = scmp.ne.s32.totalorder %s162, %s163
      %p175 = scmp.eq.s32.totalorder %s38, 1
      %p176 = por %p174, %p175
      %p178 = scmp.ne.s32.totalorder %s163, %s177
      %p179 = scmp.eq.s32.totalorder %s38, 0
      %p180 = por %p178, %p179
      %s182 = sadd.s32 %s181, 1
      %p185 = scmp.eq.s32.totalorder %s32, 1
      %p186 = scmp.ne.s32.totalorder %s181, %s183
      %p187 = scmp.eq.s32.totalorder %s32, 0
      %p188 = por %p186, %p187
      %p189 = scmp.ne.s32.totalorder %s181, %s183
      %p190 = scmp.eq.s32.totalorder %s37, 1
      %p191 = por %p189, %p190
      %p192 = scmp.ne.s32.totalorder %s183, %s184
      %p193 = scmp.eq.s32.totalorder %s37, 0
      %p194 = por %p192, %p193
      %p195 = scmp.ne.s32.totalorder %s183, %s184
      %p196 = scmp.eq.s32.totalorder %s38, 1
      %p197 = por %p195, %p196
      %p199 = scmp.ne.s32.totalorder %s184, %s198
      %p200 = scmp.eq.s32.totalorder %s38, 0
      %p201 = por %p199, %p200
      %s203 = sadd.s32 %s202, 1
      %p206 = scmp.eq.s32.totalorder %s32, 1
      %p207 = scmp.ne.s32.totalorder %s202, %s204
      %p208 = scmp.eq.s32.totalorder %s32, 0
      %p209 = por %p207, %p208
      %p210 = scmp.ne.s32.totalorder %s202, %s204
      %p211 = scmp.eq.s32.totalorder %s37, 1
      %p212 = por %p210, %p211
      %p213 = scmp.ne.s32.totalorder %s204, %s205
      %p214 = scmp.eq.s32.totalorder %s37, 0
      %p215 = por %p213, %p214
      %p216 = scmp.ne.s32.totalorder %s204, %s205
      %p217 = scmp.eq.s32.totalorder %s38, 1
      %p218 = por %p216, %p217
      %p220 = scmp.ne.s32.totalorder %s205, %s219
      %p221 = scmp.eq.s32.totalorder %s38, 0
      %p222 = por %p220, %p221
      %s224 = sadd.s32 %s223, 1
      %p227 = scmp.eq.s32.totalorder %s32, 1
      %p228 = scmp.ne.s32.totalorder %s223, %s225
      %p229 = scmp.eq.s32.totalorder %s32, 0
      %p230 = por %p228, %p229
      %p231 = scmp.ne.s32.totalorder %s223, %s225
      %p232 = scmp.eq.s32.totalorder %s37, 1
      %p233 = por %p231, %p232
      %p234 = scmp.ne.s32.totalorder %s225, %s226
      %p235 = scmp.eq.s32.totalorder %s37, 0
      %p236 = por %p234, %p235
      %p237 = scmp.ne.s32.totalorder %s225, %s226
      %p238 = scmp.eq.s32.totalorder %s38, 1
      %p239 = por %p237, %p238
      %p241 = scmp.ne.s32.totalorder %s226, %s240
      %p242 = scmp.eq.s32.totalorder %s38, 0
      %p243 = por %p241, %p242
      %s245 = sadd.s32 %s244, 1
      %p248 = scmp.eq.s32.totalorder %s32, 1
      %p249 = scmp.ne.s32.totalorder %s244, %s246
      %p250 = scmp.eq.s32.totalorder %s32, 0
      %p251 = por %p249, %p250
      %p252 = scmp.ne.s32.totalorder %s244, %s246
      %p253 = scmp.eq.s32.totalorder %s37, 1
      %p254 = por %p252, %p253
      %p255 = scmp.ne.s32.totalorder %s246, %s247
      %p256 = scmp.eq.s32.totalorder %s37, 0
      %p257 = por %p255, %p256
      %p258 = scmp.ne.s32.totalorder %s246, %s247
      %p259 = scmp.eq.s32.totalorder %s38, 1
      %p260 = por %p258, %p259
      %p262 = scmp.ne.s32.totalorder %s247, %s261
      %p263 = scmp.eq.s32.totalorder %s38, 0
      %p264 = por %p262, %p263
      %s266 = sadd.s32 %s265, 1
      %p269 = scmp.eq.s32.totalorder %s32, 1
      %p270 = scmp.ne.s32.totalorder %s265, %s267
      %p271 = scmp.eq.s32.totalorder %s32, 0
      %p272 = por %p270, %p271
      %p273 = scmp.ne.s32.totalorder %s265, %s267
      %p274 = scmp.eq.s32.totalorder %s37, 1
      %p275 = por %p273, %p274
      %p276 = scmp.ne.s32.totalorder %s267, %s268
      %p277 = scmp.eq.s32.totalorder %s37, 0
      %p278 = por %p276, %p277
      %p279 = scmp.ne.s32.totalorder %s267, %s268
      %p280 = scmp.eq.s32.totalorder %s38, 1
      %p281 = por %p279, %p280
      %p283 = scmp.ne.s32.totalorder %s268, %s282
      %p284 = scmp.eq.s32.totalorder %s38, 0
      %p285 = por %p283, %p284
      %s287 = sadd.s32 %s286, 1
      %p290 = scmp.eq.s32.totalorder %s32, 1
      %p291 = scmp.ne.s32.totalorder %s286, %s288
      %p292 = scmp.eq.s32.totalorder %s32, 0
      %p293 = por %p291, %p292
      %p294 = scmp.ne.s32.totalorder %s286, %s288
      %p295 = scmp.eq.s32.totalorder %s37, 1
      %p296 = por %p294, %p295
      %p297 = scmp.ne.s32.totalorder %s288, %s289
      %p298 = scmp.eq.s32.totalorder %s37, 0
      %p299 = por %p297, %p298
      %p300 = scmp.ne.s32.totalorder %s288, %s289
      %p301 = scmp.eq.s32.totalorder %s38, 1
      %p302 = por %p300, %p301
      %p304 = scmp.ne.s32.totalorder %s289, %s303
      %p305 = scmp.eq.s32.totalorder %s38, 0
      %p306 = por %p304, %p305
      %s308 = sadd.s32 %s307, 1
      %p311 = scmp.eq.s32.totalorder %s32, 1
      %p312 = scmp.ne.s32.totalorder %s307, %s309
      %p313 = scmp.eq.s32.totalorder %s32, 0
      %p314 = por %p312, %p313
      %p315 = scmp.ne.s32.totalorder %s307, %s309
      %p316 = scmp.eq.s32.totalorder %s37, 1
      %p317 = por %p315, %p316
      %p318 = scmp.ne.s32.totalorder %s309, %s310
      %p319 = scmp.eq.s32.totalorder %s37, 0
      %p320 = por %p318, %p319
      %p321 = scmp.ne.s32.totalorder %s309, %s310
      %p322 = scmp.eq.s32.totalorder %s38, 1
      %p323 = por %p321, %p322
      %p325 = scmp.ne.s32.totalorder %s310, %s324
      %p326 = scmp.eq.s32.totalorder %s38, 0
      %p327 = por %p325, %p326
      %s329 = sadd.s32 %s328, 1
      %p332 = scmp.eq.s32.totalorder %s32, 1
      %p333 = scmp.ne.s32.totalorder %s328, %s330
      %p334 = scmp.eq.s32.totalorder %s32, 0
      %p335 = por %p333, %p334
      %p336 = scmp.ne.s32.totalorder %s328, %s330
      %p337 = scmp.eq.s32.totalorder %s37, 1
      %p338 = por %p336, %p337
      %p339 = scmp.ne.s32.totalorder %s330, %s331
      %p340 = scmp.eq.s32.totalorder %s37, 0
      %p341 = por %p339, %p340
      %p342 = scmp.ne.s32.totalorder %s330, %s331
      %p343 = scmp.eq.s32.totalorder %s38, 1
      %p344 = por %p342, %p343
      %p346 = scmp.ne.s32.totalorder %s331, %s345
      %p347 = scmp.eq.s32.totalorder %s38, 0
      %p348 = por %p346, %p347
      %s350 = sadd.s32 %s349, 1
      %p353 = scmp.eq.s32.totalorder %s32, 1
      %p354 = scmp.ne.s32.totalorder %s349, %s351
      %p355 = scmp.eq.s32.totalorder %s32, 0
      %p356 = por %p354, %p355
      %p357 = scmp.ne.s32.totalorder %s349, %s351
      %p358 = scmp.eq.s32.totalorder %s37, 1
      %p359 = por %p357, %p358
      %p360 = scmp.ne.s32.totalorder %s351, %s352
      %p361 = scmp.eq.s32.totalorder %s37, 0
      %p362 = por %p360, %p361
      %p363 = scmp.ne.s32.totalorder %s351, %s352
      %p364 = scmp.eq.s32.totalorder %s38, 1
      %p365 = por %p363, %p364
      %p367 = scmp.ne.s32.totalorder %s352, %s366
      %p368 = scmp.eq.s32.totalorder %s38, 0
      %p369 = por %p367, %p368
      %s371 = sadd.s32 %s370, 1
      %p374 = scmp.eq.s32.totalorder %s32, 1
      %p375 = scmp.ne.s32.totalorder %s370, %s372
      %p376 = scmp.eq.s32.totalorder %s32, 0
      %p377 = por %p375, %p376
      %p378 = scmp.ne.s32.totalorder %s370, %s372
      %p379 = scmp.eq.s32.totalorder %s37, 1
      %p380 = por %p378, %p379
      %p381 = scmp.ne.s32.totalorder %s372, %s373
      %p382 = scmp.eq.s32.totalorder %s37, 0
      %p383 = por %p381, %p382
      %p384 = scmp.ne.s32.totalorder %s372, %s373
      %p385 = scmp.eq.s32.totalorder %s38, 1
      %p386 = por %p384, %p385
      %p388 = scmp.ne.s32.totalorder %s373, %s387
      %p389 = scmp.eq.s32.totalorder %s38, 0
      %p390 = por %p388, %p389
      %s392 = sadd.s32 %s391, 1
      %p395 = scmp.eq.s32.totalorder %s32, 1
      %p396 = scmp.ne.s32.totalorder %s391, %s393
      %p397 = scmp.eq.s32.totalorder %s32, 0
      %p398 = por %p396, %p397
      %p399 = scmp.ne.s32.totalorder %s391, %s393
      %p400 = scmp.eq.s32.totalorder %s37, 1
      %p401 = por %p399, %p400
      %p402 = scmp.ne.s32.totalorder %s393, %s394
      %p403 = scmp.eq.s32.totalorder %s37, 0
      %p404 = por %p402, %p403
      %p405 = scmp.ne.s32.totalorder %s393, %s394
      %p406 = scmp.eq.s32.totalorder %s38, 1
      %p407 = por %p405, %p406
      %p409 = scmp.ne.s32.totalorder %s394, %s408
      %p410 = scmp.eq.s32.totalorder %s38, 0
      %p411 = por %p409, %p410
      %s413 = sadd.s32 %s412, 1
      %p416 = scmp.eq.s32.totalorder %s32, 1
      %p417 = scmp.ne.s32.totalorder %s412, %s414
      %p418 = scmp.eq.s32.totalorder %s32, 0
      %p419 = por %p417, %p418
      %p420 = scmp.ne.s32.totalorder %s412, %s414
      %p421 = scmp.eq.s32.totalorder %s37, 1
      %p422 = por %p420, %p421
      %p423 = scmp.ne.s32.totalorder %s414, %s415
      %p424 = scmp.eq.s32.totalorder %s37, 0
      %p425 = por %p423, %p424
      %p426 = scmp.ne.s32.totalorder %s414, %s415
      %p427 = scmp.eq.s32.totalorder %s38, 1
      %p428 = por %p426, %p427
      %p430 = scmp.ne.s32.totalorder %s415, %s429
      %p431 = scmp.eq.s32.totalorder %s38, 0
      %p432 = por %p430, %p431
      %s434 = sadd.s32 %s433, 1
      %p437 = scmp.eq.s32.totalorder %s32, 1
      %p438 = scmp.ne.s32.totalorder %s433, %s435
      %p439 = scmp.eq.s32.totalorder %s32, 0
      %p440 = por %p438, %p439
      %p441 = scmp.ne.s32.totalorder %s433, %s435
      %p442 = scmp.eq.s32.totalorder %s37, 1
      %p443 = por %p441, %p442
      %p444 = scmp.ne.s32.totalorder %s435, %s436
      %p445 = scmp.eq.s32.totalorder %s37, 0
      %p446 = por %p444, %p445
      %p447 = scmp.ne.s32.totalorder %s435, %s436
      %p448 = scmp.eq.s32.totalorder %s38, 1
      %p449 = por %p447, %p448
      %p451 = scmp.ne.s32.totalorder %s436, %s450
      %p452 = scmp.eq.s32.totalorder %s38, 0
      %p453 = por %p451, %p452
      %s455 = sadd.s32 %s454, 1
      %p458 = scmp.eq.s32.totalorder %s32, 1
      %p459 = scmp.ne.s32.totalorder %s454, %s456
      %p460 = scmp.eq.s32.totalorder %s32, 0
      %p461 = por %p459, %p460
      %p462 = scmp.ne.s32.totalorder %s454, %s456
      %p463 = scmp.eq.s32.totalorder %s37, 1
      %p464 = por %p462, %p463
      %p465 = scmp.ne.s32.totalorder %s456, %s457
      %p466 = scmp.eq.s32.totalorder %s37, 0
      %p467 = por %p465, %p466
      %p468 = scmp.ne.s32.totalorder %s456, %s457
      %p469 = scmp.eq.s32.totalorder %s38, 1
      %p470 = por %p468, %p469
      %p472 = scmp.ne.s32.totalorder %s457, %s471
      %p473 = scmp.eq.s32.totalorder %s38, 0
      %p474 = por %p472, %p473
      %s476 = sadd.s32 %s475, 1
      %p479 = scmp.eq.s32.totalorder %s32, 1
      %p480 = scmp.ne.s32.totalorder %s475, %s477
      %p481 = scmp.eq.s32.totalorder %s32, 0
      %p482 = por %p480, %p481
      %p483 = scmp.ne.s32.totalorder %s475, %s477
      %p484 = scmp.eq.s32.totalorder %s37, 1
      %p485 = por %p483, %p484
      %p486 = scmp.ne.s32.totalorder %s477, %s478
      %p487 = scmp.eq.s32.totalorder %s37, 0
      %p488 = por %p486, %p487
      %p489 = scmp.ne.s32.totalorder %s477, %s478
      %p490 = scmp.eq.s32.totalorder %s38, 1
      %p491 = por %p489, %p490
      %p493 = scmp.ne.s32.totalorder %s478, %s492
      %p494 = scmp.eq.s32.totalorder %s38, 0
      %p495 = por %p493, %p494
      %s497 = sadd.s32 %s496, 1
      %p500 = scmp.eq.s32.totalorder %s32, 1
      %p501 = scmp.ne.s32.totalorder %s496, %s498
      %p502 = scmp.eq.s32.totalorder %s32, 0
      %p503 = por %p501, %p502
      %p504 = scmp.ne.s32.totalorder %s496, %s498
      %p505 = scmp.eq.s32.totalorder %s37, 1
      %p506 = por %p504, %p505
      %p507 = scmp.ne.s32.totalorder %s498, %s499
      %p508 = scmp.eq.s32.totalorder %s37, 0
      %p509 = por %p507, %p508
      %p510 = scmp.ne.s32.totalorder %s498, %s499
      %p511 = scmp.eq.s32.totalorder %s38, 1
      %p512 = por %p510, %p511
      %p514 = scmp.ne.s32.totalorder %s499, %s513
      %p515 = scmp.eq.s32.totalorder %s38, 0
      %p516 = por %p514, %p515
      %s518 = sadd.s32 %s517, 1
      %p521 = scmp.eq.s32.totalorder %s32, 1
      %p522 = scmp.ne.s32.totalorder %s517, %s519
      %p523 = scmp.eq.s32.totalorder %s32, 0
      %p524 = por %p522, %p523
      %p525 = scmp.ne.s32.totalorder %s517, %s519
      %p526 = scmp.eq.s32.totalorder %s37, 1
      %p527 = por %p525, %p526
      %p528 = scmp.ne.s32.totalorder %s519, %s520
      %p529 = scmp.eq.s32.totalorder %s37, 0
      %p530 = por %p528, %p529
      %p531 = scmp.ne.s32.totalorder %s519, %s520
      %p532 = scmp.eq.s32.totalorder %s38, 1
      %p533 = por %p531, %p532
      %p535 = scmp.ne.s32.totalorder %s520, %s534
      %p536 = scmp.eq.s32.totalorder %s38, 0
      %p537 = por %p535, %p536
      %s538 = ssub.s32 %s32, %s39
      %p539 = scmp.eq.s32.totalorder %s538, 0
      %s541 = sadd.s32 %s540, 1
      %s542 = scalar_select %p539, %s540, %s541
      %p545 = pneg %p539
      %p546 = scmp.eq.s32.totalorder %s32, 1
      %p547 = por %p545, %p546
      %p548 = scmp.ne.s32.totalorder %s540, %s543
      %p549 = scmp.eq.s32.totalorder %s32, 0
      %p550 = por %p548, %p549
      %p551 = scmp.ne.s32.totalorder %s540, %s543
      %p552 = scmp.eq.s32.totalorder %s37, 1
      %p553 = por %p551, %p552
      %p554 = scmp.ne.s32.totalorder %s543, %s544
      %p555 = scmp.eq.s32.totalorder %s37, 0
      %p556 = por %p554, %p555
      %p557 = scmp.ne.s32.totalorder %s543, %s544
      %p558 = scmp.eq.s32.totalorder %s38, 1
      %p559 = por %p557, %p558
      %p561 = scmp.ne.s32.totalorder %s544, %s560
      %p562 = scmp.eq.s32.totalorder %s38, 0
      %p563 = por %p561, %p562
      %p564 = scmp.le.s32.totalorder 1, %s32
      %p565 = scmp.lt.s32.totalorder %s32, 3
      %p566 = pnand %p564, %p565
      %p567 = pneg %p566
      // Predicated region
      $region9: #{tpu_custom_call.1} parent=5 // pred_check
        _
      $region10: #{tpu_custom_call.1} parent=5 // pred_check_branch
        %569 = sbr.rel (%p566) target = $region12
      $region11: #{tpu_custom_call.1} parent=5 // pred_region
        %s570 = ssub.s32 %s32, 1
        // Predicated region
        $region13: #{tpu_custom_call.1} parent=11 // pred_check
          %p571 = pneg %p131
        $region14: #{tpu_custom_call.1} parent=11 // pred_check_branch
          %573 = sbr.rel (%p571) target = $region16
        $region15: #{tpu_custom_call.1} parent=11 // pred_region
          _
        $region16: #{tpu_custom_call.1} parent=11 // pred_fallthru
          _
        // Predicated region
        $region17: #{tpu_custom_call.1} parent=11 // pred_check
          %p574 = pneg %p152
        $region18: #{tpu_custom_call.1} parent=11 // pred_check_branch
          %576 = sbr.rel (%p574) target = $region20
        $region19: #{tpu_custom_call.1} parent=11 // pred_region
          _
        $region20: #{tpu_custom_call.1} parent=11 // pred_fallthru
          _
        // Predicated region
        $region21: #{tpu_custom_call.1} parent=11 // pred_check
          %p577 = pneg %p173
        $region22: #{tpu_custom_call.1} parent=11 // pred_check_branch
          %579 = sbr.rel (%p577) target = $region24
        $region23: #{tpu_custom_call.1} parent=11 // pred_region
          _
        $region24: #{tpu_custom_call.1} parent=11 // pred_fallthru
          _
        // Predicated region
        $region25: #{tpu_custom_call.1} parent=11 // pred_check
          %p580 = pneg %p194
        $region26: #{tpu_custom_call.1} parent=11 // pred_check_branch
          %582 = sbr.rel (%p580) target = $region28
        $region27: #{tpu_custom_call.1} parent=11 // pred_region
          _
        $region28: #{tpu_custom_call.1} parent=11 // pred_fallthru
          _
        // Predicated region
        $region29: #{tpu_custom_call.1} parent=11 // pred_check
          %p583 = pneg %p215
        $region30: #{tpu_custom_call.1} parent=11 // pred_check_branch
          %585 = sbr.rel (%p583) target = $region32
        $region31: #{tpu_custom_call.1} parent=11 // pred_region
          _
        $region32: #{tpu_custom_call.1} parent=11 // pred_fallthru
          _
        // Predicated region
        $region33: #{tpu_custom_call.1} parent=11 // pred_check
          %p586 = pneg %p236
        $region34: #{tpu_custom_call.1} parent=11 // pred_check_branch
          %588 = sbr.rel (%p586) target = $region36
        $region35: #{tpu_custom_call.1} parent=11 // pred_region
          _
        $region36: #{tpu_custom_call.1} parent=11 // pred_fallthru
          _
        // Predicated region
        $region37: #{tpu_custom_call.1} parent=11 // pred_check
          %p589 = pneg %p257
        $region38: #{tpu_custom_call.1} parent=11 // pred_check_branch
          %591 = sbr.rel (%p589) target = $region40
        $region39: #{tpu_custom_call.1} parent=11 // pred_region
          _
        $region40: #{tpu_custom_call.1} parent=11 // pred_fallthru
          _
        // Predicated region
        $region41: #{tpu_custom_call.1} parent=11 // pred_check
          %p592 = pneg %p278
        $region42: #{tpu_custom_call.1} parent=11 // pred_check_branch
          %594 = sbr.rel (%p592) target = $region44
        $region43: #{tpu_custom_call.1} parent=11 // pred_region
          _
        $region44: #{tpu_custom_call.1} parent=11 // pred_fallthru
          _
        // Predicated region
        $region45: #{tpu_custom_call.1} parent=11 // pred_check
          %p595 = pneg %p299
        $region46: #{tpu_custom_call.1} parent=11 // pred_check_branch
          %597 = sbr.rel (%p595) target = $region48
        $region47: #{tpu_custom_call.1} parent=11 // pred_region
          _
        $region48: #{tpu_custom_call.1} parent=11 // pred_fallthru
          _
        // Predicated region
        $region49: #{tpu_custom_call.1} parent=11 // pred_check
          %p598 = pneg %p320
        $region50: #{tpu_custom_call.1} parent=11 // pred_check_branch
          %600 = sbr.rel (%p598) target = $region52
        $region51: #{tpu_custom_call.1} parent=11 // pred_region
          _
        $region52: #{tpu_custom_call.1} parent=11 // pred_fallthru
          _
        // Predicated region
        $region53: #{tpu_custom_call.1} parent=11 // pred_check
          %p601 = pneg %p341
        $region54: #{tpu_custom_call.1} parent=11 // pred_check_branch
          %603 = sbr.rel (%p601) target = $region56
        $region55: #{tpu_custom_call.1} parent=11 // pred_region
          _
        $region56: #{tpu_custom_call.1} parent=11 // pred_fallthru
          _
        // Predicated region
        $region57: #{tpu_custom_call.1} parent=11 // pred_check
          %p604 = pneg %p362
        $region58: #{tpu_custom_call.1} parent=11 // pred_check_branch
          %606 = sbr.rel (%p604) target = $region60
        $region59: #{tpu_custom_call.1} parent=11 // pred_region
          _
        $region60: #{tpu_custom_call.1} parent=11 // pred_fallthru
          _
        // Predicated region
        $region61: #{tpu_custom_call.1} parent=11 // pred_check
          %p607 = pneg %p383
        $region62: #{tpu_custom_call.1} parent=11 // pred_check_branch
          %609 = sbr.rel (%p607) target = $region64
        $region63: #{tpu_custom_call.1} parent=11 // pred_region
          _
        $region64: #{tpu_custom_call.1} parent=11 // pred_fallthru
          _
        // Predicated region
        $region65: #{tpu_custom_call.1} parent=11 // pred_check
          %p610 = pneg %p404
        $region66: #{tpu_custom_call.1} parent=11 // pred_check_branch
          %612 = sbr.rel (%p610) target = $region68
        $region67: #{tpu_custom_call.1} parent=11 // pred_region
          _
        $region68: #{tpu_custom_call.1} parent=11 // pred_fallthru
          _
        // Predicated region
        $region69: #{tpu_custom_call.1} parent=11 // pred_check
          %p613 = pneg %p425
        $region70: #{tpu_custom_call.1} parent=11 // pred_check_branch
          %615 = sbr.rel (%p613) target = $region72
        $region71: #{tpu_custom_call.1} parent=11 // pred_region
          _
        $region72: #{tpu_custom_call.1} parent=11 // pred_fallthru
          _
        // Predicated region
        $region73: #{tpu_custom_call.1} parent=11 // pred_check
          %p616 = pneg %p446
        $region74: #{tpu_custom_call.1} parent=11 // pred_check_branch
          %618 = sbr.rel (%p616) target = $region76
        $region75: #{tpu_custom_call.1} parent=11 // pred_region
          _
        $region76: #{tpu_custom_call.1} parent=11 // pred_fallthru
          _
        // Predicated region
        $region77: #{tpu_custom_call.1} parent=11 // pred_check
          %p619 = pneg %p467
        $region78: #{tpu_custom_call.1} parent=11 // pred_check_branch
          %621 = sbr.rel (%p619) target = $region80
        $region79: #{tpu_custom_call.1} parent=11 // pred_region
          _
        $region80: #{tpu_custom_call.1} parent=11 // pred_fallthru
          _
        // Predicated region
        $region81: #{tpu_custom_call.1} parent=11 // pred_check
          %p622 = pneg %p488
        $region82: #{tpu_custom_call.1} parent=11 // pred_check_branch
          %624 = sbr.rel (%p622) target = $region84
        $region83: #{tpu_custom_call.1} parent=11 // pred_region
          _
        $region84: #{tpu_custom_call.1} parent=11 // pred_fallthru
          _
        // Predicated region
        $region85: #{tpu_custom_call.1} parent=11 // pred_check
          %p625 = pneg %p509
        $region86: #{tpu_custom_call.1} parent=11 // pred_check_branch
          %627 = sbr.rel (%p625) target = $region88
        $region87: #{tpu_custom_call.1} parent=11 // pred_region
          _
        $region88: #{tpu_custom_call.1} parent=11 // pred_fallthru
          _
        // Predicated region
        $region89: #{tpu_custom_call.1} parent=11 // pred_check
          %p628 = pneg %p530
        $region90: #{tpu_custom_call.1} parent=11 // pred_check_branch
          %630 = sbr.rel (%p628) target = $region92
        $region91: #{tpu_custom_call.1} parent=11 // pred_region
          _
        $region92: #{tpu_custom_call.1} parent=11 // pred_fallthru
          _
      $region12: #{tpu_custom_call.1} parent=5 // pred_fallthru
        _
      %p631 = scmp.lt.s32.totalorder %s32, 2
      // Predicated region
      $region93: #{tpu_custom_call.1} parent=5 // pred_check
        %p632 = pneg %p631
      $region94: #{tpu_custom_call.1} parent=5 // pred_check_branch
        %634 = sbr.rel (%p632) target = $region96
      $region95: #{tpu_custom_call.1} parent=5 // pred_region
        // Predicated region
        $region97: #{tpu_custom_call.1} parent=95 // pred_check
          %p635 = pneg %p52
        $region98: #{tpu_custom_call.1} parent=95 // pred_check_branch
          %637 = sbr.rel (%p635) target = $region100
        $region99: #{tpu_custom_call.1} parent=95 // pred_region
          %s638 = smul.u32 8, %s32
          %p639 = scmp.lt.s32.totalorder %s638, 15
          %s640 = scalar_select %p639, %s638, 15
          %s641 = smul.addr %s640, 8
          %s642 = scalar_lea.vmem %s0, %s641
          %s643 = smul.u32 8, %s32
        $region100: #{tpu_custom_call.1} parent=95 // pred_fallthru
          _
        // Predicated region
        $region101: #{tpu_custom_call.1} parent=95 // pred_check
          %p644 = pneg %p78
        $region102: #{tpu_custom_call.1} parent=95 // pred_check_branch
          %646 = sbr.rel (%p644) target = $region104
        $region103: #{tpu_custom_call.1} parent=95 // pred_region
          %p647 = scmp.lt.s32.totalorder %s32, 1
          %s648 = scalar_select %p647, %s32, 1
          %s649 = smul.addr %s648, 8
          %s650 = scalar_lea.vmem %s1, %s649
        $region104: #{tpu_custom_call.1} parent=95 // pred_fallthru
          _
        // Predicated region
        $region105: #{tpu_custom_call.1} parent=95 // pred_check
          %p651 = pneg %p104
        $region106: #{tpu_custom_call.1} parent=95 // pred_check_branch
          %653 = sbr.rel (%p651) target = $region108
        $region107: #{tpu_custom_call.1} parent=95 // pred_region
          %p654 = scmp.lt.s32.totalorder %s32, 1
          %s655 = scalar_select %p654, %s32, 1
          %s656 = smul.addr %s655, 8
          %s657 = scalar_lea.vmem %s2, %s656
        $region108: #{tpu_custom_call.1} parent=95 // pred_fallthru
          _
      $region96: #{tpu_custom_call.1} parent=5 // pred_fallthru
        _
      %p658 = scmp.le.s32.totalorder 1, %s32
      %p659 = scmp.lt.s32.totalorder %s32, 3
      %p660 = pnand %p658, %p659
      %p661 = pneg %p660
      // Predicated region
      $region109: #{tpu_custom_call.1} parent=5 // pred_check
        _
      $region110: #{tpu_custom_call.1} parent=5 // pred_check_branch
        %663 = sbr.rel (%p660) target = $region112
      $region111: #{tpu_custom_call.1} parent=5 // pred_region
        %s664 = ssub.s32 %s32, 1
        %s665 = smul.u32 8, %s37
        %p666 = scmp.lt.s32.totalorder %s665, 15
        %s667 = scalar_select %p666, %s665, 15
        %s668 = smul.addr %s667, 8
        %s669 = scalar_lea.vmem %s0, %s668
        %p670 = pneg %p58
        %p671 = pneg %p55
        %p672 = scmp.lt.s32.totalorder %s37, 1
        %s673 = scalar_select %p672, %s37, 1
        %s674 = smul.addr %s673, 8
        %s675 = scalar_lea.vmem %s1, %s674
        %p676 = pneg %p84
        %p677 = pneg %p81
        %p678 = scmp.lt.s32.totalorder %s37, 1
        %s679 = scalar_select %p678, %s37, 1
        %s680 = smul.addr %s679, 8
        %s681 = scalar_lea.vmem %s2, %s680
        %p682 = pneg %p110
        %p683 = pneg %p107
        %p684 = pneg %p131
        %p685 = pneg %p128
        %p686 = pneg %p152
        %p687 = pneg %p149
        %p688 = pneg %p173
        %p689 = pneg %p170
        %p690 = pneg %p194
        %p691 = pneg %p191
        %p692 = pneg %p215
        %p693 = pneg %p212
        %p694 = pneg %p236
        %p695 = pneg %p233
        %p696 = pneg %p257
        %p697 = pneg %p254
        %p698 = pneg %p278
        %p699 = pneg %p275
        %p700 = pneg %p299
        %p701 = pneg %p296
        %p702 = pneg %p320
        %p703 = pneg %p317
        %p704 = pneg %p341
        %p705 = pneg %p338
        %p706 = pneg %p362
        %p707 = pneg %p359
        %p708 = pneg %p383
        %p709 = pneg %p380
        %p710 = pneg %p404
        %p711 = pneg %p401
        %p712 = pneg %p425
        %p713 = pneg %p422
        %p714 = pneg %p446
        %p715 = pneg %p443
        %p716 = pneg %p467
        %p717 = pneg %p464
        %p718 = pneg %p488
        %p719 = pneg %p485
        %p720 = pneg %p509
        %p721 = pneg %p506
        %p722 = pneg %p530
        %p723 = pneg %p527
        %p724 = pneg %p556
        %p725 = pneg %p553
        %s726 = sand.u32 %s543, 1
        %s727 = scalar_lea.sflag [#allocation3], %s726
        %s728 = sand.u32 %s543, 1
        %s729 = smul.addr %s728, 8
        %s730 = scalar_lea.vmem [#allocation2], %s729
        %s731 = smul.u32 8, %s37
        %p732 = scmp.lt.s32.totalorder %s731, 15
        %s733 = scalar_select %p732, %s731, 15
        %s734 = smul.addr %s733, 8
        %s735 = scalar_lea.vmem %s0, %s734
        %s736 = smul.u32 8, %s37
        %p737 = scmp.lt.s32.totalorder %s37, 1
        %s738 = scalar_select %p737, %s37, 1
        %s739 = smul.addr %s738, 8
        %s740 = scalar_lea.vmem %s1, %s739
        %p741 = scmp.lt.s32.totalorder %s37, 1
        %s742 = scalar_select %p741, %s37, 1
        %s743 = smul.addr %s742, 8
        %s744 = scalar_lea.vmem %s2, %s743
        %v745 = vld [vmem:[%s735] sm:$0xff]
        %v746 = vld [vmem:[%s735 + $0x8] sm:$0xff]
        %v747 = vld [vmem:[%s735 + $0x10] sm:$0xff]
        %v748 = vld [vmem:[%s735 + $0x18] sm:$0xff]
        %v749 = vld [vmem:[%s735 + $0x20] sm:$0xff]
        %v750 = vld [vmem:[%s735 + $0x28] sm:$0xff]
        %v751 = vld [vmem:[%s735 + $0x30] sm:$0xff]
        %v752 = vld [vmem:[%s735 + $0x38] sm:$0xff]
        %v753 = vld [vmem:[%s740] sm:$0xff]
        %v754 = vld [vmem:[%s5] sm:$0xff]
        %v755 = vld [vmem:[%s5 + $0x8] sm:$0xff]
        %v756 = vld [vmem:[%s5 + $0x10] sm:$0xff]
        %v757 = vld [vmem:[%s5 + $0x18] sm:$0xff]
        %v758 = vld [vmem:[%s6] sm:$0x1]
        %v760 = vlaneseq
        %v761 = vshrl.u32 %v760, 7
        %v762 = vsub.s32 0, %v761
        %v763 = vrot.slane %v758, %v762
        %vm765 = vcmask 261120
        %v767 = vsel %vm765, %v753, 0
        %769 = vmatprep.subr.mxu0 0.0
        %770 = vmatpush1.msra.mxu0 %v754
        %771 = vmatprep.subr.mxu0 0.0
        %772 = vmatpush1.msra.mxu0 %v755
        %773 = vmatprep.subr.mxu0 0.0
        %774 = vmatpush1.msra.mxu0 %v756
        %775 = vmatprep.subr.mxu0 0.0
        %776 = vmatpush1.msra.mxu0 %v757
        %777 = vmatprep.subr.mxu0 0.0
        %778 = vmatpush1.msra.mxu0 0.0
        %779 = vmatprep.subr.mxu0 0.0
        %780 = vmatpush1.msra.mxu0 0.0
        %781 = vmatprep.subr.mxu0 0.0
        %782 = vmatpush1.msra.mxu0 0.0
        %783 = vmatprep.subr.mxu0 0.0
        %784 = vmatpush1.msra.mxu0 0.0
        %785 = vmatprep.subr.mxu0 0.0
        %786 = vmatpush1.msra.mxu0 0.0
        %787 = vmatprep.subr.mxu0 0.0
        %788 = vmatpush1.msra.mxu0 0.0
        %789 = vmatprep.subr.mxu0 0.0
        %790 = vmatpush1.msra.mxu0 0.0
        %791 = vmatprep.subr.mxu0 0.0
        %792 = vmatpush1.msra.mxu0 0.0
        %793 = vmatprep.subr.mxu0 0.0
        %794 = vmatpush1.msra.mxu0 0.0
        %795 = vmatprep.subr.mxu0 0.0
        %796 = vmatpush1.msra.mxu0 0.0
        %797 = vmatprep.subr.mxu0 0.0
        %798 = vmatpush1.msra.mxu0 0.0
        %799 = vmatprep.subr.mxu0 0.0
        %800 = vmatpush1.msra.mxu0 0.0
        %801 = vmatprep.subr.mxu0 0.0
        %802 = vmatpush1.msra.mxu0 0.0
        %803 = vmatprep.subr.mxu0 0.0
        %804 = vmatpush1.msra.mxu0 0.0
        %805 = vmatprep.subr.mxu0 0.0
        %806 = vmatpush1.msra.mxu0 0.0
        %807 = vmatprep.subr.mxu0 0.0
        %808 = vmatpush1.msra.mxu0 0.0
        %809 = vmatprep.subr.mxu0 0.0
        %810 = vmatpush1.msra.mxu0 0.0
        %811 = vmatprep.subr.mxu0 0.0
        %812 = vmatpush1.msra.mxu0 0.0
        %813 = vmatprep.subr.mxu0 0.0
        %814 = vmatpush1.msra.mxu0 0.0
        %815 = vmatprep.subr.mxu0 0.0
        %816 = vmatpush1.msra.mxu0 0.0
        %817 = vmatprep.subr.mxu0 0.0
        %818 = vmatpush1.msra.mxu0 0.0
        %819 = vmatprep.subr.mxu0 0.0
        %820 = vmatpush1.msra.mxu0 0.0
        %821 = vmatprep.subr.mxu0 0.0
        %822 = vmatpush1.msra.mxu0 0.0
        %823 = vmatprep.subr.mxu0 0.0
        %824 = vmatpush1.msra.mxu0 0.0
        %825 = vmatprep.subr.mxu0 0.0
        %826 = vmatpush1.msra.mxu0 0.0
        %827 = vmatprep.subr.mxu0 0.0
        %828 = vmatpush1.msra.mxu0 0.0
        %829 = vmatprep.subr.mxu0 0.0
        %830 = vmatpush1.msra.mxu0 0.0
        %831 = vmatprep.subr.mxu0 0.0
        %832 = vmatpush1.msra.mxu0 0.0
        %833 = vmatprep.mubr.f32.mxu0 0.0
        %834 = vmatmul.mubr.f32.gmra.mrb[0].mxu0 %v767
        %v835 = vpop.f32.mrb[0].mxu0
        %v836 = vadd.f32 %v763, %v835
        %v837 = vpop.f32.mrb[0].mxu0
        %838 = vdwg.mxu0
        %v839 = vld [vmem:[%s7] sm:$0xff]
        %v840 = vld [vmem:[%s7 + $0x8] sm:$0xff]
        %v841 = vld [vmem:[%s7 + $0x10] sm:$0xff]
        %v842 = vld [vmem:[%s7 + $0x18] sm:$0xff]
        %v843 = vld [vmem:[%s8] sm:$0x1]
        %v845 = vlaneseq
        %v846 = vshrl.u32 %v845, 7
        %v847 = vsub.s32 0, %v846
        %v848 = vrot.slane %v843, %v847
        %v851 = vsel %vm765, %v745, 0
        %v854 = vsel %vm765, %v746, 0
        %v857 = vsel %vm765, %v747, 0
        %v860 = vsel %vm765, %v748, 0
        %v863 = vsel %vm765, %v749, 0
        %v866 = vsel %vm765, %v750, 0
        %v869 = vsel %vm765, %v751, 0
        %v872 = vsel %vm765, %v752, 0
        %874 = vmatprep.subr.mxu0 0.0
        %875 = vmatpush1.msra.mxu0 %v839
        %876 = vmatprep.subr.mxu0 0.0
        %877 = vmatpush1.msra.mxu0 %v840
        %878 = vmatprep.subr.mxu0 0.0
        %879 = vmatpush1.msra.mxu0 %v841
        %880 = vmatprep.subr.mxu0 0.0
        %881 = vmatpush1.msra.mxu0 %v842
        %882 = vmatprep.subr.mxu0 0.0
        %883 = vmatpush1.msra.mxu0 0.0
        %884 = vmatprep.subr.mxu0 0.0
        %885 = vmatpush1.msra.mxu0 0.0
        %886 = vmatprep.subr.mxu0 0.0
        %887 = vmatpush1.msra.mxu0 0.0
        %888 = vmatprep.subr.mxu0 0.0
        %889 = vmatpush1.msra.mxu0 0.0
        %890 = vmatprep.subr.mxu0 0.0
        %891 = vmatpush1.msra.mxu0 0.0
        %892 = vmatprep.subr.mxu0 0.0
        %893 = vmatpush1.msra.mxu0 0.0
        %894 = vmatprep.subr.mxu0 0.0
        %895 = vmatpush1.msra.mxu0 0.0
        %896 = vmatprep.subr.mxu0 0.0
        %897 = vmatpush1.msra.mxu0 0.0
        %898 = vmatprep.subr.mxu0 0.0
        %899 = vmatpush1.msra.mxu0 0.0
        %900 = vmatprep.subr.mxu0 0.0
        %901 = vmatpush1.msra.mxu0 0.0
        %902 = vmatprep.subr.mxu0 0.0
        %903 = vmatpush1.msra.mxu0 0.0
        %904 = vmatprep.subr.mxu0 0.0
        %905 = vmatpush1.msra.mxu0 0.0
        %906 = vmatprep.subr.mxu0 0.0
        %907 = vmatpush1.msra.mxu0 0.0
        %908 = vmatprep.subr.mxu0 0.0
        %909 = vmatpush1.msra.mxu0 0.0
        %910 = vmatprep.subr.mxu0 0.0
        %911 = vmatpush1.msra.mxu0 0.0
        %912 = vmatprep.subr.mxu0 0.0
        %913 = vmatpush1.msra.mxu0 0.0
        %914 = vmatprep.subr.mxu0 0.0
        %915 = vmatpush1.msra.mxu0 0.0
        %916 = vmatprep.subr.mxu0 0.0
        %917 = vmatpush1.msra.mxu0 0.0
        %918 = vmatprep.subr.mxu0 0.0
        %919 = vmatpush1.msra.mxu0 0.0
        %920 = vmatprep.subr.mxu0 0.0
        %921 = vmatpush1.msra.mxu0 0.0
        %922 = vmatprep.subr.mxu0 0.0
        %923 = vmatpush1.msra.mxu0 0.0
        %924 = vmatprep.subr.mxu0 0.0
        %925 = vmatpush1.msra.mxu0 0.0
        %926 = vmatprep.subr.mxu0 0.0
        %927 = vmatpush1.msra.mxu0 0.0
        %928 = vmatprep.subr.mxu0 0.0
        %929 = vmatpush1.msra.mxu0 0.0
        %930 = vmatprep.subr.mxu0 0.0
        %931 = vmatpush1.msra.mxu0 0.0
        %932 = vmatprep.subr.mxu0 0.0
        %933 = vmatpush1.msra.mxu0 0.0
        %934 = vmatprep.subr.mxu0 0.0
        %935 = vmatpush1.msra.mxu0 0.0
        %936 = vmatprep.subr.mxu0 0.0
        %937 = vmatpush1.msra.mxu0 0.0
        %938 = vmatprep.mubr.f32.mxu0 0.0
        %939 = vmatmul.mubr.f32.gmra.mrb[0].mxu0 %v851
        %v940 = vpop.f32.mrb[0].mxu0
        %v941 = vadd.f32 %v848, %v940
        %v942 = vpop.f32.mrb[0].mxu0
        %943 = vmatprep.mubr.f32.mxu0 0.0
        %944 = vmatmul.mubr.f32.gmra.mrb[0].mxu0 %v854
        %v945 = vpop.f32.mrb[0].mxu0
        %v946 = vadd.f32 %v848, %v945
        %v947 = vpop.f32.mrb[0].mxu0
        %948 = vmatprep.mubr.f32.mxu0 0.0
        %949 = vmatmul.mubr.f32.gmra.mrb[0].mxu0 %v857
        %v950 = vpop.f32.mrb[0].mxu0
        %v951 = vadd.f32 %v848, %v950
        %v952 = vpop.f32.mrb[0].mxu0
        %953 = vmatprep.mubr.f32.mxu0 0.0
        %954 = vmatmul.mubr.f32.gmra.mrb[0].mxu0 %v860
        %v955 = vpop.f32.mrb[0].mxu0
        %v956 = vadd.f32 %v848, %v955
        %v957 = vpop.f32.mrb[0].mxu0
        %958 = vmatprep.mubr.f32.mxu0 0.0
        %959 = vmatmul.mubr.f32.gmra.mrb[0].mxu0 %v863
        %v960 = vpop.f32.mrb[0].mxu0
        %v961 = vadd.f32 %v848, %v960
        %v962 = vpop.f32.mrb[0].mxu0
        %963 = vmatprep.mubr.f32.mxu0 0.0
        %964 = vmatmul.mubr.f32.gmra.mrb[0].mxu0 %v866
        %v965 = vpop.f32.mrb[0].mxu0
        %v966 = vadd.f32 %v848, %v965
        %v967 = vpop.f32.mrb[0].mxu0
        %968 = vmatprep.mubr.f32.mxu0 0.0
        %969 = vmatmul.mubr.f32.gmra.mrb[0].mxu0 %v869
        %v970 = vpop.f32.mrb[0].mxu0
        %v971 = vadd.f32 %v848, %v970
        %v972 = vpop.f32.mrb[0].mxu0
        %973 = vmatprep.mubr.f32.mxu0 0.0
        %974 = vmatmul.mubr.f32.gmra.mrb[0].mxu0 %v872
        %v975 = vpop.f32.mrb[0].mxu0
        %v976 = vadd.f32 %v848, %v975
        %v977 = vpop.f32.mrb[0].mxu0
        %978 = vdwg.mxu0
        %v979 = vld [vmem:[%s9] sm:$0xff]
        %v980 = vld [vmem:[%s9 + $0x8] sm:$0xff]
        %v981 = vld [vmem:[%s9 + $0x10] sm:$0xff]
        %v982 = vld [vmem:[%s9 + $0x18] sm:$0xff]
        %v983 = vld [vmem:[%s10] sm:$0x1]
        %v985 = vlaneseq
        %v986 = vshrl.u32 %v985, 7
        %v987 = vsub.s32 0, %v986
        %v988 = vrot.slane %v983, %v987
        %990 = vmatprep.subr.mxu0 0.0
        %991 = vmatpush1.msra.mxu0 %v979
        %992 = vmatprep.subr.mxu0 0.0
        %993 = vmatpush1.msra.mxu0 %v980
        %994 = vmatprep.subr.mxu0 0.0
        %995 = vmatpush1.msra.mxu0 %v981
        %996 = vmatprep.subr.mxu0 0.0
        %997 = vmatpush1.msra.mxu0 %v982
        %998 = vmatprep.subr.mxu0 0.0
        %999 = vmatpush1.msra.mxu0 0.0
        %1000 = vmatprep.subr.mxu0 0.0
        %1001 = vmatpush1.msra.mxu0 0.0
        %1002 = vmatprep.subr.mxu0 0.0
        %1003 = vmatpush1.msra.mxu0 0.0
        %1004 = vmatprep.subr.mxu0 0.0
        %1005 = vmatpush1.msra.mxu0 0.0
        %1006 = vmatprep.subr.mxu0 0.0
        %1007 = vmatpush1.msra.mxu0 0.0
        %1008 = vmatprep.subr.mxu0 0.0
        %1009 = vmatpush1.msra.mxu0 0.0
        %1010 = vmatprep.subr.mxu0 0.0
        %1011 = vmatpush1.msra.mxu0 0.0
        %1012 = vmatprep.subr.mxu0 0.0
        %1013 = vmatpush1.msra.mxu0 0.0
        %1014 = vmatprep.subr.mxu0 0.0
        %1015 = vmatpush1.msra.mxu0 0.0
        %1016 = vmatprep.subr.mxu0 0.0
        %1017 = vmatpush1.msra.mxu0 0.0
        %1018 = vmatprep.subr.mxu0 0.0
        %1019 = vmatpush1.msra.mxu0 0.0
        %1020 = vmatprep.subr.mxu0 0.0
        %1021 = vmatpush1.msra.mxu0 0.0
        %1022 = vmatprep.subr.mxu0 0.0
        %1023 = vmatpush1.msra.mxu0 0.0
        %1024 = vmatprep.subr.mxu0 0.0
        %1025 = vmatpush1.msra.mxu0 0.0
        %1026 = vmatprep.subr.mxu0 0.0
        %1027 = vmatpush1.msra.mxu0 0.0
        %1028 = vmatprep.subr.mxu0 0.0
        %1029 = vmatpush1.msra.mxu0 0.0
        %1030 = vmatprep.subr.mxu0 0.0
        %1031 = vmatpush1.msra.mxu0 0.0
        %1032 = vmatprep.subr.mxu0 0.0
        %1033 = vmatpush1.msra.mxu0 0.0
        %1034 = vmatprep.subr.mxu0 0.0
        %1035 = vmatpush1.msra.mxu0 0.0
        %1036 = vmatprep.subr.mxu0 0.0
        %1037 = vmatpush1.msra.mxu0 0.0
        %1038 = vmatprep.subr.mxu0 0.0
        %1039 = vmatpush1.msra.mxu0 0.0
        %1040 = vmatprep.subr.mxu0 0.0
        %1041 = vmatpush1.msra.mxu0 0.0
        %1042 = vmatprep.subr.mxu0 0.0
        %1043 = vmatpush1.msra.mxu0 0.0
        %1044 = vmatprep.subr.mxu0 0.0
        %1045 = vmatpush1.msra.mxu0 0.0
        %1046 = vmatprep.subr.mxu0 0.0
        %1047 = vmatpush1.msra.mxu0 0.0
        %1048 = vmatprep.subr.mxu0 0.0
        %1049 = vmatpush1.msra.mxu0 0.0
        %1050 = vmatprep.subr.mxu0 0.0
        %1051 = vmatpush1.msra.mxu0 0.0
        %1052 = vmatprep.subr.mxu0 0.0
        %1053 = vmatpush1.msra.mxu0 0.0
        %1054 = vmatprep.mubr.f32.mxu0 0.0
        %1055 = vmatmul.mubr.f32.gmra.mrb[0].mxu0 %v851
        %v1056 = vpop.f32.mrb[0].mxu0
        %v1057 = vadd.f32 %v988, %v1056
        %v1058 = vpop.f32.mrb[0].mxu0
        %1059 = vmatprep.mubr.f32.mxu0 0.0
        %1060 = vmatmul.mubr.f32.gmra.mrb[0].mxu0 %v854
        %v1061 = vpop.f32.mrb[0].mxu0
        %v1062 = vadd.f32 %v988, %v1061
        %v1063 = vpop.f32.mrb[0].mxu0
        %1064 = vmatprep.mubr.f32.mxu0 0.0
        %1065 = vmatmul.mubr.f32.gmra.mrb[0].mxu0 %v857
        %v1066 = vpop.f32.mrb[0].mxu0
        %v1067 = vadd.f32 %v988, %v1066
        %v1068 = vpop.f32.mrb[0].mxu0
        %1069 = vmatprep.mubr.f32.mxu0 0.0
        %1070 = vmatmul.mubr.f32.gmra.mrb[0].mxu0 %v860
        %v1071 = vpop.f32.mrb[0].mxu0
        %v1072 = vadd.f32 %v988, %v1071
        %v1073 = vpop.f32.mrb[0].mxu0
        %1074 = vmatprep.mubr.f32.mxu0 0.0
        %1075 = vmatmul.mubr.f32.gmra.mrb[0].mxu0 %v863
        %v1076 = vpop.f32.mrb[0].mxu0
        %v1077 = vadd.f32 %v988, %v1076
        %v1078 = vpop.f32.mrb[0].mxu0
        %1079 = vmatprep.mubr.f32.mxu0 0.0
        %1080 = vmatmul.mubr.f32.gmra.mrb[0].mxu0 %v866
        %v1081 = vpop.f32.mrb[0].mxu0
        %v1082 = vadd.f32 %v988, %v1081
        %v1083 = vpop.f32.mrb[0].mxu0
        %1084 = vmatprep.mubr.f32.mxu0 0.0
        %1085 = vmatmul.mubr.f32.gmra.mrb[0].mxu0 %v869
        %v1086 = vpop.f32.mrb[0].mxu0
        %v1087 = vadd.f32 %v988, %v1086
        %v1088 = vpop.f32.mrb[0].mxu0
        %1089 = vmatprep.mubr.f32.mxu0 0.0
        %1090 = vmatmul.mubr.f32.gmra.mrb[0].mxu0 %v872
        %v1091 = vpop.f32.mrb[0].mxu0
        %v1092 = vadd.f32 %v988, %v1091
        %v1093 = vpop.f32.mrb[0].mxu0
        %1094 = vdwg.mxu0
        %v1096 = vcombine.high %v836, %v836
        %v1098 = vunpack.c.l.s4 1966171168
        %v1099 = vunpack.c.0.s8 %v1098
        %v1100 = vlaneseq
        %v1101 = vshrl.u32 %v1100, 7
        %v1102 = vsub.s32 %v1099, %v1101
        %v1103 = vrot.slane %v836, %v1102
        %v1105 = vunpack.c.l.s4 1966171168
        %v1106 = vunpack.c.0.s8 %v1105
        %v1107 = vlaneseq
        %v1108 = vshrl.u32 %v1107, 7
        %v1109 = vsub.s32 %v1106, %v1108
        %v1110 = vrot.slane %v1096, %v1109
        %v1111 = vcombine.high %v1103, %v1103
        %v1112 = vcombine.high %v1110, %v1110
        %v1114 = vunpack.c.l.s4 1966171168
        %v1115 = vunpack.c.0.s8 %v1114
        %v1116 = vlaneseq
        %v1117 = vshrl.u32 %v1116, 7
        %v1118 = vsub.s32 %v1115, %v1117
        %v1119 = vrot.slane %v1103, %v1118
        %v1121 = vunpack.c.l.s4 1966171168
        %v1122 = vunpack.c.0.s8 %v1121
        %v1123 = vlaneseq
        %v1124 = vshrl.u32 %v1123, 7
        %v1125 = vsub.s32 %v1122, %v1124
        %v1126 = vrot.slane %v1110, %v1125
        %v1128 = vunpack.c.l.s4 1966171168
        %v1129 = vunpack.c.0.s8 %v1128
        %v1130 = vlaneseq
        %v1131 = vshrl.u32 %v1130, 7
        %v1132 = vsub.s32 %v1129, %v1131
        %v1133 = vrot.slane %v1111, %v1132
        %v1135 = vunpack.c.l.s4 1966171168
        %v1136 = vunpack.c.0.s8 %v1135
        %v1137 = vlaneseq
        %v1138 = vshrl.u32 %v1137, 7
        %v1139 = vsub.s32 %v1136, %v1138
        %v1140 = vrot.slane %v1112, %v1139
        %v1141 = vcombine.high %v1119, %v1119
        %v1142 = vcombine.high %v1126, %v1126
        %v1143 = vcombine.high %v1133, %v1133
        %v1144 = vcombine.high %v1140, %v1140
        %v1145 = vlaneseq
        %v1146 = vshrl.u32 %v1145, 7
        %v1147 = vsub.s32 0, %v1146
        %v1148 = vrot.slane %v1119, %v1147
        %v1149 = vlaneseq
        %v1150 = vshrl.u32 %v1149, 7
        %v1151 = vsub.s32 0, %v1150
        %v1152 = vrot.slane %v1133, %v1151
        %v1153 = vlaneseq
        %v1154 = vshrl.u32 %v1153, 7
        %v1155 = vsub.s32 0, %v1154
        %v1156 = vrot.slane %v1141, %v1155
        %v1157 = vlaneseq
        %v1158 = vshrl.u32 %v1157, 7
        %v1159 = vsub.s32 0, %v1158
        %v1160 = vrot.slane %v1143, %v1159
        %v1161 = vlaneseq
        %v1162 = vshrl.u32 %v1161, 7
        %v1163 = vsub.s32 0, %v1162
        %v1164 = vrot.slane %v1126, %v1163
        %v1165 = vlaneseq
        %v1166 = vshrl.u32 %v1165, 7
        %v1167 = vsub.s32 0, %v1166
        %v1168 = vrot.slane %v1140, %v1167
        %v1169 = vlaneseq
        %v1170 = vshrl.u32 %v1169, 7
        %v1171 = vsub.s32 0, %v1170
        %v1172 = vrot.slane %v1142, %v1171
        %v1173 = vlaneseq
        %v1174 = vshrl.u32 %v1173, 7
        %v1175 = vsub.s32 0, %v1174
        %v1176 = vrot.slane %v1144, %v1175
        %v1185 = vmul.f32 %v1148, %v941
        %v1186 = vmul.f32 %v1152, %v946
        %v1187 = vmul.f32 %v1156, %v951
        %v1188 = vmul.f32 %v1160, %v956
        %v1189 = vmul.f32 %v1164, %v961
        %v1190 = vmul.f32 %v1168, %v966
        %v1191 = vmul.f32 %v1172, %v971
        %v1192 = vmul.f32 %v1176, %v976
        %v1193 = vld [vmem:[%s3] sm:$0xff]
        %v1194 = vld [vmem:[%s3 + $0x8] sm:$0xff]
        %v1195 = vld [vmem:[%s3 + $0x10] sm:$0xff]
        %v1196 = vld [vmem:[%s3 + $0x18] sm:$0xff]
        %v1198 = vsel %vm765, %v1185, 0
        %v1201 = vsel %vm765, %v1186, 0
        %v1204 = vsel %vm765, %v1187, 0
        %v1207 = vsel %vm765, %v1188, 0
        %v1210 = vsel %vm765, %v1189, 0
        %v1213 = vsel %vm765, %v1190, 0
        %v1216 = vsel %vm765, %v1191, 0
        %v1219 = vsel %vm765, %v1192, 0
        %1221 = vmatprep.subr.mxu0 0.0
        %1222 = vmatpush1.msra.mxu0 %v1193
        %1223 = vmatprep.subr.mxu0 0.0
        %1224 = vmatpush1.msra.mxu0 %v1194
        %1225 = vmatprep.subr.mxu0 0.0
        %1226 = vmatpush1.msra.mxu0 %v1195
        %1227 = vmatprep.subr.mxu0 0.0
        %1228 = vmatpush1.msra.mxu0 %v1196
        %1229 = vmatprep.subr.mxu0 0.0
        %1230 = vmatpush1.msra.mxu0 0.0
        %1231 = vmatprep.subr.mxu0 0.0
        %1232 = vmatpush1.msra.mxu0 0.0
        %1233 = vmatprep.subr.mxu0 0.0
        %1234 = vmatpush1.msra.mxu0 0.0
        %1235 = vmatprep.subr.mxu0 0.0
        %1236 = vmatpush1.msra.mxu0 0.0
        %1237 = vmatprep.subr.mxu0 0.0
        %1238 = vmatpush1.msra.mxu0 0.0
        %1239 = vmatprep.subr.mxu0 0.0
        %1240 = vmatpush1.msra.mxu0 0.0
        %1241 = vmatprep.subr.mxu0 0.0
        %1242 = vmatpush1.msra.mxu0 0.0
        %1243 = vmatprep.subr.mxu0 0.0
        %1244 = vmatpush1.msra.mxu0 0.0
        %1245 = vmatprep.subr.mxu0 0.0
        %1246 = vmatpush1.msra.mxu0 0.0
        %1247 = vmatprep.subr.mxu0 0.0
        %1248 = vmatpush1.msra.mxu0 0.0
        %1249 = vmatprep.subr.mxu0 0.0
        %1250 = vmatpush1.msra.mxu0 0.0
        %1251 = vmatprep.subr.mxu0 0.0
        %1252 = vmatpush1.msra.mxu0 0.0
        %1253 = vmatprep.subr.mxu0 0.0
        %1254 = vmatpush1.msra.mxu0 0.0
        %1255 = vmatprep.subr.mxu0 0.0
        %1256 = vmatpush1.msra.mxu0 0.0
        %1257 = vmatprep.subr.mxu0 0.0
        %1258 = vmatpush1.msra.mxu0 0.0
        %1259 = vmatprep.subr.mxu0 0.0
        %1260 = vmatpush1.msra.mxu0 0.0
        %1261 = vmatprep.subr.mxu0 0.0
        %1262 = vmatpush1.msra.mxu0 0.0
        %1263 = vmatprep.subr.mxu0 0.0
        %1264 = vmatpush1.msra.mxu0 0.0
        %1265 = vmatprep.subr.mxu0 0.0
        %1266 = vmatpush1.msra.mxu0 0.0
        %1267 = vmatprep.subr.mxu0 0.0
        %1268 = vmatpush1.msra.mxu0 0.0
        %1269 = vmatprep.subr.mxu0 0.0
        %1270 = vmatpush1.msra.mxu0 0.0
        %1271 = vmatprep.subr.mxu0 0.0
        %1272 = vmatpush1.msra.mxu0 0.0
        %1273 = vmatprep.subr.mxu0 0.0
        %1274 = vmatpush1.msra.mxu0 0.0
        %1275 = vmatprep.subr.mxu0 0.0
        %1276 = vmatpush1.msra.mxu0 0.0
        %1277 = vmatprep.subr.mxu0 0.0
        %1278 = vmatpush1.msra.mxu0 0.0
        %1279 = vmatprep.subr.mxu0 0.0
        %1280 = vmatpush1.msra.mxu0 0.0
        %1281 = vmatprep.subr.mxu0 0.0
        %1282 = vmatpush1.msra.mxu0 0.0
        %1283 = vmatprep.subr.mxu0 0.0
        %1284 = vmatpush1.msra.mxu0 0.0
        %1285 = vmatprep.mubr.f32.mxu0 0.0
        %1286 = vmatmul.mubr.f32.gmra.mrb[0].mxu0 %v1198
        %v1287 = vpop.f32.mrb[0].mxu0
        %v1288 = vadd.f32 0.0, %v1287
        %v1289 = vpop.f32.mrb[0].mxu0
        %1290 = vmatprep.mubr.f32.mxu0 0.0
        %1291 = vmatmul.mubr.f32.gmra.mrb[0].mxu0 %v1201
        %v1292 = vpop.f32.mrb[0].mxu0
        %v1293 = vadd.f32 0.0, %v1292
        %v1294 = vpop.f32.mrb[0].mxu0
        %1295 = vmatprep.mubr.f32.mxu0 0.0
        %1296 = vmatmul.mubr.f32.gmra.mrb[0].mxu0 %v1204
        %v1297 = vpop.f32.mrb[0].mxu0
        %v1298 = vadd.f32 0.0, %v1297
        %v1299 = vpop.f32.mrb[0].mxu0
        %1300 = vmatprep.mubr.f32.mxu0 0.0
        %1301 = vmatmul.mubr.f32.gmra.mrb[0].mxu0 %v1207
        %v1302 = vpop.f32.mrb[0].mxu0
        %v1303 = vadd.f32 0.0, %v1302
        %v1304 = vpop.f32.mrb[0].mxu0
        %1305 = vmatprep.mubr.f32.mxu0 0.0
        %1306 = vmatmul.mubr.f32.gmra.mrb[0].mxu0 %v1210
        %v1307 = vpop.f32.mrb[0].mxu0
        %v1308 = vadd.f32 0.0, %v1307
        %v1309 = vpop.f32.mrb[0].mxu0
        %1310 = vmatprep.mubr.f32.mxu0 0.0
        %1311 = vmatmul.mubr.f32.gmra.mrb[0].mxu0 %v1213
        %v1312 = vpop.f32.mrb[0].mxu0
        %v1313 = vadd.f32 0.0, %v1312
        %v1314 = vpop.f32.mrb[0].mxu0
        %1315 = vmatprep.mubr.f32.mxu0 0.0
        %1316 = vmatmul.mubr.f32.gmra.mrb[0].mxu0 %v1216
        %v1317 = vpop.f32.mrb[0].mxu0
        %v1318 = vadd.f32 0.0, %v1317
        %v1319 = vpop.f32.mrb[0].mxu0
        %1320 = vmatprep.mubr.f32.mxu0 0.0
        %1321 = vmatmul.mubr.f32.gmra.mrb[0].mxu0 %v1219
        %v1322 = vpop.f32.mrb[0].mxu0
        %v1323 = vadd.f32 0.0, %v1322
        %v1324 = vpop.f32.mrb[0].mxu0
        %1325 = vdwg.mxu0
        %v1326 = vmul.f32 %v1288, 0.5
        %v1327 = vmul.f32 %v1293, 0.5
        %v1328 = vmul.f32 %v1298, 0.5
        %v1329 = vmul.f32 %v1303, 0.5
        %v1330 = vmul.f32 %v1308, 0.5
        %v1331 = vmul.f32 %v1313, 0.5
        %v1332 = vmul.f32 %v1318, 0.5
        %v1333 = vmul.f32 %v1323, 0.5
        %vm1334 = vcmask 64512
        %v1335 = vsel %vm1334, %v1326, -inf
        %v1336 = vrot.slane %v1335, 4
        %v1337 = vmax.f32 %v1335, %v1336
        %v1338 = vrot.slane %v1337, 2
        %v1339 = vmax.f32 %v1337, %v1338
        %v1340 = vrot.slane %v1339, 1
        %v1341 = vmax.f32 %v1339, %v1340
        %v1342 = vsel %vm1334, %v1327, -inf
        %v1343 = vrot.slane %v1342, 4
        %v1344 = vmax.f32 %v1342, %v1343
        %v1345 = vrot.slane %v1344, 2
        %v1346 = vmax.f32 %v1344, %v1345
        %v1347 = vrot.slane %v1346, 1
        %v1348 = vmax.f32 %v1346, %v1347
        %v1349 = vsel %vm1334, %v1328, -inf
        %v1350 = vrot.slane %v1349, 4
        %v1351 = vmax.f32 %v1349, %v1350
        %v1352 = vrot.slane %v1351, 2
        %v1353 = vmax.f32 %v1351, %v1352
        %v1354 = vrot.slane %v1353, 1
        %v1355 = vmax.f32 %v1353, %v1354
        %v1356 = vsel %vm1334, %v1329, -inf
        %v1357 = vrot.slane %v1356, 4
        %v1358 = vmax.f32 %v1356, %v1357
        %v1359 = vrot.slane %v1358, 2
        %v1360 = vmax.f32 %v1358, %v1359
        %v1361 = vrot.slane %v1360, 1
        %v1362 = vmax.f32 %v1360, %v1361
        %v1363 = vsel %vm1334, %v1330, -inf
        %v1364 = vrot.slane %v1363, 4
        %v1365 = vmax.f32 %v1363, %v1364
        %v1366 = vrot.slane %v1365, 2
        %v1367 = vmax.f32 %v1365, %v1366
        %v1368 = vrot.slane %v1367, 1
        %v1369 = vmax.f32 %v1367, %v1368
        %v1370 = vsel %vm1334, %v1331, -inf
        %v1371 = vrot.slane %v1370, 4
        %v1372 = vmax.f32 %v1370, %v1371
        %v1373 = vrot.slane %v1372, 2
        %v1374 = vmax.f32 %v1372, %v1373
        %v1375 = vrot.slane %v1374, 1
        %v1376 = vmax.f32 %v1374, %v1375
        %v1377 = vsel %vm1334, %v1332, -inf
        %v1378 = vrot.slane %v1377, 4
        %v1379 = vmax.f32 %v1377, %v1378
        %v1380 = vrot.slane %v1379, 2
        %v1381 = vmax.f32 %v1379, %v1380
        %v1382 = vrot.slane %v1381, 1
        %v1383 = vmax.f32 %v1381, %v1382
        %v1384 = vsel %vm1334, %v1333, -inf
        %v1385 = vrot.slane %v1384, 4
        %v1386 = vmax.f32 %v1384, %v1385
        %v1387 = vrot.slane %v1386, 2
        %v1388 = vmax.f32 %v1386, %v1387
        %v1389 = vrot.slane %v1388, 1
        %v1390 = vmax.f32 %v1388, %v1389
        %v1391 = vsub.f32 %v1326, %v1341
        %v1392 = vsub.f32 %v1327, %v1348
        %v1393 = vsub.f32 %v1328, %v1355
        %v1394 = vsub.f32 %v1329, %v1362
        %v1395 = vsub.f32 %v1330, %v1369
        %v1396 = vsub.f32 %v1331, %v1376
        %v1397 = vsub.f32 %v1332, %v1383
        %v1398 = vsub.f32 %v1333, %v1390
        %v1399 = vmul.f32 %v1391, 1.442695
        %v1400 = vpow.pop %v1399
        %v1401 = vmul.f32 %v1392, 1.442695
        %v1402 = vpow.pop %v1401
        %v1403 = vmul.f32 %v1393, 1.442695
        %v1404 = vpow.pop %v1403
        %v1405 = vmul.f32 %v1394, 1.442695
        %v1406 = vpow.pop %v1405
        %v1407 = vmul.f32 %v1395, 1.442695
        %v1408 = vpow.pop %v1407
        %v1409 = vmul.f32 %v1396, 1.442695
        %v1410 = vpow.pop %v1409
        %v1411 = vmul.f32 %v1397, 1.442695
        %v1412 = vpow.pop %v1411
        %v1413 = vmul.f32 %v1398, 1.442695
        %v1414 = vpow.pop %v1413
        %v1415 = vsel %vm1334, %v1400, 0.0
        %v1416 = vrot.slane %v1415, 4
        %v1417 = vadd.f32 %v1415, %v1416
        %v1418 = vrot.slane %v1417, 2
        %v1419 = vadd.f32 %v1417, %v1418
        %v1420 = vrot.slane %v1419, 1
        %v1421 = vadd.f32 %v1419, %v1420
        %v1422 = vsel %vm1334, %v1402, 0.0
        %v1423 = vrot.slane %v1422, 4
        %v1424 = vadd.f32 %v1422, %v1423
        %v1425 = vrot.slane %v1424, 2
        %v1426 = vadd.f32 %v1424, %v1425
        %v1427 = vrot.slane %v1426, 1
        %v1428 = vadd.f32 %v1426, %v1427
        %v1429 = vsel %vm1334, %v1404, 0.0
        %v1430 = vrot.slane %v1429, 4
        %v1431 = vadd.f32 %v1429, %v1430
        %v1432 = vrot.slane %v1431, 2
        %v1433 = vadd.f32 %v1431, %v1432
        %v1434 = vrot.slane %v1433, 1
        %v1435 = vadd.f32 %v1433, %v1434
        %v1436 = vsel %vm1334, %v1406, 0.0
        %v1437 = vrot.slane %v1436, 4
        %v1438 = vadd.f32 %v1436, %v1437
        %v1439 = vrot.slane %v1438, 2
        %v1440 = vadd.f32 %v1438, %v1439
        %v1441 = vrot.slane %v1440, 1
        %v1442 = vadd.f32 %v1440, %v1441
        %v1443 = vsel %vm1334, %v1408, 0.0
        %v1444 = vrot.slane %v1443, 4
        %v1445 = vadd.f32 %v1443, %v1444
        %v1446 = vrot.slane %v1445, 2
        %v1447 = vadd.f32 %v1445, %v1446
        %v1448 = vrot.slane %v1447, 1
        %v1449 = vadd.f32 %v1447, %v1448
        %v1450 = vsel %vm1334, %v1410, 0.0
        %v1451 = vrot.slane %v1450, 4
        %v1452 = vadd.f32 %v1450, %v1451
        %v1453 = vrot.slane %v1452, 2
        %v1454 = vadd.f32 %v1452, %v1453
        %v1455 = vrot.slane %v1454, 1
        %v1456 = vadd.f32 %v1454, %v1455
        %v1457 = vsel %vm1334, %v1412, 0.0
        %v1458 = vrot.slane %v1457, 4
        %v1459 = vadd.f32 %v1457, %v1458
        %v1460 = vrot.slane %v1459, 2
        %v1461 = vadd.f32 %v1459, %v1460
        %v1462 = vrot.slane %v1461, 1
        %v1463 = vadd.f32 %v1461, %v1462
        %v1464 = vsel %vm1334, %v1414, 0.0
        %v1465 = vrot.slane %v1464, 4
        %v1466 = vadd.f32 %v1464, %v1465
        %v1467 = vrot.slane %v1466, 2
        %v1468 = vadd.f32 %v1466, %v1467
        %v1469 = vrot.slane %v1468, 1
        %v1470 = vadd.f32 %v1468, %v1469
        %v1471 = vrcp.pop %v1421
        %v1472 = vrcp.pop %v1428
        %v1473 = vrcp.pop %v1435
        %v1474 = vrcp.pop %v1442
        %v1475 = vrcp.pop %v1449
        %v1476 = vrcp.pop %v1456
        %v1477 = vrcp.pop %v1463
        %v1478 = vrcp.pop %v1470
        %v1479 = vmul.f32 %v1400, %v1471
        %v1480 = vmul.f32 %v1402, %v1472
        %v1481 = vmul.f32 %v1404, %v1473
        %v1482 = vmul.f32 %v1406, %v1474
        %v1483 = vmul.f32 %v1408, %v1475
        %v1484 = vmul.f32 %v1410, %v1476
        %v1485 = vmul.f32 %v1412, %v1477
        %v1486 = vmul.f32 %v1414, %v1478
        %v1487 = vld [vmem:[%s4] sm:$0xff]
        %v1489 = vsel %vm1334, %v1479, 0
        %v1492 = vsel %vm1334, %v1480, 0
        %v1495 = vsel %vm1334, %v1481, 0
        %v1498 = vsel %vm1334, %v1482, 0
        %v1501 = vsel %vm1334, %v1483, 0
        %v1504 = vsel %vm1334, %v1484, 0
        %v1507 = vsel %vm1334, %v1485, 0
        %v1510 = vsel %vm1334, %v1486, 0
        %1512 = vmatprep.subr.mxu0 0.0
        %1513 = vmatpush1.msra.mxu0 %v1487
        %1514 = vmatprep.subr.mxu0 0.0
        %1515 = vmatpush1.msra.mxu0 0.0
        %1516 = vmatprep.subr.mxu0 0.0
        %1517 = vmatpush1.msra.mxu0 0.0
        %1518 = vmatprep.subr.mxu0 0.0
        %1519 = vmatpush1.msra.mxu0 0.0
        %1520 = vmatprep.subr.mxu0 0.0
        %1521 = vmatpush1.msra.mxu0 0.0
        %1522 = vmatprep.subr.mxu0 0.0
        %1523 = vmatpush1.msra.mxu0 0.0
        %1524 = vmatprep.subr.mxu0 0.0
        %1525 = vmatpush1.msra.mxu0 0.0
        %1526 = vmatprep.subr.mxu0 0.0
        %1527 = vmatpush1.msra.mxu0 0.0
        %1528 = vmatprep.subr.mxu0 0.0
        %1529 = vmatpush1.msra.mxu0 0.0
        %1530 = vmatprep.subr.mxu0 0.0
        %1531 = vmatpush1.msra.mxu0 0.0
        %1532 = vmatprep.subr.mxu0 0.0
        %1533 = vmatpush1.msra.mxu0 0.0
        %1534 = vmatprep.subr.mxu0 0.0
        %1535 = vmatpush1.msra.mxu0 0.0
        %1536 = vmatprep.subr.mxu0 0.0
        %1537 = vmatpush1.msra.mxu0 0.0
        %1538 = vmatprep.subr.mxu0 0.0
        %1539 = vmatpush1.msra.mxu0 0.0
        %1540 = vmatprep.subr.mxu0 0.0
        %1541 = vmatpush1.msra.mxu0 0.0
        %1542 = vmatprep.subr.mxu0 0.0
        %1543 = vmatpush1.msra.mxu0 0.0
        %1544 = vmatprep.subr.mxu0 0.0
        %1545 = vmatpush1.msra.mxu0 0.0
        %1546 = vmatprep.subr.mxu0 0.0
        %1547 = vmatpush1.msra.mxu0 0.0
        %1548 = vmatprep.subr.mxu0 0.0
        %1549 = vmatpush1.msra.mxu0 0.0
        %1550 = vmatprep.subr.mxu0 0.0
        %1551 = vmatpush1.msra.mxu0 0.0
        %1552 = vmatprep.subr.mxu0 0.0
        %1553 = vmatpush1.msra.mxu0 0.0
        %1554 = vmatprep.subr.mxu0 0.0
        %1555 = vmatpush1.msra.mxu0 0.0
        %1556 = vmatprep.subr.mxu0 0.0
        %1557 = vmatpush1.msra.mxu0 0.0
        %1558 = vmatprep.subr.mxu0 0.0
        %1559 = vmatpush1.msra.mxu0 0.0
        %1560 = vmatprep.subr.mxu0 0.0
        %1561 = vmatpush1.msra.mxu0 0.0
        %1562 = vmatprep.subr.mxu0 0.0
        %1563 = vmatpush1.msra.mxu0 0.0
        %1564 = vmatprep.subr.mxu0 0.0
        %1565 = vmatpush1.msra.mxu0 0.0
        %1566 = vmatprep.subr.mxu0 0.0
        %1567 = vmatpush1.msra.mxu0 0.0
        %1568 = vmatprep.subr.mxu0 0.0
        %1569 = vmatpush1.msra.mxu0 0.0
        %1570 = vmatprep.subr.mxu0 0.0
        %1571 = vmatpush1.msra.mxu0 0.0
        %1572 = vmatprep.subr.mxu0 0.0
        %1573 = vmatpush1.msra.mxu0 0.0
        %1574 = vmatprep.subr.mxu0 0.0
        %1575 = vmatpush1.msra.mxu0 0.0
        %1576 = vmatprep.mubr.f32.mxu0 0.0
        %1577 = vmatmul.mubr.f32.gmra.mrb[0].mxu0 %v1489
        %v1578 = vpop.f32.mrb[0].mxu0
        %v1579 = vadd.f32 0.0, %v1578
        %v1580 = vpop.f32.mrb[0].mxu0
        %1581 = vmatprep.mubr.f32.mxu0 0.0
        %1582 = vmatmul.mubr.f32.gmra.mrb[0].mxu0 %v1492
        %v1583 = vpop.f32.mrb[0].mxu0
        %v1584 = vadd.f32 0.0, %v1583
        %v1585 = vpop.f32.mrb[0].mxu0
        %1586 = vmatprep.mubr.f32.mxu0 0.0
        %1587 = vmatmul.mubr.f32.gmra.mrb[0].mxu0 %v1495
        %v1588 = vpop.f32.mrb[0].mxu0
        %v1589 = vadd.f32 0.0, %v1588
        %v1590 = vpop.f32.mrb[0].mxu0
        %1591 = vmatprep.mubr.f32.mxu0 0.0
        %1592 = vmatmul.mubr.f32.gmra.mrb[0].mxu0 %v1498
        %v1593 = vpop.f32.mrb[0].mxu0
        %v1594 = vadd.f32 0.0, %v1593
        %v1595 = vpop.f32.mrb[0].mxu0
        %1596 = vmatprep.mubr.f32.mxu0 0.0
        %1597 = vmatmul.mubr.f32.gmra.mrb[0].mxu0 %v1501
        %v1598 = vpop.f32.mrb[0].mxu0
        %v1599 = vadd.f32 0.0, %v1598
        %v1600 = vpop.f32.mrb[0].mxu0
        %1601 = vmatprep.mubr.f32.mxu0 0.0
        %1602 = vmatmul.mubr.f32.gmra.mrb[0].mxu0 %v1504
        %v1603 = vpop.f32.mrb[0].mxu0
        %v1604 = vadd.f32 0.0, %v1603
        %v1605 = vpop.f32.mrb[0].mxu0
        %1606 = vmatprep.mubr.f32.mxu0 0.0
        %1607 = vmatmul.mubr.f32.gmra.mrb[0].mxu0 %v1507
        %v1608 = vpop.f32.mrb[0].mxu0
        %v1609 = vadd.f32 0.0, %v1608
        %v1610 = vpop.f32.mrb[0].mxu0
        %1611 = vmatprep.mubr.f32.mxu0 0.0
        %1612 = vmatmul.mubr.f32.gmra.mrb[0].mxu0 %v1510
        %v1613 = vpop.f32.mrb[0].mxu0
        %v1614 = vadd.f32 0.0, %v1613
        %v1615 = vpop.f32.mrb[0].mxu0
        %1616 = vdwg.mxu0
        %v1617 = vmul.f32 %v1579, %v1057
        %v1618 = vmul.f32 %v1584, %v1062
        %v1619 = vmul.f32 %v1589, %v1067
        %v1620 = vmul.f32 %v1594, %v1072
        %v1621 = vmul.f32 %v1599, %v1077
        %v1622 = vmul.f32 %v1604, %v1082
        %v1623 = vmul.f32 %v1609, %v1087
        %v1624 = vmul.f32 %v1614, %v1092
        %v1625 = vsel %vm765, %v1617, 0.0
        %v1626 = vrot.slane %v1625, 4
        %v1627 = vadd.f32 %v1625, %v1626
        %v1628 = vrot.slane %v1627, 2
        %v1629 = vadd.f32 %v1627, %v1628
        %v1630 = vrot.slane %v1629, 1
        %v1631 = vadd.f32 %v1629, %v1630
        %v1632 = vsel %vm765, %v1618, 0.0
        %v1633 = vrot.slane %v1632, 4
        %v1634 = vadd.f32 %v1632, %v1633
        %v1635 = vrot.slane %v1634, 2
        %v1636 = vadd.f32 %v1634, %v1635
        %v1637 = vrot.slane %v1636, 1
        %v1638 = vadd.f32 %v1636, %v1637
        %v1639 = vsel %vm765, %v1619, 0.0
        %v1640 = vrot.slane %v1639, 4
        %v1641 = vadd.f32 %v1639, %v1640
        %v1642 = vrot.slane %v1641, 2
        %v1643 = vadd.f32 %v1641, %v1642
        %v1644 = vrot.slane %v1643, 1
        %v1645 = vadd.f32 %v1643, %v1644
        %v1646 = vsel %vm765, %v1620, 0.0
        %v1647 = vrot.slane %v1646, 4
        %v1648 = vadd.f32 %v1646, %v1647
        %v1649 = vrot.slane %v1648, 2
        %v1650 = vadd.f32 %v1648, %v1649
        %v1651 = vrot.slane %v1650, 1
        %v1652 = vadd.f32 %v1650, %v1651
        %v1653 = vsel %vm765, %v1621, 0.0
        %v1654 = vrot.slane %v1653, 4
        %v1655 = vadd.f32 %v1653, %v1654
        %v1656 = vrot.slane %v1655, 2
        %v1657 = vadd.f32 %v1655, %v1656
        %v1658 = vrot.slane %v1657, 1
        %v1659 = vadd.f32 %v1657, %v1658
        %v1660 = vsel %vm765, %v1622, 0.0
        %v1661 = vrot.slane %v1660, 4
        %v1662 = vadd.f32 %v1660, %v1661
        %v1663 = vrot.slane %v1662, 2
        %v1664 = vadd.f32 %v1662, %v1663
        %v1665 = vrot.slane %v1664, 1
        %v1666 = vadd.f32 %v1664, %v1665
        %v1667 = vsel %vm765, %v1623, 0.0
        %v1668 = vrot.slane %v1667, 4
        %v1669 = vadd.f32 %v1667, %v1668
        %v1670 = vrot.slane %v1669, 2
        %v1671 = vadd.f32 %v1669, %v1670
        %v1672 = vrot.slane %v1671, 1
        %v1673 = vadd.f32 %v1671, %v1672
        %v1674 = vsel %vm765, %v1624, 0.0
        %v1675 = vrot.slane %v1674, 4
        %v1676 = vadd.f32 %v1674, %v1675
        %v1677 = vrot.slane %v1676, 2
        %v1678 = vadd.f32 %v1676, %v1677
        %v1679 = vrot.slane %v1678, 1
        %v1680 = vadd.f32 %v1678, %v1679
        %v1681 = vld [vmem:[%s11] sm:$0xff]
        %v1682 = vld [vmem:[%s11 + $0x8] sm:$0xff]
        %v1683 = vld [vmem:[%s11 + $0x10] sm:$0xff]
        %v1684 = vld [vmem:[%s11 + $0x18] sm:$0xff]
        %v1685 = vld [vmem:[%s12] sm:$0x1]
        %v1687 = vlaneseq
        %v1688 = vshrl.u32 %v1687, 7
        %v1689 = vsub.s32 0, %v1688
        %v1690 = vrot.slane %v1685, %v1689
        %vm1700 = vcmask 1041409
        %v1701 = vsel %vm1700, %v1638, %v1631
        %vm1702 = vcmask 1042434
        %v1703 = vsel %vm1702, %v1645, %v1701
        %vm1704 = vcmask 1043459
        %v1705 = vsel %vm1704, %v1652, %v1703
        %vm1706 = vcmask 1044484
        %v1707 = vsel %vm1706, %v1659, %v1705
        %vm1708 = vcmask 1045509
        %v1709 = vsel %vm1708, %v1666, %v1707
        %vm1710 = vcmask 1046534
        %v1711 = vsel %vm1710, %v1673, %v1709
        %vm1712 = vcmask 1047559
        %v1713 = vsel %vm1712, %v1680, %v1711
        %v1714 = vsel %vm765, %v1713, 0
        %1716 = vmatprep.subr.mxu0 0.0
        %1717 = vmatpush1.msra.mxu0 %v1681
        %1718 = vmatprep.subr.mxu0 0.0
        %1719 = vmatpush1.msra.mxu0 %v1682
        %1720 = vmatprep.subr.mxu0 0.0
        %1721 = vmatpush1.msra.mxu0 %v1683
        %1722 = vmatprep.subr.mxu0 0.0
        %1723 = vmatpush1.msra.mxu0 %v1684
        %1724 = vmatprep.subr.mxu0 0.0
        %1725 = vmatpush1.msra.mxu0 0.0
        %1726 = vmatprep.subr.mxu0 0.0
        %1727 = vmatpush1.msra.mxu0 0.0
        %1728 = vmatprep.subr.mxu0 0.0
        %1729 = vmatpush1.msra.mxu0 0.0
        %1730 = vmatprep.subr.mxu0 0.0
        %1731 = vmatpush1.msra.mxu0 0.0
        %1732 = vmatprep.subr.mxu0 0.0
        %1733 = vmatpush1.msra.mxu0 0.0
        %1734 = vmatprep.subr.mxu0 0.0
        %1735 = vmatpush1.msra.mxu0 0.0
        %1736 = vmatprep.subr.mxu0 0.0
        %1737 = vmatpush1.msra.mxu0 0.0
        %1738 = vmatprep.subr.mxu0 0.0
        %1739 = vmatpush1.msra.mxu0 0.0
        %1740 = vmatprep.subr.mxu0 0.0
        %1741 = vmatpush1.msra.mxu0 0.0
        %1742 = vmatprep.subr.mxu0 0.0
        %1743 = vmatpush1.msra.mxu0 0.0
        %1744 = vmatprep.subr.mxu0 0.0
        %1745 = vmatpush1.msra.mxu0 0.0
        %1746 = vmatprep.subr.mxu0 0.0
        %1747 = vmatpush1.msra.mxu0 0.0
        %1748 = vmatprep.subr.mxu0 0.0
        %1749 = vmatpush1.msra.mxu0 0.0
        %1750 = vmatprep.subr.mxu0 0.0
        %1751 = vmatpush1.msra.mxu0 0.0
        %1752 = vmatprep.subr.mxu0 0.0
        %1753 = vmatpush1.msra.mxu0 0.0
        %1754 = vmatprep.subr.mxu0 0.0
        %1755 = vmatpush1.msra.mxu0 0.0
        %1756 = vmatprep.subr.mxu0 0.0
        %1757 = vmatpush1.msra.mxu0 0.0
        %1758 = vmatprep.subr.mxu0 0.0
        %1759 = vmatpush1.msra.mxu0 0.0
        %1760 = vmatprep.subr.mxu0 0.0
        %1761 = vmatpush1.msra.mxu0 0.0
        %1762 = vmatprep.subr.mxu0 0.0
        %1763 = vmatpush1.msra.mxu0 0.0
        %1764 = vmatprep.subr.mxu0 0.0
        %1765 = vmatpush1.msra.mxu0 0.0
        %1766 = vmatprep.subr.mxu0 0.0
        %1767 = vmatpush1.msra.mxu0 0.0
        %1768 = vmatprep.subr.mxu0 0.0
        %1769 = vmatpush1.msra.mxu0 0.0
        %1770 = vmatprep.subr.mxu0 0.0
        %1771 = vmatpush1.msra.mxu0 0.0
        %1772 = vmatprep.subr.mxu0 0.0
        %1773 = vmatpush1.msra.mxu0 0.0
        %1774 = vmatprep.subr.mxu0 0.0
        %1775 = vmatpush1.msra.mxu0 0.0
        %1776 = vmatprep.subr.mxu0 0.0
        %1777 = vmatpush1.msra.mxu0 0.0
        %1778 = vmatprep.subr.mxu0 0.0
        %1779 = vmatpush1.msra.mxu0 0.0
        %1780 = vmatprep.mubr.f32.mxu0 0.0
        %1781 = vmatmul.mubr.f32.gmra.mrb[0].mxu0 %v1714
        %v1782 = vpop.f32.mrb[0].mxu0
        %v1783 = vadd.f32 %v1690, %v1782
        %v1784 = vpop.f32.mrb[0].mxu0
        %1785 = vdwg.mxu0
        %v1786 = vadd.f32 %v753, %v1783
        %v1787 = vld [vmem:[%s13] sm:$0x1]
        %v1788 = vld [vmem:[%s14] sm:$0x1]
        %v1789 = vsel %vm765, %v1786, 0.0
        %1790 = vadd.xlane.f32.xlu0 %v1789
        %v1791 = vpop.xlane.xlu0 %1790
        %v1792 = vrcp.pop 32.0
        %v1793 = vmul.f32 %v1791, %v1792
        %v1794 = vsub.f32 %v1786, %v1793
        %v1795 = vmul.f32 %v1794, %v1794
        %v1796 = vsel %vm765, %v1795, 0.0
        %1797 = vadd.xlane.f32.xlu0 %v1796
        %v1798 = vpop.xlane.xlu0 %1797
        %v1799 = vmul.f32 %v1798, %v1792
        %v1800 = vadd.f32 %v1799, 1e-05
        %v1801 = vrsqrt.pop %v1800
        %v1802 = vmul.f32 %v1794, %v1801
        %v1804 = vlaneseq
        %v1805 = vshrl.u32 %v1804, 7
        %v1806 = vsub.s32 0, %v1805
        %v1807 = vrot.slane %v1787, %v1806
        %v1809 = vmul.f32 %v1802, %v1807
        %v1811 = vlaneseq
        %v1812 = vshrl.u32 %v1811, 7
        %v1813 = vsub.s32 0, %v1812
        %v1814 = vrot.slane %v1788, %v1813
        %v1816 = vadd.f32 %v1809, %v1814
        %v1817 = vld [vmem:[%s15] sm:$0xff]
        %v1818 = vld [vmem:[%s15 + $0x8] sm:$0xff]
        %v1819 = vld [vmem:[%s15 + $0x10] sm:$0xff]
        %v1820 = vld [vmem:[%s15 + $0x18] sm:$0xff]
        %v1821 = vld [vmem:[%s15 + $0x20] sm:$0xff]
        %v1822 = vld [vmem:[%s15 + $0x28] sm:$0xff]
        %v1823 = vld [vmem:[%s15 + $0x30] sm:$0xff]
        %v1824 = vld [vmem:[%s15 + $0x38] sm:$0xff]
        %v1825 = vld [vmem:[%s15 + $0x40] sm:$0xff]
        %v1826 = vld [vmem:[%s15 + $0x48] sm:$0xff]
        %v1827 = vld [vmem:[%s15 + $0x50] sm:$0xff]
        %v1828 = vld [vmem:[%s15 + $0x58] sm:$0xff]
        %v1829 = vld [vmem:[%s15 + $0x60] sm:$0xff]
        %v1830 = vld [vmem:[%s15 + $0x68] sm:$0xff]
        %v1831 = vld [vmem:[%s15 + $0x70] sm:$0xff]
        %v1832 = vld [vmem:[%s15 + $0x78] sm:$0xff]
        %v1833 = vld [vmem:[%s16] sm:$0xf]
        %v1835 = vlaneseq
        %v1836 = vshrl.u32 %v1835, 7
        %v1837 = vsub.s32 0, %v1836
        %v1838 = vrot.slane %v1833, %v1837
        %v1839 = vlaneseq
        %v1840 = vshrl.u32 %v1839, 7
        %v1841 = vsub.s32 1, %v1840
        %v1842 = vrot.slane %v1833, %v1841
        %v1843 = vlaneseq
        %v1844 = vshrl.u32 %v1843, 7
        %v1845 = vsub.s32 2, %v1844
        %v1846 = vrot.slane %v1833, %v1845
        %v1847 = vlaneseq
        %v1848 = vshrl.u32 %v1847, 7
        %v1849 = vsub.s32 3, %v1848
        %v1850 = vrot.slane %v1833, %v1849
        %v1856 = vsel %vm765, %v1816, 0
        %1858 = vmatprep.subr.mxu0 %v1818
        %1859 = vmatpush1.msra.mxu0 %v1817
        %1860 = vmatprep.subr.mxu0 %v1822
        %1861 = vmatpush1.msra.mxu0 %v1821
        %1862 = vmatprep.subr.mxu0 %v1826
        %1863 = vmatpush1.msra.mxu0 %v1825
        %1864 = vmatprep.subr.mxu0 %v1830
        %1865 = vmatpush1.msra.mxu0 %v1829
        %1866 = vmatprep.subr.mxu0 0.0
        %1867 = vmatpush1.msra.mxu0 0.0
        %1868 = vmatprep.subr.mxu0 0.0
        %1869 = vmatpush1.msra.mxu0 0.0
        %1870 = vmatprep.subr.mxu0 0.0
        %1871 = vmatpush1.msra.mxu0 0.0
        %1872 = vmatprep.subr.mxu0 0.0
        %1873 = vmatpush1.msra.mxu0 0.0
        %1874 = vmatprep.subr.mxu0 0.0
        %1875 = vmatpush1.msra.mxu0 0.0
        %1876 = vmatprep.subr.mxu0 0.0
        %1877 = vmatpush1.msra.mxu0 0.0
        %1878 = vmatprep.subr.mxu0 0.0
        %1879 = vmatpush1.msra.mxu0 0.0
        %1880 = vmatprep.subr.mxu0 0.0
        %1881 = vmatpush1.msra.mxu0 0.0
        %1882 = vmatprep.subr.mxu0 0.0
        %1883 = vmatpush1.msra.mxu0 0.0
        %1884 = vmatprep.subr.mxu0 0.0
        %1885 = vmatpush1.msra.mxu0 0.0
        %1886 = vmatprep.subr.mxu0 0.0
        %1887 = vmatpush1.msra.mxu0 0.0
        %1888 = vmatprep.subr.mxu0 0.0
        %1889 = vmatpush1.msra.mxu0 0.0
        %1890 = vmatprep.subr.mxu0 0.0
        %1891 = vmatpush1.msra.mxu0 0.0
        %1892 = vmatprep.subr.mxu0 0.0
        %1893 = vmatpush1.msra.mxu0 0.0
        %1894 = vmatprep.subr.mxu0 0.0
        %1895 = vmatpush1.msra.mxu0 0.0
        %1896 = vmatprep.subr.mxu0 0.0
        %1897 = vmatpush1.msra.mxu0 0.0
        %1898 = vmatprep.subr.mxu0 0.0
        %1899 = vmatpush1.msra.mxu0 0.0
        %1900 = vmatprep.subr.mxu0 0.0
        %1901 = vmatpush1.msra.mxu0 0.0
        %1902 = vmatprep.subr.mxu0 0.0
        %1903 = vmatpush1.msra.mxu0 0.0
        %1904 = vmatprep.subr.mxu0 0.0
        %1905 = vmatpush1.msra.mxu0 0.0
        %1906 = vmatprep.subr.mxu0 0.0
        %1907 = vmatpush1.msra.mxu0 0.0
        %1908 = vmatprep.subr.mxu0 0.0
        %1909 = vmatpush1.msra.mxu0 0.0
        %1910 = vmatprep.subr.mxu0 0.0
        %1911 = vmatpush1.msra.mxu0 0.0
        %1912 = vmatprep.subr.mxu0 0.0
        %1913 = vmatpush1.msra.mxu0 0.0
        %1914 = vmatprep.subr.mxu0 0.0
        %1915 = vmatpush1.msra.mxu0 0.0
        %1916 = vmatprep.subr.mxu0 0.0
        %1917 = vmatpush1.msra.mxu0 0.0
        %1918 = vmatprep.subr.mxu0 0.0
        %1919 = vmatpush1.msra.mxu0 0.0
        %1920 = vmatprep.subr.mxu0 0.0
        %1921 = vmatpush1.msra.mxu0 0.0
        %1922 = vmatprep.mubr.f32.mxu0 0.0
        %1923 = vmatmul.mubr.f32.gmra.mrb[0].mxu0 %v1856
        %v1924 = vpop.f32.mrb[0].mxu0
        %v1925 = vadd.f32 %v1838, %v1924
        %v1926 = vpop.f32.mrb[0].mxu0
        %v1927 = vadd.f32 %v1842, %v1926
        %1928 = vdwg.mxu0
        %1929 = vmatprep.subr.mxu0 %v1820
        %1930 = vmatpush1.msra.mxu0 %v1819
        %1931 = vmatprep.subr.mxu0 %v1824
        %1932 = vmatpush1.msra.mxu0 %v1823
        %1933 = vmatprep.subr.mxu0 %v1828
        %1934 = vmatpush1.msra.mxu0 %v1827
        %1935 = vmatprep.subr.mxu0 %v1832
        %1936 = vmatpush1.msra.mxu0 %v1831
        %1937 = vmatprep.subr.mxu0 0.0
        %1938 = vmatpush1.msra.mxu0 0.0
        %1939 = vmatprep.subr.mxu0 0.0
        %1940 = vmatpush1.msra.mxu0 0.0
        %1941 = vmatprep.subr.mxu0 0.0
        %1942 = vmatpush1.msra.mxu0 0.0
        %1943 = vmatprep.subr.mxu0 0.0
        %1944 = vmatpush1.msra.mxu0 0.0
        %1945 = vmatprep.subr.mxu0 0.0
        %1946 = vmatpush1.msra.mxu0 0.0
        %1947 = vmatprep.subr.mxu0 0.0
        %1948 = vmatpush1.msra.mxu0 0.0
        %1949 = vmatprep.subr.mxu0 0.0
        %1950 = vmatpush1.msra.mxu0 0.0
        %1951 = vmatprep.subr.mxu0 0.0
        %1952 = vmatpush1.msra.mxu0 0.0
        %1953 = vmatprep.subr.mxu0 0.0
        %1954 = vmatpush1.msra.mxu0 0.0
        %1955 = vmatprep.subr.mxu0 0.0
        %1956 = vmatpush1.msra.mxu0 0.0
        %1957 = vmatprep.subr.mxu0 0.0
        %1958 = vmatpush1.msra.mxu0 0.0
        %1959 = vmatprep.subr.mxu0 0.0
        %1960 = vmatpush1.msra.mxu0 0.0
        %1961 = vmatprep.subr.mxu0 0.0
        %1962 = vmatpush1.msra.mxu0 0.0
        %1963 = vmatprep.subr.mxu0 0.0
        %1964 = vmatpush1.msra.mxu0 0.0
        %1965 = vmatprep.subr.mxu0 0.0
        %1966 = vmatpush1.msra.mxu0 0.0
        %1967 = vmatprep.subr.mxu0 0.0
        %1968 = vmatpush1.msra.mxu0 0.0
        %1969 = vmatprep.subr.mxu0 0.0
        %1970 = vmatpush1.msra.mxu0 0.0
        %1971 = vmatprep.subr.mxu0 0.0
        %1972 = vmatpush1.msra.mxu0 0.0
        %1973 = vmatprep.subr.mxu0 0.0
        %1974 = vmatpush1.msra.mxu0 0.0
        %1975 = vmatprep.subr.mxu0 0.0
        %1976 = vmatpush1.msra.mxu0 0.0
        %1977 = vmatprep.subr.mxu0 0.0
        %1978 = vmatpush1.msra.mxu0 0.0
        %1979 = vmatprep.subr.mxu0 0.0
        %1980 = vmatpush1.msra.mxu0 0.0
        %1981 = vmatprep.subr.mxu0 0.0
        %1982 = vmatpush1.msra.mxu0 0.0
        %1983 = vmatprep.subr.mxu0 0.0
        %1984 = vmatpush1.msra.mxu0 0.0
        %1985 = vmatprep.subr.mxu0 0.0
        %1986 = vmatpush1.msra.mxu0 0.0
        %1987 = vmatprep.subr.mxu0 0.0
        %1988 = vmatpush1.msra.mxu0 0.0
        %1989 = vmatprep.subr.mxu0 0.0
        %1990 = vmatpush1.msra.mxu0 0.0
        %1991 = vmatprep.subr.mxu0 0.0
        %1992 = vmatpush1.msra.mxu0 0.0
        %1993 = vmatprep.mubr.f32.mxu0 0.0
        %1994 = vmatmul.mubr.f32.gmra.mrb[0].mxu0 %v1856
        %v1995 = vpop.f32.mrb[0].mxu0
        %v1996 = vadd.f32 %v1846, %v1995
        %v1997 = vpop.f32.mrb[0].mxu0
        %v1998 = vadd.f32 %v1850, %v1997
        %1999 = vdwg.mxu0
        %v2000 = vmax.f32 %v1925, 0.0
        %v2001 = vmax.f32 %v1927, 0.0
        %v2002 = vmax.f32 %v1996, 0.0
        %v2003 = vmax.f32 %v1998, 0.0
        %v2004 = vld [vmem:[%s17] sm:$0xff]
        %v2005 = vld [vmem:[%s17 + $0x8] sm:$0xff]
        %v2006 = vld [vmem:[%s17 + $0x10] sm:$0xff]
        %v2007 = vld [vmem:[%s17 + $0x18] sm:$0xff]
        %v2008 = vld [vmem:[%s17 + $0x20] sm:$0xff]
        %v2009 = vld [vmem:[%s17 + $0x28] sm:$0xff]
        %v2010 = vld [vmem:[%s17 + $0x30] sm:$0xff]
        %v2011 = vld [vmem:[%s17 + $0x38] sm:$0xff]
        %v2012 = vld [vmem:[%s17 + $0x40] sm:$0xff]
        %v2013 = vld [vmem:[%s17 + $0x48] sm:$0xff]
        %v2014 = vld [vmem:[%s17 + $0x50] sm:$0xff]
        %v2015 = vld [vmem:[%s17 + $0x58] sm:$0xff]
        %v2016 = vld [vmem:[%s17 + $0x60] sm:$0xff]
        %v2017 = vld [vmem:[%s17 + $0x68] sm:$0xff]
        %v2018 = vld [vmem:[%s17 + $0x70] sm:$0xff]
        %v2019 = vld [vmem:[%s17 + $0x78] sm:$0xff]
        %v2020 = vld [vmem:[%s17 + $0x80] sm:$0xff]
        %v2021 = vld [vmem:[%s17 + $0x88] sm:$0xff]
        %v2022 = vld [vmem:[%s17 + $0x90] sm:$0xff]
        %v2023 = vld [vmem:[%s17 + $0x98] sm:$0xff]
        %v2024 = vld [vmem:[%s17 + $0xa0] sm:$0xff]
        %v2025 = vld [vmem:[%s17 + $0xa8] sm:$0xff]
        %v2026 = vld [vmem:[%s17 + $0xb0] sm:$0xff]
        %v2027 = vld [vmem:[%s17 + $0xb8] sm:$0xff]
        %v2028 = vld [vmem:[%s17 + $0xc0] sm:$0xff]
        %v2029 = vld [vmem:[%s17 + $0xc8] sm:$0xff]
        %v2030 = vld [vmem:[%s17 + $0xd0] sm:$0xff]
        %v2031 = vld [vmem:[%s17 + $0xd8] sm:$0xff]
        %v2032 = vld [vmem:[%s17 + $0xe0] sm:$0xff]
        %v2033 = vld [vmem:[%s17 + $0xe8] sm:$0xff]
        %v2034 = vld [vmem:[%s17 + $0xf0] sm:$0xff]
        %v2035 = vld [vmem:[%s17 + $0xf8] sm:$0xff]
        %v2036 = vld [vmem:[%s17 + $0x100] sm:$0xff]
        %v2037 = vld [vmem:[%s17 + $0x108] sm:$0xff]
        %v2038 = vld [vmem:[%s17 + $0x110] sm:$0xff]
        %v2039 = vld [vmem:[%s17 + $0x118] sm:$0xff]
        %v2040 = vld [vmem:[%s17 + $0x120] sm:$0xff]
        %v2041 = vld [vmem:[%s17 + $0x128] sm:$0xff]
        %v2042 = vld [vmem:[%s17 + $0x130] sm:$0xff]
        %v2043 = vld [vmem:[%s17 + $0x138] sm:$0xff]
        %v2044 = vld [vmem:[%s17 + $0x140] sm:$0xff]
        %v2045 = vld [vmem:[%s17 + $0x148] sm:$0xff]
        %v2046 = vld [vmem:[%s17 + $0x150] sm:$0xff]
        %v2047 = vld [vmem:[%s17 + $0x158] sm:$0xff]
        %v2048 = vld [vmem:[%s17 + $0x160] sm:$0xff]
        %v2049 = vld [vmem:[%s17 + $0x168] sm:$0xff]
        %v2050 = vld [vmem:[%s17 + $0x170] sm:$0xff]
        %v2051 = vld [vmem:[%s17 + $0x178] sm:$0xff]
        %v2052 = vld [vmem:[%s17 + $0x180] sm:$0xff]
        %v2053 = vld [vmem:[%s17 + $0x188] sm:$0xff]
        %v2054 = vld [vmem:[%s17 + $0x190] sm:$0xff]
        %v2055 = vld [vmem:[%s17 + $0x198] sm:$0xff]
        %v2056 = vld [vmem:[%s17 + $0x1a0] sm:$0xff]
        %v2057 = vld [vmem:[%s17 + $0x1a8] sm:$0xff]
        %v2058 = vld [vmem:[%s17 + $0x1b0] sm:$0xff]
        %v2059 = vld [vmem:[%s17 + $0x1b8] sm:$0xff]
        %v2060 = vld [vmem:[%s17 + $0x1c0] sm:$0xff]
        %v2061 = vld [vmem:[%s17 + $0x1c8] sm:$0xff]
        %v2062 = vld [vmem:[%s17 + $0x1d0] sm:$0xff]
        %v2063 = vld [vmem:[%s17 + $0x1d8] sm:$0xff]
        %v2064 = vld [vmem:[%s17 + $0x1e0] sm:$0xff]
        %v2065 = vld [vmem:[%s17 + $0x1e8] sm:$0xff]
        %v2066 = vld [vmem:[%s17 + $0x1f0] sm:$0xff]
        %v2067 = vld [vmem:[%s17 + $0x1f8] sm:$0xff]
        %v2068 = vld [vmem:[%s18] sm:$0x1]
        %v2070 = vlaneseq
        %v2071 = vshrl.u32 %v2070, 7
        %v2072 = vsub.s32 0, %v2071
        %v2073 = vrot.slane %v2068, %v2072
        %2075 = vmatprep.subr.mxu0 0.0
        %2076 = vmatpush1.msra.mxu0 %v2004
        %2077 = vmatprep.subr.mxu0 0.0
        %2078 = vmatpush1.msra.mxu0 %v2005
        %2079 = vmatprep.subr.mxu0 0.0
        %2080 = vmatpush1.msra.mxu0 %v2006
        %2081 = vmatprep.subr.mxu0 0.0
        %2082 = vmatpush1.msra.mxu0 %v2007
        %2083 = vmatprep.subr.mxu0 0.0
        %2084 = vmatpush1.msra.mxu0 %v2008
        %2085 = vmatprep.subr.mxu0 0.0
        %2086 = vmatpush1.msra.mxu0 %v2009
        %2087 = vmatprep.subr.mxu0 0.0
        %2088 = vmatpush1.msra.mxu0 %v2010
        %2089 = vmatprep.subr.mxu0 0.0
        %2090 = vmatpush1.msra.mxu0 %v2011
        %2091 = vmatprep.subr.mxu0 0.0
        %2092 = vmatpush1.msra.mxu0 %v2012
        %2093 = vmatprep.subr.mxu0 0.0
        %2094 = vmatpush1.msra.mxu0 %v2013
        %2095 = vmatprep.subr.mxu0 0.0
        %2096 = vmatpush1.msra.mxu0 %v2014
        %2097 = vmatprep.subr.mxu0 0.0
        %2098 = vmatpush1.msra.mxu0 %v2015
        %2099 = vmatprep.subr.mxu0 0.0
        %2100 = vmatpush1.msra.mxu0 %v2016
        %2101 = vmatprep.subr.mxu0 0.0
        %2102 = vmatpush1.msra.mxu0 %v2017
        %2103 = vmatprep.subr.mxu0 0.0
        %2104 = vmatpush1.msra.mxu0 %v2018
        %2105 = vmatprep.subr.mxu0 0.0
        %2106 = vmatpush1.msra.mxu0 %v2019
        %2107 = vmatprep.subr.mxu0 0.0
        %2108 = vmatpush1.msra.mxu0 %v2020
        %2109 = vmatprep.subr.mxu0 0.0
        %2110 = vmatpush1.msra.mxu0 %v2021
        %2111 = vmatprep.subr.mxu0 0.0
        %2112 = vmatpush1.msra.mxu0 %v2022
        %2113 = vmatprep.subr.mxu0 0.0
        %2114 = vmatpush1.msra.mxu0 %v2023
        %2115 = vmatprep.subr.mxu0 0.0
        %2116 = vmatpush1.msra.mxu0 %v2024
        %2117 = vmatprep.subr.mxu0 0.0
        %2118 = vmatpush1.msra.mxu0 %v2025
        %2119 = vmatprep.subr.mxu0 0.0
        %2120 = vmatpush1.msra.mxu0 %v2026
        %2121 = vmatprep.subr.mxu0 0.0
        %2122 = vmatpush1.msra.mxu0 %v2027
        %2123 = vmatprep.subr.mxu0 0.0
        %2124 = vmatpush1.msra.mxu0 %v2028
        %2125 = vmatprep.subr.mxu0 0.0
        %2126 = vmatpush1.msra.mxu0 %v2029
        %2127 = vmatprep.subr.mxu0 0.0
        %2128 = vmatpush1.msra.mxu0 %v2030
        %2129 = vmatprep.subr.mxu0 0.0
        %2130 = vmatpush1.msra.mxu0 %v2031
        %2131 = vmatprep.subr.mxu0 0.0
        %2132 = vmatpush1.msra.mxu0 %v2032
        %2133 = vmatprep.subr.mxu0 0.0
        %2134 = vmatpush1.msra.mxu0 %v2033
        %2135 = vmatprep.subr.mxu0 0.0
        %2136 = vmatpush1.msra.mxu0 %v2034
        %2137 = vmatprep.subr.mxu0 0.0
        %2138 = vmatpush1.msra.mxu0 %v2035
        %2139 = vmatprep.mubr.f32.mxu0 %v2001
        %2140 = vmatmul.mubr.f32.gmra.mrb[0].mxu0 %v2000
        %v2141 = vpop.f32.mrb[0].mxu0
        %v2142 = vadd.f32 %v2073, %v2141
        %v2143 = vpop.f32.mrb[0].mxu0
        %2144 = vdwg.mxu0
        %2145 = vmatprep.subr.mxu0 0.0
        %2146 = vmatpush1.msra.mxu0 %v2036
        %2147 = vmatprep.subr.mxu0 0.0
        %2148 = vmatpush1.msra.mxu0 %v2037
        %2149 = vmatprep.subr.mxu0 0.0
        %2150 = vmatpush1.msra.mxu0 %v2038
        %2151 = vmatprep.subr.mxu0 0.0
        %2152 = vmatpush1.msra.mxu0 %v2039
        %2153 = vmatprep.subr.mxu0 0.0
        %2154 = vmatpush1.msra.mxu0 %v2040
        %2155 = vmatprep.subr.mxu0 0.0
        %2156 = vmatpush1.msra.mxu0 %v2041
        %2157 = vmatprep.subr.mxu0 0.0
        %2158 = vmatpush1.msra.mxu0 %v2042
        %2159 = vmatprep.subr.mxu0 0.0
        %2160 = vmatpush1.msra.mxu0 %v2043
        %2161 = vmatprep.subr.mxu0 0.0
        %2162 = vmatpush1.msra.mxu0 %v2044
        %2163 = vmatprep.subr.mxu0 0.0
        %2164 = vmatpush1.msra.mxu0 %v2045
        %2165 = vmatprep.subr.mxu0 0.0
        %2166 = vmatpush1.msra.mxu0 %v2046
        %2167 = vmatprep.subr.mxu0 0.0
        %2168 = vmatpush1.msra.mxu0 %v2047
        %2169 = vmatprep.subr.mxu0 0.0
        %2170 = vmatpush1.msra.mxu0 %v2048
        %2171 = vmatprep.subr.mxu0 0.0
        %2172 = vmatpush1.msra.mxu0 %v2049
        %2173 = vmatprep.subr.mxu0 0.0
        %2174 = vmatpush1.msra.mxu0 %v2050
        %2175 = vmatprep.subr.mxu0 0.0
        %2176 = vmatpush1.msra.mxu0 %v2051
        %2177 = vmatprep.subr.mxu0 0.0
        %2178 = vmatpush1.msra.mxu0 %v2052
        %2179 = vmatprep.subr.mxu0 0.0
        %2180 = vmatpush1.msra.mxu0 %v2053
        %2181 = vmatprep.subr.mxu0 0.0
        %2182 = vmatpush1.msra.mxu0 %v2054
        %2183 = vmatprep.subr.mxu0 0.0
        %2184 = vmatpush1.msra.mxu0 %v2055
        %2185 = vmatprep.subr.mxu0 0.0
        %2186 = vmatpush1.msra.mxu0 %v2056
        %2187 = vmatprep.subr.mxu0 0.0
        %2188 = vmatpush1.msra.mxu0 %v2057
        %2189 = vmatprep.subr.mxu0 0.0
        %2190 = vmatpush1.msra.mxu0 %v2058
        %2191 = vmatprep.subr.mxu0 0.0
        %2192 = vmatpush1.msra.mxu0 %v2059
        %2193 = vmatprep.subr.mxu0 0.0
        %2194 = vmatpush1.msra.mxu0 %v2060
        %2195 = vmatprep.subr.mxu0 0.0
        %2196 = vmatpush1.msra.mxu0 %v2061
        %2197 = vmatprep.subr.mxu0 0.0
        %2198 = vmatpush1.msra.mxu0 %v2062
        %2199 = vmatprep.subr.mxu0 0.0
        %2200 = vmatpush1.msra.mxu0 %v2063
        %2201 = vmatprep.subr.mxu0 0.0
        %2202 = vmatpush1.msra.mxu0 %v2064
        %2203 = vmatprep.subr.mxu0 0.0
        %2204 = vmatpush1.msra.mxu0 %v2065
        %2205 = vmatprep.subr.mxu0 0.0
        %2206 = vmatpush1.msra.mxu0 %v2066
        %2207 = vmatprep.subr.mxu0 0.0
        %2208 = vmatpush1.msra.mxu0 %v2067
        %2209 = vmatprep.mubr.f32.mxu0 %v2003
        %2210 = vmatmul.mubr.f32.gmra.mrb[0].mxu0 %v2002
        %v2211 = vpop.f32.mrb[0].mxu0
        %v2212 = vadd.f32 %v2142, %v2211
        %v2213 = vpop.f32.mrb[0].mxu0
        %2214 = vdwg.mxu0
        %v2215 = vadd.f32 %v1816, %v2212
        %v2216 = vld [vmem:[%s19] sm:$0x1]
        %v2217 = vld [vmem:[%s20] sm:$0x1]
        %v2218 = vsel %vm765, %v2215, 0.0
        %2219 = vadd.xlane.f32.xlu0 %v2218
        %v2220 = vpop.xlane.xlu0 %2219
        %v2221 = vmul.f32 %v2220, %v1792
        %v2222 = vsub.f32 %v2215, %v2221
        %v2223 = vmul.f32 %v2222, %v2222
        %v2224 = vsel %vm765, %v2223, 0.0
        %2225 = vadd.xlane.f32.xlu0 %v2224
        %v2226 = vpop.xlane.xlu0 %2225
        %v2227 = vmul.f32 %v2226, %v1792
        %v2228 = vadd.f32 %v2227, 1e-05
        %v2229 = vrsqrt.pop %v2228
        %v2230 = vmul.f32 %v2222, %v2229
        %v2232 = vlaneseq
        %v2233 = vshrl.u32 %v2232, 7
        %v2234 = vsub.s32 0, %v2233
        %v2235 = vrot.slane %v2216, %v2234
        %v2237 = vmul.f32 %v2230, %v2235
        %v2239 = vlaneseq
        %v2240 = vshrl.u32 %v2239, 7
        %v2241 = vsub.s32 0, %v2240
        %v2242 = vrot.slane %v2217, %v2241
        %v2244 = vadd.f32 %v2237, %v2242
        %v2245 = vld [vmem:[%s744] sm:$0xff]
        %v2246 = vld [vmem:[%s21] sm:$0xff]
        %v2247 = vld [vmem:[%s21 + $0x8] sm:$0xff]
        %v2248 = vld [vmem:[%s21 + $0x10] sm:$0xff]
        %v2249 = vld [vmem:[%s21 + $0x18] sm:$0xff]
        %v2250 = vld [vmem:[%s22] sm:$0xff]
        %v2251 = vld [vmem:[%s22 + $0x8] sm:$0xff]
        %v2252 = vld [vmem:[%s22 + $0x10] sm:$0xff]
        %v2253 = vld [vmem:[%s22 + $0x18] sm:$0xff]
        %v2255 = vsel %vm765, %v2244, 0
        %2257 = vmatprep.subr.mxu0 0.0
        %2258 = vmatpush1.msra.mxu0 %v2250
        %2259 = vmatprep.subr.mxu0 0.0
        %2260 = vmatpush1.msra.mxu0 %v2251
        %2261 = vmatprep.subr.mxu0 0.0
        %2262 = vmatpush1.msra.mxu0 %v2252
        %2263 = vmatprep.subr.mxu0 0.0
        %2264 = vmatpush1.msra.mxu0 %v2253
        %2265 = vmatprep.subr.mxu0 0.0
        %2266 = vmatpush1.msra.mxu0 0.0
        %2267 = vmatprep.subr.mxu0 0.0
        %2268 = vmatpush1.msra.mxu0 0.0
        %2269 = vmatprep.subr.mxu0 0.0
        %2270 = vmatpush1.msra.mxu0 0.0
        %2271 = vmatprep.subr.mxu0 0.0
        %2272 = vmatpush1.msra.mxu0 0.0
        %2273 = vmatprep.subr.mxu0 0.0
        %2274 = vmatpush1.msra.mxu0 0.0
        %2275 = vmatprep.subr.mxu0 0.0
        %2276 = vmatpush1.msra.mxu0 0.0
        %2277 = vmatprep.subr.mxu0 0.0
        %2278 = vmatpush1.msra.mxu0 0.0
        %2279 = vmatprep.subr.mxu0 0.0
        %2280 = vmatpush1.msra.mxu0 0.0
        %2281 = vmatprep.subr.mxu0 0.0
        %2282 = vmatpush1.msra.mxu0 0.0
        %2283 = vmatprep.subr.mxu0 0.0
        %2284 = vmatpush1.msra.mxu0 0.0
        %2285 = vmatprep.subr.mxu0 0.0
        %2286 = vmatpush1.msra.mxu0 0.0
        %2287 = vmatprep.subr.mxu0 0.0
        %2288 = vmatpush1.msra.mxu0 0.0
        %2289 = vmatprep.subr.mxu0 0.0
        %2290 = vmatpush1.msra.mxu0 0.0
        %2291 = vmatprep.subr.mxu0 0.0
        %2292 = vmatpush1.msra.mxu0 0.0
        %2293 = vmatprep.subr.mxu0 0.0
        %2294 = vmatpush1.msra.mxu0 0.0
        %2295 = vmatprep.subr.mxu0 0.0
        %2296 = vmatpush1.msra.mxu0 0.0
        %2297 = vmatprep.subr.mxu0 0.0
        %2298 = vmatpush1.msra.mxu0 0.0
        %2299 = vmatprep.subr.mxu0 0.0
        %2300 = vmatpush1.msra.mxu0 0.0
        %2301 = vmatprep.subr.mxu0 0.0
        %2302 = vmatpush1.msra.mxu0 0.0
        %2303 = vmatprep.subr.mxu0 0.0
        %2304 = vmatpush1.msra.mxu0 0.0
        %2305 = vmatprep.subr.mxu0 0.0
        %2306 = vmatpush1.msra.mxu0 0.0
        %2307 = vmatprep.subr.mxu0 0.0
        %2308 = vmatpush1.msra.mxu0 0.0
        %2309 = vmatprep.subr.mxu0 0.0
        %2310 = vmatpush1.msra.mxu0 0.0
        %2311 = vmatprep.subr.mxu0 0.0
        %2312 = vmatpush1.msra.mxu0 0.0
        %2313 = vmatprep.subr.mxu0 0.0
        %2314 = vmatpush1.msra.mxu0 0.0
        %2315 = vmatprep.subr.mxu0 0.0
        %2316 = vmatpush1.msra.mxu0 0.0
        %2317 = vmatprep.subr.mxu0 0.0
        %2318 = vmatpush1.msra.mxu0 0.0
        %2319 = vmatprep.subr.mxu0 0.0
        %2320 = vmatpush1.msra.mxu0 0.0
        %2321 = vmatprep.mubr.f32.mxu0 0.0
        %2322 = vmatmul.mubr.f32.gmra.mrb[0].mxu0 %v2255
        %v2323 = vpop.f32.mrb[0].mxu0
        %v2324 = vadd.f32 0.0, %v2323
        %v2325 = vpop.f32.mrb[0].mxu0
        %2326 = vdwg.mxu0
        %v2328 = vsel %vm765, %v2245, 0
        %2330 = vmatprep.subr.mxu0 0.0
        %2331 = vmatpush1.msra.mxu0 %v2246
        %2332 = vmatprep.subr.mxu0 0.0
        %2333 = vmatpush1.msra.mxu0 %v2247
        %2334 = vmatprep.subr.mxu0 0.0
        %2335 = vmatpush1.msra.mxu0 %v2248
        %2336 = vmatprep.subr.mxu0 0.0
        %2337 = vmatpush1.msra.mxu0 %v2249
        %2338 = vmatprep.subr.mxu0 0.0
        %2339 = vmatpush1.msra.mxu0 0.0
        %2340 = vmatprep.subr.mxu0 0.0
        %2341 = vmatpush1.msra.mxu0 0.0
        %2342 = vmatprep.subr.mxu0 0.0
        %2343 = vmatpush1.msra.mxu0 0.0
        %2344 = vmatprep.subr.mxu0 0.0
        %2345 = vmatpush1.msra.mxu0 0.0
        %2346 = vmatprep.subr.mxu0 0.0
        %2347 = vmatpush1.msra.mxu0 0.0
        %2348 = vmatprep.subr.mxu0 0.0
        %2349 = vmatpush1.msra.mxu0 0.0
        %2350 = vmatprep.subr.mxu0 0.0
        %2351 = vmatpush1.msra.mxu0 0.0
        %2352 = vmatprep.subr.mxu0 0.0
        %2353 = vmatpush1.msra.mxu0 0.0
        %2354 = vmatprep.subr.mxu0 0.0
        %2355 = vmatpush1.msra.mxu0 0.0
        %2356 = vmatprep.subr.mxu0 0.0
        %2357 = vmatpush1.msra.mxu0 0.0
        %2358 = vmatprep.subr.mxu0 0.0
        %2359 = vmatpush1.msra.mxu0 0.0
        %2360 = vmatprep.subr.mxu0 0.0
        %2361 = vmatpush1.msra.mxu0 0.0
        %2362 = vmatprep.subr.mxu0 0.0
        %2363 = vmatpush1.msra.mxu0 0.0
        %2364 = vmatprep.subr.mxu0 0.0
        %2365 = vmatpush1.msra.mxu0 0.0
        %2366 = vmatprep.subr.mxu0 0.0
        %2367 = vmatpush1.msra.mxu0 0.0
        %2368 = vmatprep.subr.mxu0 0.0
        %2369 = vmatpush1.msra.mxu0 0.0
        %2370 = vmatprep.subr.mxu0 0.0
        %2371 = vmatpush1.msra.mxu0 0.0
        %2372 = vmatprep.subr.mxu0 0.0
        %2373 = vmatpush1.msra.mxu0 0.0
        %2374 = vmatprep.subr.mxu0 0.0
        %2375 = vmatpush1.msra.mxu0 0.0
        %2376 = vmatprep.subr.mxu0 0.0
        %2377 = vmatpush1.msra.mxu0 0.0
        %2378 = vmatprep.subr.mxu0 0.0
        %2379 = vmatpush1.msra.mxu0 0.0
        %2380 = vmatprep.subr.mxu0 0.0
        %2381 = vmatpush1.msra.mxu0 0.0
        %2382 = vmatprep.subr.mxu0 0.0
        %2383 = vmatpush1.msra.mxu0 0.0
        %2384 = vmatprep.subr.mxu0 0.0
        %2385 = vmatpush1.msra.mxu0 0.0
        %2386 = vmatprep.subr.mxu0 0.0
        %2387 = vmatpush1.msra.mxu0 0.0
        %2388 = vmatprep.subr.mxu0 0.0
        %2389 = vmatpush1.msra.mxu0 0.0
        %2390 = vmatprep.subr.mxu0 0.0
        %2391 = vmatpush1.msra.mxu0 0.0
        %2392 = vmatprep.subr.mxu0 0.0
        %2393 = vmatpush1.msra.mxu0 0.0
        %2394 = vmatprep.mubr.f32.mxu0 0.0
        %2395 = vmatmul.mubr.f32.gmra.mrb[0].mxu0 %v2328
        %v2396 = vpop.f32.mrb[0].mxu0
        %v2397 = vadd.f32 %v2324, %v2396
        %v2398 = vpop.f32.mrb[0].mxu0
        %2399 = vdwg.mxu0
        %2400 = vst [vmem:[%s730] sm:$0xff] %v2397
        %s2401 = sand.u32 %s543, 1
        %s2402 = scalar_lea.sflag [#allocation3], %s2401
        %s2403 = sand.u32 %s543, 1
        %s2404 = smul.addr %s2403, 8
        %s2405 = scalar_lea.vmem [#allocation2], %s2404
        // Predicated region
        $region113: #{tpu_custom_call.1} parent=111 // pred_check
          %p2406 = pneg %p553
        $region114: #{tpu_custom_call.1} parent=111 // pred_check_branch
          %2408 = sbr.rel (%p2406) target = $region116
        $region115: #{tpu_custom_call.1} parent=111 // pred_region
          %s2410 = ssub.s32 128, 128
          %2411 = vsyncadd %s2402, %s2410
          %s2412 = smul.addr %s37, 128
          %s2413 = scalar_lea.hbm %s23, %s2412
          %s2415 = sshll.u32 %s2405, 4
          %s2416 = int_to_ptr.vmem [resolvable:$true] %s2415
          %2418 = dma.vmem_to_hbm [thread:$0]  %s2416, 128, %s2413, %s2402
        $region116: #{tpu_custom_call.1} parent=111 // pred_fallthru
          _
      $region112: #{tpu_custom_call.1} parent=5 // pred_fallthru
        _
      %p2419 = scmp.le.s32.totalorder 2, %s32
      // Predicated region
      $region117: #{tpu_custom_call.1} parent=5 // pred_check
        %p2420 = pneg %p2419
      $region118: #{tpu_custom_call.1} parent=5 // pred_check_branch
        %2422 = sbr.rel (%p2420) target = $region120
      $region119: #{tpu_custom_call.1} parent=5 // pred_region
        %s2423 = ssub.s32 %s32, 2
        // Predicated region
        $region121: #{tpu_custom_call.1} parent=119 // pred_check
          %p2424 = pneg %p559
        $region122: #{tpu_custom_call.1} parent=119 // pred_check_branch
          %2426 = sbr.rel (%p2424) target = $region124
        $region123: #{tpu_custom_call.1} parent=119 // pred_region
          %s2427 = sand.u32 %s544, 1
          %s2428 = scalar_lea.sflag [#allocation3], %s2427
          %s2429 = sand.u32 %s544, 1
          %s2430 = smul.addr %s2429, 8
          %s2431 = scalar_lea.vmem [#allocation2], %s2430
          %2432 = dma.done %s2428, 128
        $region124: #{tpu_custom_call.1} parent=119 // pred_fallthru
          _
      $region120: #{tpu_custom_call.1} parent=5 // pred_fallthru
        _
    $region6: #{tpu_custom_call.1} parent=1 // loop_footer
      %s36 = sadd.s32 1, %s32
    $region7: #{tpu_custom_call.1} parent=1 // loop_footer_branch
      %31 = sbr.rel target = $region3
    $region8: #{tpu_custom_call.1} parent=1 // loop_exit
      _
    %2433 = vsyncpa [#allocation3], 1
    %s2434 = scalar_lea.sflag [#allocation3], 1
    %2435 = vsyncpa %s2434, 1

</llo_original>
